<compile_context>
chip_gen: v5e
topology: v5e:2x2
jax: 0.10.0
libtpu: 0.0.40
codegen_flags: <defaults>
</compile_context>

<pallas_src>
import functools

import jax
import jax.numpy as jnp
from jax.experimental import pallas as pl
from jax.experimental.pallas import tpu as pltpu


# ---------------------------------------------------------------------------
# helpers
# ---------------------------------------------------------------------------
def _layernorm(h, gamma, beta, eps=1e-5):
    # One-pass LN: a single pair of row reductions (sum, sum-of-squares)
    # instead of mean + mean((h-mu)^2); halves the XLU reduction passes.
    mu = jnp.mean(h, axis=-1, keepdims=True)
    msq = jnp.mean(h * h, axis=-1, keepdims=True)
    var = msq - mu * mu
    return (h - mu) * jax.lax.rsqrt(var + eps) * gamma + beta


def _erf(x):
    # Abramowitz & Stegun 7.1.26 polynomial erf (|err| < 1.5e-7); only uses
    # VPU/EUP-friendly ops (exp, mul, add, rcp) so it always lowers on TPU.
    a1, a2, a3, a4, a5 = 0.254829592, -0.284496736, 1.421413741, -1.453152027, 1.061405429
    p = 0.3275911
    s = jnp.where(x >= 0.0, 1.0, -1.0)
    ax = jnp.abs(x)
    t = pl.reciprocal(1.0 + p * ax, approx=True)     # EUP slot, ~free
    poly = ((((a5 * t + a4) * t + a3) * t + a2) * t + a1) * t
    return s * (1.0 - poly * jnp.exp(-ax * ax))


def _gelu(x):  # exact (erf) GELU, matching nn.GELU default
    return 0.5 * x * (1.0 + _erf(x * 0.7071067811865476))


# ---------------------------------------------------------------------------
# fused kernel: patch_embed_1 + max-pool + patch_embed_2 + max-pool + pos MLP
# ---------------------------------------------------------------------------
def fused_embed_kernel(x_ref, p_ref,
                       w1a_ref, b1a_ref, g1_ref, be1_ref, w1b_ref, b1b_ref,
                       w2ag_ref, w2al_ref, b2a_ref, g2_ref, be2_ref,
                       w2b_ref, b2b_ref,
                       wp1_ref, bp1_ref, wp2_ref, bp2_ref,
                       out_ref, *, tm, group, use_pos):
    e = out_ref.shape[-1]
    bf = jnp.bfloat16
    x = x_ref[...]                                                 # (tm*g, 3) f32

    # ---- patch_embed_1: Conv1d(3,128,1) -> LN(128) -> ReLU -> Conv1d(128,256,1)
    # 3->128 projection as three VPU broadcast-FMAs (K=3 matmul wastes the MXU).
    h = (x[:, 0:1] * w1a_ref[0:1, :]
         + x[:, 1:2] * w1a_ref[1:2, :]
         + x[:, 2:3] * w1a_ref[2:3, :]
         + b1a_ref[...])                                           # (tm*g, 128)
    # TODO(synk): nn.LayerNorm in the reference Sequential would act on the group
    # axis (shape-inconsistent as written); implemented as channel LayerNorm.
    h = jnp.maximum(_layernorm(h, g1_ref[...], be1_ref[...]), 0.0)
    h = jnp.dot(h.astype(bf), w1b_ref[...],
                preferred_element_type=jnp.float32) + b1b_ref[...]  # (tm*g, 256)

    # ---- per-token max pool + split 512x512 conv.
    # feat = concat([bcast(gmax), h], -1) @ w2a
    #      == gmax @ w2a[:256] (broadcast over group) + h @ w2a[256:]
    gmax = jnp.max(h.reshape(tm, group, 256), axis=1)              # (tm, 256)
    h2_loc = jnp.dot(h.astype(bf), w2al_ref[...],
                     preferred_element_type=jnp.float32)           # (tm*g, 512)
    h2_glb = jnp.dot(gmax.astype(bf), w2ag_ref[...],
                     preferred_element_type=jnp.float32)           # (tm, 512)
    h2 = (h2_loc.reshape(tm, group, 512) + h2_glb[:, None, :]
          + b2a_ref[...]).reshape(tm * group, 512)

    # ---- patch_embed_2 tail: LN(512) -> ReLU -> Conv1d(512,E,1) -> max-pool
    # Cast the LN+ReLU result straight to bf16 (it feeds the MXU anyway);
    # avoids holding a second f32 (R,512) slab live.
    h2 = jnp.maximum(_layernorm(h2, g2_ref[...], be2_ref[...]), 0.0).astype(bf)
    h2 = jnp.dot(h2, w2b_ref[...],
                 preferred_element_type=jnp.float32) + b2b_ref[...]  # (tm*g, E)
    tok = jnp.max(h2.reshape(tm, group, e), axis=1)                  # (tm, E)

    # ---- fused pos_embed: Linear(3,128) -> GELU -> Linear(128,E)
    if use_pos:
        p = p_ref[...]                                               # (tm, 3)
        hp = (p[:, 0:1] * wp1_ref[0:1, :]
              + p[:, 1:2] * wp1_ref[1:2, :]
              + p[:, 2:3] * wp1_ref[2:3, :]
              + bp1_ref[...])                                        # (tm, 128)
        hp = _gelu(hp)
        tok = tok + jnp.dot(hp.astype(bf), wp2_ref[...],
                            preferred_element_type=jnp.float32) + bp2_ref[...]

    out_ref[...] = tok


# ---------------------------------------------------------------------------
# wrappers
# ---------------------------------------------------------------------------
def _w_spec(a):
    nd = a.ndim
    return pl.BlockSpec(a.shape, lambda i, _nd=nd: (0,) * _nd)


def _round8(n):
    return ((n + 7) // 8) * 8


def _pick_tile_and_vmem():
    """Per-chip token tile + scoped-VMEM limit (conservative fallback)."""
    try:
        cap = int(pltpu.get_tpu_info().vmem_capacity_bytes)
    except Exception:
        cap = 64 * 1024 * 1024
    if cap >= 100 * 1024 * 1024:        # v5e / v6e: 128 MiB physical VMEM
        return 256, 96 * 1024 * 1024
    return 128, 48 * 1024 * 1024        # v7x (64 MiB) or unknown: stay safe


def prepare_params(params):
    """Hoist per-call weight prep out of the forward path: bf16 MXU weights
    and the w2a global/local split are computed once and stored."""
    if "w2ag_bf" in params:
        return params
    bf = jnp.bfloat16
    p = dict(params)
    w2a = params["w2a"]
    p["w1b_bf"] = params["w1b"].astype(bf)
    p["w2ag_bf"] = w2a[:256].astype(bf)
    p["w2al_bf"] = w2a[256:].astype(bf)
    p["w2b_bf"] = params["w2b"].astype(bf)
    p["wp2_bf"] = params["wp2"].astype(bf)
    return p


def fused_embed(flat_pts, flat_pos, params, *, n_tokens, group, tm, use_pos):
    e = params["w2b"].shape[1]

    w_args = [params["w1a"], params["b1a"], params["g1"], params["be1"],
              params["w1b_bf"], params["b1b"],
              params["w2ag_bf"], params["w2al_bf"], params["b2a"],
              params["g2"], params["be2"], params["w2b_bf"], params["b2b"],
              params["wp1"], params["bp1"], params["wp2_bf"], params["bp2"]]

    tm_default, vmem_limit = _pick_tile_and_vmem()
    if tm is None:
        tm = tm_default

    # Token tile: multiple of 8, no larger than the (8-rounded) token count.
    tm = max(8, min(tm, _round8(n_tokens)))
    # Keep >= 2 grid tiles when possible so the "parallel" axis can span both
    # TensorCores on v7x (and amortization still holds at realistic sizes).
    if n_tokens >= 16 and pl.cdiv(n_tokens, tm) < 2:
        tm = max(8, _round8(pl.cdiv(n_tokens, 2)))

    n_tiles = pl.cdiv(n_tokens, tm)
    n_pad = n_tiles * tm
    if n_pad != n_tokens:                      # pad tail tile (rows dropped below)
        flat_pts = jnp.pad(flat_pts, ((0, (n_pad - n_tokens) * group), (0, 0)))
        flat_pos = jnp.pad(flat_pos, ((0, n_pad - n_tokens), (0, 0)))

    rows = n_pad * group
    flops = int(2 * rows * (3 * 128 + 128 * 256 + 256 * 512 + 512 * e)
                + 2 * n_pad * (256 * 512 + 3 * 128 + 128 * e))
    bytes_accessed = int(rows * 3 * 4 + n_pad * (3 + e) * 4 + n_pad * e * 4
                         + sum(int(w.size) * w.dtype.itemsize for w in w_args))
    cost = pl.CostEstimate(flops=flops,
                           transcendentals=int(n_pad * 128 + rows * 2),
                           bytes_accessed=bytes_accessed)

    out = pl.pallas_call(
        functools.partial(fused_embed_kernel, tm=tm, group=group, use_pos=use_pos),
        out_shape=jax.ShapeDtypeStruct((n_pad, e), jnp.float32),
        grid=(n_tiles,),
        in_specs=[pl.BlockSpec((tm * group, 3), lambda i: (i, 0)),
                  pl.BlockSpec((tm, 3), lambda i: (i, 0))]
        + [_w_spec(w) for w in w_args],
        out_specs=pl.BlockSpec((tm, e), lambda i: (i, 0)),
        compiler_params=pltpu.CompilerParams(
            dimension_semantics=("parallel",),
            vmem_limit_bytes=vmem_limit),
        cost_estimate=cost,
    )(flat_pts, flat_pos, *w_args)
    return out[:n_tokens]


def embedding_posself_forward(x, pos, params, *, tm=None, use_pos=True):
    b, two, s, g, c = x.shape
    assert two == 2 and c == 3
    params = prepare_params(params)
    e = params["w2b"].shape[1]
    n_tokens = 2 * b * s

    flat_pts = x.reshape(n_tokens * g, c)      # layout-preserving reshape, no concat
    flat_pos = pos.reshape(n_tokens, c)

    feats = fused_embed(flat_pts, flat_pos, params, n_tokens=n_tokens,
                        group=g, tm=tm, use_pos=use_pos)             # (2bS, E)
    feats = feats.reshape(b, 2, s, e)

    cls = params["cls_token"]
    if use_pos:
        cls = cls + params["cls_pos"]          # cls row of (pt + pos)
    cls = jnp.broadcast_to(cls, (b, 1, e))
    o1 = jnp.concatenate([feats[:, 0], cls], axis=1)
    o2 = jnp.concatenate([feats[:, 1], cls], axis=1)
    return o1, o2


# ---------------------------------------------------------------------------
# deterministic parameter init (synthetic; shapes follow the module __init__)
# ---------------------------------------------------------------------------
def init_params(key, embedding_dim=512):
    ks = jax.random.split(key, 14)
    rnd = lambda k, shape, sc: (jax.random.normal(k, shape, jnp.float32) * sc)
    p = {}
    # patch_embed_1: Conv1d(3,128,1) [stored (in,out)], LayerNorm(128), Conv1d(128,256,1)
    p["w1a"] = rnd(ks[0], (3, 128), 0.30)
    p["b1a"] = rnd(ks[1], (1, 128), 0.02)
    p["g1"] = jnp.ones((1, 128), jnp.float32)
    p["be1"] = jnp.zeros((1, 128), jnp.float32)
    p["w1b"] = rnd(ks[2], (128, 256), 0.05)
    p["b1b"] = rnd(ks[3], (1, 256), 0.02)
    # patch_embed_2: Conv1d(512,512,1), LayerNorm(512), Conv1d(512,E,1)
    p["w2a"] = rnd(ks[4], (512, 512), 0.03)
    p["b2a"] = rnd(ks[5], (1, 512), 0.02)
    p["g2"] = jnp.ones((1, 512), jnp.float32)
    p["be2"] = jnp.zeros((1, 512), jnp.float32)
    p["w2b"] = rnd(ks[6], (512, embedding_dim), 0.03)
    p["b2b"] = rnd(ks[7], (1, embedding_dim), 0.02)
    # pos_embed: Linear(3,128), GELU, Linear(128,E)
    p["wp1"] = rnd(ks[8], (3, 128), 0.30)
    p["bp1"] = rnd(ks[9], (1, 128), 0.02)
    p["wp2"] = rnd(ks[10], (128, embedding_dim), 0.05)
    p["bp2"] = rnd(ks[11], (1, embedding_dim), 0.02)
    # cls token / cls pos (trunc_normal std=0.02 approximated by scaled normal)
    p["cls_token"] = rnd(ks[12], (1, 1, embedding_dim), 0.02)
    p["cls_pos"] = rnd(ks[13], (1, 1, embedding_dim), 0.02)
    return p


if __name__ == "__main__":
    key = jax.random.PRNGKey(0)
    kx, kp, kw = jax.random.split(key, 3)

    b, seq_len, group, c = 2, 4, 16, 3
    embedding_dim = 512

    x = jax.random.normal(kx, (b, 2, seq_len, group, c), jnp.float32)
    pos = jax.random.normal(kp, (b, 2, seq_len, c), jnp.float32)
    params = prepare_params(init_params(kw, embedding_dim))   # one-time weight prep

    out1, out2 = embedding_posself_forward(x, pos, params, use_pos=True)
    out1 = jax.block_until_ready(out1)
    out2 = jax.block_until_ready(out2)

    assert out1.shape == (b, seq_len + 1, embedding_dim), out1.shape
    assert out2.shape == (b, seq_len + 1, embedding_dim), out2.shape
    assert bool(jnp.all(jnp.isfinite(out1))) and bool(jnp.all(jnp.isfinite(out2)))
    print("KERNEL_OK")
</pallas_src>

<mosaic_0001>
module attributes {stable_mosaic.version = 11 : i64} {
  func.func @fused_embed_kernel(%arg0: i32, %arg1: memref<128x3xf32, #tpu.memory_space<vmem>>, %arg2: memref<8x3xf32, #tpu.memory_space<vmem>>, %arg3: memref<3x128xf32, #tpu.memory_space<vmem>>, %arg4: memref<1x128xf32, #tpu.memory_space<vmem>>, %arg5: memref<1x128xf32, #tpu.memory_space<vmem>>, %arg6: memref<1x128xf32, #tpu.memory_space<vmem>>, %arg7: memref<128x256xbf16, #tpu.memory_space<vmem>>, %arg8: memref<1x256xf32, #tpu.memory_space<vmem>>, %arg9: memref<256x512xbf16, #tpu.memory_space<vmem>>, %arg10: memref<256x512xbf16, #tpu.memory_space<vmem>>, %arg11: memref<1x512xf32, #tpu.memory_space<vmem>>, %arg12: memref<1x512xf32, #tpu.memory_space<vmem>>, %arg13: memref<1x512xf32, #tpu.memory_space<vmem>>, %arg14: memref<512x512xbf16, #tpu.memory_space<vmem>>, %arg15: memref<1x512xf32, #tpu.memory_space<vmem>>, %arg16: memref<3x128xf32, #tpu.memory_space<vmem>>, %arg17: memref<1x128xf32, #tpu.memory_space<vmem>>, %arg18: memref<128x512xbf16, #tpu.memory_space<vmem>>, %arg19: memref<1x512xf32, #tpu.memory_space<vmem>>, %arg20: memref<8x512xf32, #tpu.memory_space<vmem>>) attributes {dimension_semantics = [#tpu.dimension_semantics<parallel>], iteration_bounds = array<i64: 2>, scalar_prefetch = 0 : i64, scratch_operands = 0 : i64, tpu.core_type = #tpu.core_type<tc>, window_params = [{transform_indices = @transform_0, window_bounds = array<i64: 128, 3>}, {transform_indices = @transform_1, window_bounds = array<i64: 8, 3>}, {pipeline_mode = #tpu.pipeline_mode<synchronous>, transform_indices = @transform_2, window_bounds = array<i64: 3, 128>}, {pipeline_mode = #tpu.pipeline_mode<synchronous>, transform_indices = @transform_3, window_bounds = array<i64: 1, 128>}, {pipeline_mode = #tpu.pipeline_mode<synchronous>, transform_indices = @transform_4, window_bounds = array<i64: 1, 128>}, {pipeline_mode = #tpu.pipeline_mode<synchronous>, transform_indices = @transform_5, window_bounds = array<i64: 1, 128>}, {pipeline_mode = #tpu.pipeline_mode<synchronous>, transform_indices = @transform_6, window_bounds = array<i64: 128, 256>}, {pipeline_mode = #tpu.pipeline_mode<synchronous>, transform_indices = @transform_7, window_bounds = array<i64: 1, 256>}, {pipeline_mode = #tpu.pipeline_mode<synchronous>, transform_indices = @transform_8, window_bounds = array<i64: 256, 512>}, {pipeline_mode = #tpu.pipeline_mode<synchronous>, transform_indices = @transform_9, window_bounds = array<i64: 256, 512>}, {pipeline_mode = #tpu.pipeline_mode<synchronous>, transform_indices = @transform_10, window_bounds = array<i64: 1, 512>}, {pipeline_mode = #tpu.pipeline_mode<synchronous>, transform_indices = @transform_11, window_bounds = array<i64: 1, 512>}, {pipeline_mode = #tpu.pipeline_mode<synchronous>, transform_indices = @transform_12, window_bounds = array<i64: 1, 512>}, {pipeline_mode = #tpu.pipeline_mode<synchronous>, transform_indices = @transform_13, window_bounds = array<i64: 512, 512>}, {pipeline_mode = #tpu.pipeline_mode<synchronous>, transform_indices = @transform_14, window_bounds = array<i64: 1, 512>}, {pipeline_mode = #tpu.pipeline_mode<synchronous>, transform_indices = @transform_15, window_bounds = array<i64: 3, 128>}, {pipeline_mode = #tpu.pipeline_mode<synchronous>, transform_indices = @transform_16, window_bounds = array<i64: 1, 128>}, {pipeline_mode = #tpu.pipeline_mode<synchronous>, transform_indices = @transform_17, window_bounds = array<i64: 128, 512>}, {pipeline_mode = #tpu.pipeline_mode<synchronous>, transform_indices = @transform_18, window_bounds = array<i64: 1, 512>}, {transform_indices = @transform_19, window_bounds = array<i64: 8, 512>}]} {
    %c0 = arith.constant 0 : index
    %c0_0 = arith.constant 0 : index
    %0 = vector.load %arg1[%c0, %c0_0] : memref<128x3xf32, #tpu.memory_space<vmem>>, vector<128x3xf32>
    %1 = vector.extract_strided_slice %0 {offsets = [0, 0], sizes = [128, 1], strides = [1, 1]} : vector<128x3xf32> to vector<128x1xf32>
    %c0_1 = arith.constant 0 : index
    %c0_2 = arith.constant 0 : index
    %2 = vector.load %arg3[%c0_1, %c0_2] : memref<3x128xf32, #tpu.memory_space<vmem>>, vector<1x128xf32>
    %3 = vector.broadcast %1 : vector<128x1xf32> to vector<128x128xf32>
    %4 = vector.broadcast %2 : vector<1x128xf32> to vector<128x128xf32>
    %5 = arith.mulf %3, %4 : vector<128x128xf32>
    %6 = vector.extract_strided_slice %0 {offsets = [0, 1], sizes = [128, 1], strides = [1, 1]} : vector<128x3xf32> to vector<128x1xf32>
    %c1 = arith.constant 1 : index
    %c0_3 = arith.constant 0 : index
    %7 = vector.load %arg3[%c1, %c0_3] : memref<3x128xf32, #tpu.memory_space<vmem>>, vector<1x128xf32>
    %8 = vector.broadcast %6 : vector<128x1xf32> to vector<128x128xf32>
    %9 = vector.broadcast %7 : vector<1x128xf32> to vector<128x128xf32>
    %10 = arith.mulf %8, %9 : vector<128x128xf32>
    %11 = arith.addf %5, %10 : vector<128x128xf32>
    %12 = vector.extract_strided_slice %0 {offsets = [0, 2], sizes = [128, 1], strides = [1, 1]} : vector<128x3xf32> to vector<128x1xf32>
    %c2 = arith.constant 2 : index
    %c0_4 = arith.constant 0 : index
    %13 = vector.load %arg3[%c2, %c0_4] : memref<3x128xf32, #tpu.memory_space<vmem>>, vector<1x128xf32>
    %14 = vector.broadcast %12 : vector<128x1xf32> to vector<128x128xf32>
    %15 = vector.broadcast %13 : vector<1x128xf32> to vector<128x128xf32>
    %16 = arith.mulf %14, %15 : vector<128x128xf32>
    %17 = arith.addf %11, %16 : vector<128x128xf32>
    %c0_5 = arith.constant 0 : index
    %c0_6 = arith.constant 0 : index
    %18 = vector.load %arg4[%c0_5, %c0_6] : memref<1x128xf32, #tpu.memory_space<vmem>>, vector<1x128xf32>
    %19 = vector.broadcast %18 : vector<1x128xf32> to vector<128x128xf32>
    %20 = arith.addf %17, %19 : vector<128x128xf32>
    %c0_7 = arith.constant 0 : index
    %c0_8 = arith.constant 0 : index
    %21 = vector.load %arg5[%c0_7, %c0_8] : memref<1x128xf32, #tpu.memory_space<vmem>>, vector<1x128xf32>
    %c0_9 = arith.constant 0 : index
    %c0_10 = arith.constant 0 : index
    %22 = vector.load %arg6[%c0_9, %c0_10] : memref<1x128xf32, #tpu.memory_space<vmem>>, vector<1x128xf32>
    %cst = arith.constant dense<0.000000e+00> : vector<128xf32>
    %23 = vector.multi_reduction <add>, %20, %cst [1] : vector<128x128xf32> to vector<128xf32>
    %24 = vector.shape_cast %23 : vector<128xf32> to vector<128x1xf32>
    %cst_11 = arith.constant 1.280000e+02 : f32
    %25 = vector.broadcast %cst_11 : f32 to vector<128x1xf32>
    %26 = arith.divf %24, %25 : vector<128x1xf32>
    %27 = arith.mulf %20, %20 : vector<128x128xf32>
    %cst_12 = arith.constant dense<0.000000e+00> : vector<128xf32>
    %28 = vector.multi_reduction <add>, %27, %cst_12 [1] : vector<128x128xf32> to vector<128xf32>
    %29 = vector.shape_cast %28 : vector<128xf32> to vector<128x1xf32>
    %cst_13 = arith.constant 1.280000e+02 : f32
    %30 = vector.broadcast %cst_13 : f32 to vector<128x1xf32>
    %31 = arith.divf %29, %30 : vector<128x1xf32>
    %32 = arith.mulf %26, %26 : vector<128x1xf32>
    %33 = arith.subf %31, %32 : vector<128x1xf32>
    %34 = vector.broadcast %26 : vector<128x1xf32> to vector<128x128xf32>
    %35 = arith.subf %20, %34 : vector<128x128xf32>
    %cst_14 = arith.constant 9.99999974E-6 : f32
    %36 = vector.broadcast %cst_14 : f32 to vector<128x1xf32>
    %37 = arith.addf %33, %36 : vector<128x1xf32>
    %38 = math.rsqrt %37 : vector<128x1xf32>
    %39 = vector.broadcast %38 : vector<128x1xf32> to vector<128x128xf32>
    %40 = arith.mulf %35, %39 : vector<128x128xf32>
    %41 = vector.broadcast %21 : vector<1x128xf32> to vector<128x128xf32>
    %42 = arith.mulf %40, %41 : vector<128x128xf32>
    %43 = vector.broadcast %22 : vector<1x128xf32> to vector<128x128xf32>
    %44 = arith.addf %42, %43 : vector<128x128xf32>
    %cst_15 = arith.constant 0.000000e+00 : f32
    %45 = vector.broadcast %cst_15 : f32 to vector<128x128xf32>
    %46 = arith.maximumf %44, %45 : vector<128x128xf32>
    %47 = arith.truncf %46 : vector<128x128xf32> to vector<128x128xbf16>
    %c0_16 = arith.constant 0 : index
    %c0_17 = arith.constant 0 : index
    %48 = vector.load %arg7[%c0_16, %c0_17] : memref<128x256xbf16, #tpu.memory_space<vmem>>, vector<128x256xbf16>
    %cst_18 = arith.constant dense<0.000000e+00> : vector<128x256xf32>
    %49 = tpu.matmul %47, %48, %cst_18 {dimension_numbers = #tpu.dot_dimension_numbers<[1], [0], [0], [1], [0, 0, 1, 1], [], []>} : vector<128x128xbf16>, vector<128x256xbf16>, vector<128x256xf32> -> vector<128x256xf32>
    %c0_19 = arith.constant 0 : index
    %c0_20 = arith.constant 0 : index
    %50 = vector.load %arg8[%c0_19, %c0_20] : memref<1x256xf32, #tpu.memory_space<vmem>>, vector<1x256xf32>
    %51 = vector.broadcast %50 : vector<1x256xf32> to vector<128x256xf32>
    %52 = arith.addf %49, %51 : vector<128x256xf32>
    %53 = vector.shape_cast %52 : vector<128x256xf32> to vector<8x16x256xf32>
    %cst_21 = arith.constant dense<0xFF800000> : vector<8x256xf32>
    %54 = vector.multi_reduction <maximumf>, %53, %cst_21 [1] : vector<8x16x256xf32> to vector<8x256xf32>
    %55 = arith.truncf %52 : vector<128x256xf32> to vector<128x256xbf16>
    %c0_22 = arith.constant 0 : index
    %c0_23 = arith.constant 0 : index
    %56 = vector.load %arg10[%c0_22, %c0_23] : memref<256x512xbf16, #tpu.memory_space<vmem>>, vector<256x512xbf16>
    %cst_24 = arith.constant dense<0.000000e+00> : vector<128x512xf32>
    %57 = tpu.matmul %55, %56, %cst_24 {dimension_numbers = #tpu.dot_dimension_numbers<[1], [0], [0], [1], [0, 0, 1, 1], [], []>} : vector<128x256xbf16>, vector<256x512xbf16>, vector<128x512xf32> -> vector<128x512xf32>
    %58 = arith.truncf %54 : vector<8x256xf32> to vector<8x256xbf16>
    %c0_25 = arith.constant 0 : index
    %c0_26 = arith.constant 0 : index
    %59 = vector.load %arg9[%c0_25, %c0_26] : memref<256x512xbf16, #tpu.memory_space<vmem>>, vector<256x512xbf16>
    %cst_27 = arith.constant dense<0.000000e+00> : vector<8x512xf32>
    %60 = tpu.matmul %58, %59, %cst_27 {dimension_numbers = #tpu.dot_dimension_numbers<[1], [0], [0], [1], [0, 0, 1, 1], [], []>} : vector<8x256xbf16>, vector<256x512xbf16>, vector<8x512xf32> -> vector<8x512xf32>
    %61 = vector.shape_cast %57 : vector<128x512xf32> to vector<8x16x512xf32>
    %62 = vector.shape_cast %60 : vector<8x512xf32> to vector<8x1x512xf32>
    %63 = vector.broadcast %62 : vector<8x1x512xf32> to vector<8x16x512xf32>
    %64 = arith.addf %61, %63 : vector<8x16x512xf32>
    %c0_28 = arith.constant 0 : index
    %c0_29 = arith.constant 0 : index
    %65 = vector.load %arg11[%c0_28, %c0_29] : memref<1x512xf32, #tpu.memory_space<vmem>>, vector<1x512xf32>
    %66 = vector.shape_cast %65 : vector<1x512xf32> to vector<1x1x512xf32>
    %67 = vector.broadcast %66 : vector<1x1x512xf32> to vector<8x16x512xf32>
    %68 = arith.addf %64, %67 : vector<8x16x512xf32>
    %69 = vector.shape_cast %68 : vector<8x16x512xf32> to vector<128x512xf32>
    %c0_30 = arith.constant 0 : index
    %c0_31 = arith.constant 0 : index
    %70 = vector.load %arg12[%c0_30, %c0_31] : memref<1x512xf32, #tpu.memory_space<vmem>>, vector<1x512xf32>
    %c0_32 = arith.constant 0 : index
    %c0_33 = arith.constant 0 : index
    %71 = vector.load %arg13[%c0_32, %c0_33] : memref<1x512xf32, #tpu.memory_space<vmem>>, vector<1x512xf32>
    %cst_34 = arith.constant dense<0.000000e+00> : vector<128xf32>
    %72 = vector.multi_reduction <add>, %69, %cst_34 [1] : vector<128x512xf32> to vector<128xf32>
    %73 = vector.shape_cast %72 : vector<128xf32> to vector<128x1xf32>
    %cst_35 = arith.constant 5.120000e+02 : f32
    %74 = vector.broadcast %cst_35 : f32 to vector<128x1xf32>
    %75 = arith.divf %73, %74 : vector<128x1xf32>
    %76 = arith.mulf %69, %69 : vector<128x512xf32>
    %cst_36 = arith.constant dense<0.000000e+00> : vector<128xf32>
    %77 = vector.multi_reduction <add>, %76, %cst_36 [1] : vector<128x512xf32> to vector<128xf32>
    %78 = vector.shape_cast %77 : vector<128xf32> to vector<128x1xf32>
    %cst_37 = arith.constant 5.120000e+02 : f32
    %79 = vector.broadcast %cst_37 : f32 to vector<128x1xf32>
    %80 = arith.divf %78, %79 : vector<128x1xf32>
    %81 = arith.mulf %75, %75 : vector<128x1xf32>
    %82 = arith.subf %80, %81 : vector<128x1xf32>
    %83 = vector.broadcast %75 : vector<128x1xf32> to vector<128x512xf32>
    %84 = arith.subf %69, %83 : vector<128x512xf32>
    %cst_38 = arith.constant 9.99999974E-6 : f32
    %85 = vector.broadcast %cst_38 : f32 to vector<128x1xf32>
    %86 = arith.addf %82, %85 : vector<128x1xf32>
    %87 = math.rsqrt %86 : vector<128x1xf32>
    %88 = vector.broadcast %87 : vector<128x1xf32> to vector<128x512xf32>
    %89 = arith.mulf %84, %88 : vector<128x512xf32>
    %90 = vector.broadcast %70 : vector<1x512xf32> to vector<128x512xf32>
    %91 = arith.mulf %89, %90 : vector<128x512xf32>
    %92 = vector.broadcast %71 : vector<1x512xf32> to vector<128x512xf32>
    %93 = arith.addf %91, %92 : vector<128x512xf32>
    %cst_39 = arith.constant 0.000000e+00 : f32
    %94 = vector.broadcast %cst_39 : f32 to vector<128x512xf32>
    %95 = arith.maximumf %93, %94 : vector<128x512xf32>
    %96 = arith.truncf %95 : vector<128x512xf32> to vector<128x512xbf16>
    %c0_40 = arith.constant 0 : index
    %c0_41 = arith.constant 0 : index
    %97 = vector.load %arg14[%c0_40, %c0_41] : memref<512x512xbf16, #tpu.memory_space<vmem>>, vector<512x512xbf16>
    %cst_42 = arith.constant dense<0.000000e+00> : vector<128x512xf32>
    %98 = tpu.matmul %96, %97, %cst_42 {dimension_numbers = #tpu.dot_dimension_numbers<[1], [0], [0], [1], [0, 0, 1, 1], [], []>} : vector<128x512xbf16>, vector<512x512xbf16>, vector<128x512xf32> -> vector<128x512xf32>
    %c0_43 = arith.constant 0 : index
    %c0_44 = arith.constant 0 : index
    %99 = vector.load %arg15[%c0_43, %c0_44] : memref<1x512xf32, #tpu.memory_space<vmem>>, vector<1x512xf32>
    %100 = vector.broadcast %99 : vector<1x512xf32> to vector<128x512xf32>
    %101 = arith.addf %98, %100 : vector<128x512xf32>
    %102 = vector.shape_cast %101 : vector<128x512xf32> to vector<8x16x512xf32>
    %cst_45 = arith.constant dense<0xFF800000> : vector<8x512xf32>
    %103 = vector.multi_reduction <maximumf>, %102, %cst_45 [1] : vector<8x16x512xf32> to vector<8x512xf32>
    %c0_46 = arith.constant 0 : index
    %c0_47 = arith.constant 0 : index
    %104 = vector.load %arg2[%c0_46, %c0_47] : memref<8x3xf32, #tpu.memory_space<vmem>>, vector<8x3xf32>
    %105 = vector.extract_strided_slice %104 {offsets = [0, 0], sizes = [8, 1], strides = [1, 1]} : vector<8x3xf32> to vector<8x1xf32>
    %c0_48 = arith.constant 0 : index
    %c0_49 = arith.constant 0 : index
    %106 = vector.load %arg16[%c0_48, %c0_49] : memref<3x128xf32, #tpu.memory_space<vmem>>, vector<1x128xf32>
    %107 = vector.broadcast %105 : vector<8x1xf32> to vector<8x128xf32>
    %108 = vector.broadcast %106 : vector<1x128xf32> to vector<8x128xf32>
    %109 = arith.mulf %107, %108 : vector<8x128xf32>
    %110 = vector.extract_strided_slice %104 {offsets = [0, 1], sizes = [8, 1], strides = [1, 1]} : vector<8x3xf32> to vector<8x1xf32>
    %c1_50 = arith.constant 1 : index
    %c0_51 = arith.constant 0 : index
    %111 = vector.load %arg16[%c1_50, %c0_51] : memref<3x128xf32, #tpu.memory_space<vmem>>, vector<1x128xf32>
    %112 = vector.broadcast %110 : vector<8x1xf32> to vector<8x128xf32>
    %113 = vector.broadcast %111 : vector<1x128xf32> to vector<8x128xf32>
    %114 = arith.mulf %112, %113 : vector<8x128xf32>
    %115 = arith.addf %109, %114 : vector<8x128xf32>
    %116 = vector.extract_strided_slice %104 {offsets = [0, 2], sizes = [8, 1], strides = [1, 1]} : vector<8x3xf32> to vector<8x1xf32>
    %c2_52 = arith.constant 2 : index
    %c0_53 = arith.constant 0 : index
    %117 = vector.load %arg16[%c2_52, %c0_53] : memref<3x128xf32, #tpu.memory_space<vmem>>, vector<1x128xf32>
    %118 = vector.broadcast %116 : vector<8x1xf32> to vector<8x128xf32>
    %119 = vector.broadcast %117 : vector<1x128xf32> to vector<8x128xf32>
    %120 = arith.mulf %118, %119 : vector<8x128xf32>
    %121 = arith.addf %115, %120 : vector<8x128xf32>
    %c0_54 = arith.constant 0 : index
    %c0_55 = arith.constant 0 : index
    %122 = vector.load %arg17[%c0_54, %c0_55] : memref<1x128xf32, #tpu.memory_space<vmem>>, vector<1x128xf32>
    %123 = vector.broadcast %122 : vector<1x128xf32> to vector<8x128xf32>
    %124 = arith.addf %121, %123 : vector<8x128xf32>
    %cst_56 = arith.constant 5.000000e-01 : f32
    %125 = vector.broadcast %cst_56 : f32 to vector<8x128xf32>
    %126 = arith.mulf %125, %124 : vector<8x128xf32>
    %cst_57 = arith.constant 0.707106769 : f32
    %127 = vector.broadcast %cst_57 : f32 to vector<8x128xf32>
    %128 = arith.mulf %124, %127 : vector<8x128xf32>
    %cst_58 = arith.constant 0.000000e+00 : f32
    %129 = vector.broadcast %cst_58 : f32 to vector<8x128xf32>
    %130 = arith.cmpf oge, %128, %129 : vector<8x128xf32>
    %cst_59 = arith.constant 1.000000e+00 : f32
    %cst_60 = arith.constant -1.000000e+00 : f32
    %131 = vector.broadcast %cst_59 : f32 to vector<8x128xf32>
    %132 = vector.broadcast %cst_60 : f32 to vector<8x128xf32>
    %133 = arith.select %130, %131, %132 : vector<8x128xi1>, vector<8x128xf32>
    %134 = math.absf %128 : vector<8x128xf32>
    %cst_61 = arith.constant 0.327591091 : f32
    %135 = vector.broadcast %cst_61 : f32 to vector<8x128xf32>
    %136 = arith.mulf %135, %134 : vector<8x128xf32>
    %cst_62 = arith.constant 1.000000e+00 : f32
    %137 = vector.broadcast %cst_62 : f32 to vector<8x128xf32>
    %138 = arith.addf %137, %136 : vector<8x128xf32>
    %139 = tpu.reciprocal %138 {approx = true} : vector<8x128xf32> -> vector<8x128xf32>
    %cst_63 = arith.constant 1.06140542 : f32
    %140 = vector.broadcast %cst_63 : f32 to vector<8x128xf32>
    %141 = arith.mulf %140, %139 : vector<8x128xf32>
    %cst_64 = arith.constant -1.45315206 : f32
    %142 = vector.broadcast %cst_64 : f32 to vector<8x128xf32>
    %143 = arith.addf %141, %142 : vector<8x128xf32>
    %144 = arith.mulf %143, %139 : vector<8x128xf32>
    %cst_65 = arith.constant 1.42141378 : f32
    %145 = vector.broadcast %cst_65 : f32 to vector<8x128xf32>
    %146 = arith.addf %144, %145 : vector<8x128xf32>
    %147 = arith.mulf %146, %139 : vector<8x128xf32>
    %cst_66 = arith.constant -0.284496725 : f32
    %148 = vector.broadcast %cst_66 : f32 to vector<8x128xf32>
    %149 = arith.addf %147, %148 : vector<8x128xf32>
    %150 = arith.mulf %149, %139 : vector<8x128xf32>
    %cst_67 = arith.constant 0.254829586 : f32
    %151 = vector.broadcast %cst_67 : f32 to vector<8x128xf32>
    %152 = arith.addf %150, %151 : vector<8x128xf32>
    %153 = arith.mulf %152, %139 : vector<8x128xf32>
    %cst_68 = arith.constant 0.000000e+00 : f32
    %154 = vector.broadcast %cst_68 : f32 to vector<8x128xf32>
    %155 = arith.subf %154, %134 : vector<8x128xf32>
    %156 = arith.mulf %155, %134 : vector<8x128xf32>
    %157 = math.exp %156 : vector<8x128xf32>
    %158 = arith.mulf %153, %157 : vector<8x128xf32>
    %cst_69 = arith.constant 1.000000e+00 : f32
    %159 = vector.broadcast %cst_69 : f32 to vector<8x128xf32>
    %160 = arith.subf %159, %158 : vector<8x128xf32>
    %161 = arith.mulf %133, %160 : vector<8x128xf32>
    %cst_70 = arith.constant 1.000000e+00 : f32
    %162 = vector.broadcast %cst_70 : f32 to vector<8x128xf32>
    %163 = arith.addf %162, %161 : vector<8x128xf32>
    %164 = arith.mulf %126, %163 : vector<8x128xf32>
    %165 = arith.truncf %164 : vector<8x128xf32> to vector<8x128xbf16>
    %c0_71 = arith.constant 0 : index
    %c0_72 = arith.constant 0 : index
    %166 = vector.load %arg18[%c0_71, %c0_72] : memref<128x512xbf16, #tpu.memory_space<vmem>>, vector<128x512xbf16>
    %cst_73 = arith.constant dense<0.000000e+00> : vector<8x512xf32>
    %167 = tpu.matmul %165, %166, %cst_73 {dimension_numbers = #tpu.dot_dimension_numbers<[1], [0], [0], [1], [0, 0, 1, 1], [], []>} : vector<8x128xbf16>, vector<128x512xbf16>, vector<8x512xf32> -> vector<8x512xf32>
    %168 = arith.addf %103, %167 : vector<8x512xf32>
    %c0_74 = arith.constant 0 : index
    %c0_75 = arith.constant 0 : index
    %169 = vector.load %arg19[%c0_74, %c0_75] : memref<1x512xf32, #tpu.memory_space<vmem>>, vector<1x512xf32>
    %170 = vector.broadcast %169 : vector<1x512xf32> to vector<8x512xf32>
    %171 = arith.addf %168, %170 : vector<8x512xf32>
    %c0_76 = arith.constant 0 : index
    %c0_77 = arith.constant 0 : index
    %172 = vector.load %arg20[%c0_76, %c0_77] : memref<8x512xf32, #tpu.memory_space<vmem>>, vector<8x512xf32>
    tpu.vector_store %arg20[%c0_76, %c0_77], %171 {strides = array<i32>} : memref<8x512xf32, #tpu.memory_space<vmem>>, vector<8x512xf32>,
    return
  }
  func.func @transform_0(%arg0: i32) -> (i32, i32) {
    %c0_i32 = arith.constant 0 : i32
    %c0_i32_0 = arith.constant 0 : i32
    return %arg0, %c0_i32 : i32, i32
  }
  func.func @transform_1(%arg0: i32) -> (i32, i32) {
    %c0_i32 = arith.constant 0 : i32
    %c0_i32_0 = arith.constant 0 : i32
    return %arg0, %c0_i32 : i32, i32
  }
  func.func @transform_2(%arg0: i32) -> (i32, i32) {
    %c0_i32 = arith.constant 0 : i32
    %c0_i32_0 = arith.constant 0 : i32
    %c0_i32_1 = arith.constant 0 : i32
    return %c0_i32, %c0_i32_0 : i32, i32
  }
  func.func @transform_3(%arg0: i32) -> (i32, i32) {
    %c0_i32 = arith.constant 0 : i32
    %c0_i32_0 = arith.constant 0 : i32
    %c0_i32_1 = arith.constant 0 : i32
    return %c0_i32, %c0_i32_0 : i32, i32
  }
  func.func @transform_4(%arg0: i32) -> (i32, i32) {
    %c0_i32 = arith.constant 0 : i32
    %c0_i32_0 = arith.constant 0 : i32
    %c0_i32_1 = arith.constant 0 : i32
    return %c0_i32, %c0_i32_0 : i32, i32
  }
  func.func @transform_5(%arg0: i32) -> (i32, i32) {
    %c0_i32 = arith.constant 0 : i32
    %c0_i32_0 = arith.constant 0 : i32
    %c0_i32_1 = arith.constant 0 : i32
    return %c0_i32, %c0_i32_0 : i32, i32
  }
  func.func @transform_6(%arg0: i32) -> (i32, i32) {
    %c0_i32 = arith.constant 0 : i32
    %c0_i32_0 = arith.constant 0 : i32
    %c0_i32_1 = arith.constant 0 : i32
    return %c0_i32, %c0_i32_0 : i32, i32
  }
  func.func @transform_7(%arg0: i32) -> (i32, i32) {
    %c0_i32 = arith.constant 0 : i32
    %c0_i32_0 = arith.constant 0 : i32
    %c0_i32_1 = arith.constant 0 : i32
    return %c0_i32, %c0_i32_0 : i32, i32
  }
  func.func @transform_8(%arg0: i32) -> (i32, i32) {
    %c0_i32 = arith.constant 0 : i32
    %c0_i32_0 = arith.constant 0 : i32
    %c0_i32_1 = arith.constant 0 : i32
    return %c0_i32, %c0_i32_0 : i32, i32
  }
  func.func @transform_9(%arg0: i32) -> (i32, i32) {
    %c0_i32 = arith.constant 0 : i32
    %c0_i32_0 = arith.constant 0 : i32
    %c0_i32_1 = arith.constant 0 : i32
    return %c0_i32, %c0_i32_0 : i32, i32
  }
  func.func @transform_10(%arg0: i32) -> (i32, i32) {
    %c0_i32 = arith.constant 0 : i32
    %c0_i32_0 = arith.constant 0 : i32
    %c0_i32_1 = arith.constant 0 : i32
    return %c0_i32, %c0_i32_0 : i32, i32
  }
  func.func @transform_11(%arg0: i32) -> (i32, i32) {
    %c0_i32 = arith.constant 0 : i32
    %c0_i32_0 = arith.constant 0 : i32
    %c0_i32_1 = arith.constant 0 : i32
    return %c0_i32, %c0_i32_0 : i32, i32
  }
  func.func @transform_12(%arg0: i32) -> (i32, i32) {
    %c0_i32 = arith.constant 0 : i32
    %c0_i32_0 = arith.constant 0 : i32
    %c0_i32_1 = arith.constant 0 : i32
    return %c0_i32, %c0_i32_0 : i32, i32
  }
  func.func @transform_13(%arg0: i32) -> (i32, i32) {
    %c0_i32 = arith.constant 0 : i32
    %c0_i32_0 = arith.constant 0 : i32
    %c0_i32_1 = arith.constant 0 : i32
    return %c0_i32, %c0_i32_0 : i32, i32
  }
  func.func @transform_14(%arg0: i32) -> (i32, i32) {
    %c0_i32 = arith.constant 0 : i32
    %c0_i32_0 = arith.constant 0 : i32
    %c0_i32_1 = arith.constant 0 : i32
    return %c0_i32, %c0_i32_0 : i32, i32
  }
  func.func @transform_15(%arg0: i32) -> (i32, i32) {
    %c0_i32 = arith.constant 0 : i32
    %c0_i32_0 = arith.constant 0 : i32
    %c0_i32_1 = arith.constant 0 : i32
    return %c0_i32, %c0_i32_0 : i32, i32
  }
  func.func @transform_16(%arg0: i32) -> (i32, i32) {
    %c0_i32 = arith.constant 0 : i32
    %c0_i32_0 = arith.constant 0 : i32
    %c0_i32_1 = arith.constant 0 : i32
    return %c0_i32, %c0_i32_0 : i32, i32
  }
  func.func @transform_17(%arg0: i32) -> (i32, i32) {
    %c0_i32 = arith.constant 0 : i32
    %c0_i32_0 = arith.constant 0 : i32
    %c0_i32_1 = arith.constant 0 : i32
    return %c0_i32, %c0_i32_0 : i32, i32
  }
  func.func @transform_18(%arg0: i32) -> (i32, i32) {
    %c0_i32 = arith.constant 0 : i32
    %c0_i32_0 = arith.constant 0 : i32
    %c0_i32_1 = arith.constant 0 : i32
    return %c0_i32, %c0_i32_0 : i32, i32
  }
  func.func @transform_19(%arg0: i32) -> (i32, i32) {
    %c0_i32 = arith.constant 0 : i32
    %c0_i32_0 = arith.constant 0 : i32
    return %arg0, %c0_i32 : i32, i32
  }
}

</mosaic_0001>

<llo_original>
// kernel: tpu_custom_call.1
$region0: #{tpu_custom_call.1}
  #allocation0 [shape = 'u32[]', space=smem, size = 0x4, offset = 0x4, fixed_abs, tag = 'smem constant byte address 0x4 - core index']
  #allocation1 [shape = 'u32[72,128]{1,0:T(1,128)}', space=vmem, size = 0x9000, scoped, tag = 'internal scratch']
  %s0 = inlined_call_operand.vmem [shape: f32[256,3], index: 0, kind: input, shape index: {}]
  %s1 = inlined_call_operand.vmem [shape: f32[16,3], index: 1, kind: input, shape index: {}]
  %s2 = inlined_call_operand.vmem [shape: f32[3,128], index: 2, kind: input, shape index: {}]
  %s3 = inlined_call_operand.vmem [shape: f32[1,128], index: 3, kind: input, shape index: {}]
  %s4 = inlined_call_operand.vmem [shape: f32[1,128], index: 4, kind: input, shape index: {}]
  %s5 = inlined_call_operand.vmem [shape: f32[1,128], index: 5, kind: input, shape index: {}]
  %s6 = inlined_call_operand.hbm [shape: bf16[128,256], index: 6, kind: input, shape index: {}]
  %s7 = inlined_call_operand.vmem [shape: f32[1,256], index: 7, kind: input, shape index: {}]
  %s8 = inlined_call_operand.hbm [shape: bf16[256,512], index: 8, kind: input, shape index: {}]
  %s9 = inlined_call_operand.hbm [shape: bf16[256,512], index: 9, kind: input, shape index: {}]
  %s10 = inlined_call_operand.vmem [shape: f32[1,512], index: 10, kind: input, shape index: {}]
  %s11 = inlined_call_operand.vmem [shape: f32[1,512], index: 11, kind: input, shape index: {}]
  %s12 = inlined_call_operand.vmem [shape: f32[1,512], index: 12, kind: input, shape index: {}]
  %s13 = inlined_call_operand.hbm [shape: bf16[512,512], index: 13, kind: input, shape index: {}]
  %s14 = inlined_call_operand.vmem [shape: f32[1,512], index: 14, kind: input, shape index: {}]
  %s15 = inlined_call_operand.vmem [shape: f32[3,128], index: 15, kind: input, shape index: {}]
  %s16 = inlined_call_operand.vmem [shape: f32[1,128], index: 16, kind: input, shape index: {}]
  %s17 = inlined_call_operand.vmem [shape: bf16[128,512], index: 17, kind: input, shape index: {}]
  %s18 = inlined_call_operand.vmem [shape: f32[1,512], index: 18, kind: input, shape index: {}]
  %s19 = inlined_call_operand.hbm [shape: f32[16,512], index: 19, kind: output, shape index: {}]
  %s20 = sld [smem:[#allocation0]]
  $region125: #{tpu_custom_call.1} parent=0
    _
  %s22 = ssub.s32 1, %s20
  %s23 = scalar_select 0, %s22, %s20
  $region1: #{tpu_custom_call.1} parent=0
    #allocation2 [shape = 'u8[65536]{0}', space=vmem, size = 0x10000, scoped, tag = 'input window, operand 6, single buffered']
    #allocation3 [shape = 's32[2]{0}', space=sflag, size = 0x8, scoped, tag = 'scoped memory for tpu_custom_call.1']
    #allocation4 [shape = 's32[2]{0}', space=sflag, size = 0x8, scoped, tag = 'scoped memory for tpu_custom_call.1']
    #allocation5 [shape = 'u8[262144]{0}', space=vmem, size = 0x40000, scoped, tag = 'input window, operand 8, single buffered']
    #allocation6 [shape = 's32[1]{0}', space=sflag, size = 0x4, scoped, tag = 'scoped memory for tpu_custom_call.1']
    #allocation7 [shape = 'u8[262144]{0}', space=vmem, size = 0x40000, scoped, tag = 'input window, operand 9, single buffered']
    #allocation8 [shape = 'u8[524288]{0}', space=vmem, size = 0x80000, scoped, tag = 'input window, operand 13, single buffered']
    #allocation9 [shape = 's32[1]{0}', space=sflag, size = 0x4, scoped, tag = 'scoped memory for tpu_custom_call.1']
    #allocation10 [shape = 'u8[32768]{0}', space=vmem, size = 0x8000, scoped, tag = 'output window, operand 0']
    %24 = vsyncpa [#allocation3], 0
    %25 = vsyncpa [#allocation6], 0
    %26 = vsyncpa [#allocation9], 0
    %27 = vsyncpa [#allocation4], 0
    %s28 = scalar_lea.sflag [#allocation4], 1
    %29 = vsyncpa %s28, 0
    loop: start=0, step=1, limit=4
    $region2: #{tpu_custom_call.1} parent=1 // loop_pre_header
      _
    $region3: #{tpu_custom_call.1} parent=1 // loop_header
      %s31 = sphi 0, %s35
      %p32 = scmp.ge.s32.totalorder %s31, 4
      %s41 = sphi 0, %s43
      %s44 = sphi 0, %s41
      %s45 = sphi 0, %s44
      %s61 = sphi 0, %s45
      %s67 = sphi 0, %s69
      %s70 = sphi 0, %s67
      %s71 = sphi 0, %s70
      %s87 = sphi 0, %s71
      %s91 = sphi 0, %s91
      %s93 = sphi 0, %s91
      %s94 = sphi 0, %s93
      %s108 = sphi 0, %s94
      %s112 = sphi 0, %s112
      %s114 = sphi 0, %s112
      %s115 = sphi 0, %s114
      %s129 = sphi 0, %s115
      %s133 = sphi 0, %s133
      %s135 = sphi 0, %s133
      %s136 = sphi 0, %s135
      %s150 = sphi 0, %s136
      %s154 = sphi 0, %s154
      %s156 = sphi 0, %s154
      %s157 = sphi 0, %s156
      %s171 = sphi 0, %s157
      %s175 = sphi 0, %s175
      %s177 = sphi 0, %s175
      %s178 = sphi 0, %s177
      %s192 = sphi 0, %s178
      %s196 = sphi 0, %s196
      %s198 = sphi 0, %s196
      %s199 = sphi 0, %s198
      %s213 = sphi 0, %s199
      %s217 = sphi 0, %s217
      %s219 = sphi 0, %s217
      %s220 = sphi 0, %s219
      %s234 = sphi 0, %s220
      %s238 = sphi 0, %s238
      %s240 = sphi 0, %s238
      %s241 = sphi 0, %s240
      %s255 = sphi 0, %s241
      %s259 = sphi 0, %s259
      %s261 = sphi 0, %s259
      %s262 = sphi 0, %s261
      %s276 = sphi 0, %s262
      %s280 = sphi 0, %s280
      %s282 = sphi 0, %s280
      %s283 = sphi 0, %s282
      %s297 = sphi 0, %s283
      %s301 = sphi 0, %s301
      %s303 = sphi 0, %s301
      %s304 = sphi 0, %s303
      %s318 = sphi 0, %s304
      %s322 = sphi 0, %s322
      %s324 = sphi 0, %s322
      %s325 = sphi 0, %s324
      %s339 = sphi 0, %s325
      %s343 = sphi 0, %s343
      %s345 = sphi 0, %s343
      %s346 = sphi 0, %s345
      %s360 = sphi 0, %s346
      %s364 = sphi 0, %s364
      %s366 = sphi 0, %s364
      %s367 = sphi 0, %s366
      %s381 = sphi 0, %s367
      %s385 = sphi 0, %s385
      %s387 = sphi 0, %s385
      %s388 = sphi 0, %s387
      %s402 = sphi 0, %s388
      %s406 = sphi 0, %s406
      %s408 = sphi 0, %s406
      %s409 = sphi 0, %s408
      %s423 = sphi 0, %s409
      %s427 = sphi 0, %s427
      %s429 = sphi 0, %s427
      %s430 = sphi 0, %s429
      %s444 = sphi 0, %s430
      %s450 = sphi 0, %s452
      %s453 = sphi 0, %s450
      %s454 = sphi 0, %s453
      %s470 = sphi 0, %s454
    $region4: #{tpu_custom_call.1} parent=1 // loop_header_branch
      %34 = sbr.rel (%p32) target = $region8
    $region5: #{tpu_custom_call.1} parent=1 // loop_body
      %s36 = ssub.s32 %s31, 1
      %s37 = ssub.s32 %s31, 2
      %s38 = sadd.s32 %s31, 1
      %s39 = ssub.s32 %s31, %s38
      %p40 = scmp.eq.s32.totalorder %s39, 0
      %s42 = sadd.s32 %s41, 1
      %s43 = scalar_select %p40, %s41, %s42
      %p46 = pneg %p40
      %p47 = scmp.eq.s32.totalorder %s31, 1
      %p48 = por %p46, %p47
      %p49 = scmp.ne.s32.totalorder %s41, %s44
      %p50 = scmp.eq.s32.totalorder %s31, 0
      %p51 = por %p49, %p50
      %p52 = scmp.ne.s32.totalorder %s41, %s44
      %p53 = scmp.eq.s32.totalorder %s36, 1
      %p54 = por %p52, %p53
      %p55 = scmp.ne.s32.totalorder %s44, %s45
      %p56 = scmp.eq.s32.totalorder %s36, 0
      %p57 = por %p55, %p56
      %p58 = scmp.ne.s32.totalorder %s44, %s45
      %p59 = scmp.eq.s32.totalorder %s37, 1
      %p60 = por %p58, %p59
      %p62 = scmp.ne.s32.totalorder %s45, %s61
      %p63 = scmp.eq.s32.totalorder %s37, 0
      %p64 = por %p62, %p63
      %s65 = ssub.s32 %s31, %s38
      %p66 = scmp.eq.s32.totalorder %s65, 0
      %s68 = sadd.s32 %s67, 1
      %s69 = scalar_select %p66, %s67, %s68
      %p72 = pneg %p66
      %p73 = scmp.eq.s32.totalorder %s31, 1
      %p74 = por %p72, %p73
      %p75 = scmp.ne.s32.totalorder %s67, %s70
      %p76 = scmp.eq.s32.totalorder %s31, 0
      %p77 = por %p75, %p76
      %p78 = scmp.ne.s32.totalorder %s67, %s70
      %p79 = scmp.eq.s32.totalorder %s36, 1
      %p80 = por %p78, %p79
      %p81 = scmp.ne.s32.totalorder %s70, %s71
      %p82 = scmp.eq.s32.totalorder %s36, 0
      %p83 = por %p81, %p82
      %p84 = scmp.ne.s32.totalorder %s70, %s71
      %p85 = scmp.eq.s32.totalorder %s37, 1
      %p86 = por %p84, %p85
      %p88 = scmp.ne.s32.totalorder %s71, %s87
      %p89 = scmp.eq.s32.totalorder %s37, 0
      %p90 = por %p88, %p89
      %s92 = sadd.s32 %s91, 1
      %p95 = scmp.eq.s32.totalorder %s31, 1
      %p96 = scmp.ne.s32.totalorder %s91, %s93
      %p97 = scmp.eq.s32.totalorder %s31, 0
      %p98 = por %p96, %p97
      %p99 = scmp.ne.s32.totalorder %s91, %s93
      %p100 = scmp.eq.s32.totalorder %s36, 1
      %p101 = por %p99, %p100
      %p102 = scmp.ne.s32.totalorder %s93, %s94
      %p103 = scmp.eq.s32.totalorder %s36, 0
      %p104 = por %p102, %p103
      %p105 = scmp.ne.s32.totalorder %s93, %s94
      %p106 = scmp.eq.s32.totalorder %s37, 1
      %p107 = por %p105, %p106
      %p109 = scmp.ne.s32.totalorder %s94, %s108
      %p110 = scmp.eq.s32.totalorder %s37, 0
      %p111 = por %p109, %p110
      %s113 = sadd.s32 %s112, 1
      %p116 = scmp.eq.s32.totalorder %s31, 1
      %p117 = scmp.ne.s32.totalorder %s112, %s114
      %p118 = scmp.eq.s32.totalorder %s31, 0
      %p119 = por %p117, %p118
      %p120 = scmp.ne.s32.totalorder %s112, %s114
      %p121 = scmp.eq.s32.totalorder %s36, 1
      %p122 = por %p120, %p121
      %p123 = scmp.ne.s32.totalorder %s114, %s115
      %p124 = scmp.eq.s32.totalorder %s36, 0
      %p125 = por %p123, %p124
      %p126 = scmp.ne.s32.totalorder %s114, %s115
      %p127 = scmp.eq.s32.totalorder %s37, 1
      %p128 = por %p126, %p127
      %p130 = scmp.ne.s32.totalorder %s115, %s129
      %p131 = scmp.eq.s32.totalorder %s37, 0
      %p132 = por %p130, %p131
      %s134 = sadd.s32 %s133, 1
      %p137 = scmp.eq.s32.totalorder %s31, 1
      %p138 = scmp.ne.s32.totalorder %s133, %s135
      %p139 = scmp.eq.s32.totalorder %s31, 0
      %p140 = por %p138, %p139
      %p141 = scmp.ne.s32.totalorder %s133, %s135
      %p142 = scmp.eq.s32.totalorder %s36, 1
      %p143 = por %p141, %p142
      %p144 = scmp.ne.s32.totalorder %s135, %s136
      %p145 = scmp.eq.s32.totalorder %s36, 0
      %p146 = por %p144, %p145
      %p147 = scmp.ne.s32.totalorder %s135, %s136
      %p148 = scmp.eq.s32.totalorder %s37, 1
      %p149 = por %p147, %p148
      %p151 = scmp.ne.s32.totalorder %s136, %s150
      %p152 = scmp.eq.s32.totalorder %s37, 0
      %p153 = por %p151, %p152
      %s155 = sadd.s32 %s154, 1
      %p158 = scmp.eq.s32.totalorder %s31, 1
      %p159 = scmp.ne.s32.totalorder %s154, %s156
      %p160 = scmp.eq.s32.totalorder %s31, 0
      %p161 = por %p159, %p160
      %p162 = scmp.ne.s32.totalorder %s154, %s156
      %p163 = scmp.eq.s32.totalorder %s36, 1
      %p164 = por %p162, %p163
      %p165 = scmp.ne.s32.totalorder %s156, %s157
      %p166 = scmp.eq.s32.totalorder %s36, 0
      %p167 = por %p165, %p166
      %p168 = scmp.ne.s32.totalorder %s156, %s157
      %p169 = scmp.eq.s32.totalorder %s37, 1
      %p170 = por %p168, %p169
      %p172 = scmp.ne.s32.totalorder %s157, %s171
      %p173 = scmp.eq.s32.totalorder %s37, 0
      %p174 = por %p172, %p173
      %s176 = sadd.s32 %s175, 1
      %p179 = scmp.eq.s32.totalorder %s31, 1
      %p180 = scmp.ne.s32.totalorder %s175, %s177
      %p181 = scmp.eq.s32.totalorder %s31, 0
      %p182 = por %p180, %p181
      %p183 = scmp.ne.s32.totalorder %s175, %s177
      %p184 = scmp.eq.s32.totalorder %s36, 1
      %p185 = por %p183, %p184
      %p186 = scmp.ne.s32.totalorder %s177, %s178
      %p187 = scmp.eq.s32.totalorder %s36, 0
      %p188 = por %p186, %p187
      %p189 = scmp.ne.s32.totalorder %s177, %s178
      %p190 = scmp.eq.s32.totalorder %s37, 1
      %p191 = por %p189, %p190
      %p193 = scmp.ne.s32.totalorder %s178, %s192
      %p194 = scmp.eq.s32.totalorder %s37, 0
      %p195 = por %p193, %p194
      %s197 = sadd.s32 %s196, 1
      %p200 = scmp.eq.s32.totalorder %s31, 1
      %p201 = scmp.ne.s32.totalorder %s196, %s198
      %p202 = scmp.eq.s32.totalorder %s31, 0
      %p203 = por %p201, %p202
      %p204 = scmp.ne.s32.totalorder %s196, %s198
      %p205 = scmp.eq.s32.totalorder %s36, 1
      %p206 = por %p204, %p205
      %p207 = scmp.ne.s32.totalorder %s198, %s199
      %p208 = scmp.eq.s32.totalorder %s36, 0
      %p209 = por %p207, %p208
      %p210 = scmp.ne.s32.totalorder %s198, %s199
      %p211 = scmp.eq.s32.totalorder %s37, 1
      %p212 = por %p210, %p211
      %p214 = scmp.ne.s32.totalorder %s199, %s213
      %p215 = scmp.eq.s32.totalorder %s37, 0
      %p216 = por %p214, %p215
      %s218 = sadd.s32 %s217, 1
      %p221 = scmp.eq.s32.totalorder %s31, 1
      %p222 = scmp.ne.s32.totalorder %s217, %s219
      %p223 = scmp.eq.s32.totalorder %s31, 0
      %p224 = por %p222, %p223
      %p225 = scmp.ne.s32.totalorder %s217, %s219
      %p226 = scmp.eq.s32.totalorder %s36, 1
      %p227 = por %p225, %p226
      %p228 = scmp.ne.s32.totalorder %s219, %s220
      %p229 = scmp.eq.s32.totalorder %s36, 0
      %p230 = por %p228, %p229
      %p231 = scmp.ne.s32.totalorder %s219, %s220
      %p232 = scmp.eq.s32.totalorder %s37, 1
      %p233 = por %p231, %p232
      %p235 = scmp.ne.s32.totalorder %s220, %s234
      %p236 = scmp.eq.s32.totalorder %s37, 0
      %p237 = por %p235, %p236
      %s239 = sadd.s32 %s238, 1
      %p242 = scmp.eq.s32.totalorder %s31, 1
      %p243 = scmp.ne.s32.totalorder %s238, %s240
      %p244 = scmp.eq.s32.totalorder %s31, 0
      %p245 = por %p243, %p244
      %p246 = scmp.ne.s32.totalorder %s238, %s240
      %p247 = scmp.eq.s32.totalorder %s36, 1
      %p248 = por %p246, %p247
      %p249 = scmp.ne.s32.totalorder %s240, %s241
      %p250 = scmp.eq.s32.totalorder %s36, 0
      %p251 = por %p249, %p250
      %p252 = scmp.ne.s32.totalorder %s240, %s241
      %p253 = scmp.eq.s32.totalorder %s37, 1
      %p254 = por %p252, %p253
      %p256 = scmp.ne.s32.totalorder %s241, %s255
      %p257 = scmp.eq.s32.totalorder %s37, 0
      %p258 = por %p256, %p257
      %s260 = sadd.s32 %s259, 1
      %p263 = scmp.eq.s32.totalorder %s31, 1
      %p264 = scmp.ne.s32.totalorder %s259, %s261
      %p265 = scmp.eq.s32.totalorder %s31, 0
      %p266 = por %p264, %p265
      %p267 = scmp.ne.s32.totalorder %s259, %s261
      %p268 = scmp.eq.s32.totalorder %s36, 1
      %p269 = por %p267, %p268
      %p270 = scmp.ne.s32.totalorder %s261, %s262
      %p271 = scmp.eq.s32.totalorder %s36, 0
      %p272 = por %p270, %p271
      %p273 = scmp.ne.s32.totalorder %s261, %s262
      %p274 = scmp.eq.s32.totalorder %s37, 1
      %p275 = por %p273, %p274
      %p277 = scmp.ne.s32.totalorder %s262, %s276
      %p278 = scmp.eq.s32.totalorder %s37, 0
      %p279 = por %p277, %p278
      %s281 = sadd.s32 %s280, 1
      %p284 = scmp.eq.s32.totalorder %s31, 1
      %p285 = scmp.ne.s32.totalorder %s280, %s282
      %p286 = scmp.eq.s32.totalorder %s31, 0
      %p287 = por %p285, %p286
      %p288 = scmp.ne.s32.totalorder %s280, %s282
      %p289 = scmp.eq.s32.totalorder %s36, 1
      %p290 = por %p288, %p289
      %p291 = scmp.ne.s32.totalorder %s282, %s283
      %p292 = scmp.eq.s32.totalorder %s36, 0
      %p293 = por %p291, %p292
      %p294 = scmp.ne.s32.totalorder %s282, %s283
      %p295 = scmp.eq.s32.totalorder %s37, 1
      %p296 = por %p294, %p295
      %p298 = scmp.ne.s32.totalorder %s283, %s297
      %p299 = scmp.eq.s32.totalorder %s37, 0
      %p300 = por %p298, %p299
      %s302 = sadd.s32 %s301, 1
      %p305 = scmp.eq.s32.totalorder %s31, 1
      %p306 = scmp.ne.s32.totalorder %s301, %s303
      %p307 = scmp.eq.s32.totalorder %s31, 0
      %p308 = por %p306, %p307
      %p309 = scmp.ne.s32.totalorder %s301, %s303
      %p310 = scmp.eq.s32.totalorder %s36, 1
      %p311 = por %p309, %p310
      %p312 = scmp.ne.s32.totalorder %s303, %s304
      %p313 = scmp.eq.s32.totalorder %s36, 0
      %p314 = por %p312, %p313
      %p315 = scmp.ne.s32.totalorder %s303, %s304
      %p316 = scmp.eq.s32.totalorder %s37, 1
      %p317 = por %p315, %p316
      %p319 = scmp.ne.s32.totalorder %s304, %s318
      %p320 = scmp.eq.s32.totalorder %s37, 0
      %p321 = por %p319, %p320
      %s323 = sadd.s32 %s322, 1
      %p326 = scmp.eq.s32.totalorder %s31, 1
      %p327 = scmp.ne.s32.totalorder %s322, %s324
      %p328 = scmp.eq.s32.totalorder %s31, 0
      %p329 = por %p327, %p328
      %p330 = scmp.ne.s32.totalorder %s322, %s324
      %p331 = scmp.eq.s32.totalorder %s36, 1
      %p332 = por %p330, %p331
      %p333 = scmp.ne.s32.totalorder %s324, %s325
      %p334 = scmp.eq.s32.totalorder %s36, 0
      %p335 = por %p333, %p334
      %p336 = scmp.ne.s32.totalorder %s324, %s325
      %p337 = scmp.eq.s32.totalorder %s37, 1
      %p338 = por %p336, %p337
      %p340 = scmp.ne.s32.totalorder %s325, %s339
      %p341 = scmp.eq.s32.totalorder %s37, 0
      %p342 = por %p340, %p341
      %s344 = sadd.s32 %s343, 1
      %p347 = scmp.eq.s32.totalorder %s31, 1
      %p348 = scmp.ne.s32.totalorder %s343, %s345
      %p349 = scmp.eq.s32.totalorder %s31, 0
      %p350 = por %p348, %p349
      %p351 = scmp.ne.s32.totalorder %s343, %s345
      %p352 = scmp.eq.s32.totalorder %s36, 1
      %p353 = por %p351, %p352
      %p354 = scmp.ne.s32.totalorder %s345, %s346
      %p355 = scmp.eq.s32.totalorder %s36, 0
      %p356 = por %p354, %p355
      %p357 = scmp.ne.s32.totalorder %s345, %s346
      %p358 = scmp.eq.s32.totalorder %s37, 1
      %p359 = por %p357, %p358
      %p361 = scmp.ne.s32.totalorder %s346, %s360
      %p362 = scmp.eq.s32.totalorder %s37, 0
      %p363 = por %p361, %p362
      %s365 = sadd.s32 %s364, 1
      %p368 = scmp.eq.s32.totalorder %s31, 1
      %p369 = scmp.ne.s32.totalorder %s364, %s366
      %p370 = scmp.eq.s32.totalorder %s31, 0
      %p371 = por %p369, %p370
      %p372 = scmp.ne.s32.totalorder %s364, %s366
      %p373 = scmp.eq.s32.totalorder %s36, 1
      %p374 = por %p372, %p373
      %p375 = scmp.ne.s32.totalorder %s366, %s367
      %p376 = scmp.eq.s32.totalorder %s36, 0
      %p377 = por %p375, %p376
      %p378 = scmp.ne.s32.totalorder %s366, %s367
      %p379 = scmp.eq.s32.totalorder %s37, 1
      %p380 = por %p378, %p379
      %p382 = scmp.ne.s32.totalorder %s367, %s381
      %p383 = scmp.eq.s32.totalorder %s37, 0
      %p384 = por %p382, %p383
      %s386 = sadd.s32 %s385, 1
      %p389 = scmp.eq.s32.totalorder %s31, 1
      %p390 = scmp.ne.s32.totalorder %s385, %s387
      %p391 = scmp.eq.s32.totalorder %s31, 0
      %p392 = por %p390, %p391
      %p393 = scmp.ne.s32.totalorder %s385, %s387
      %p394 = scmp.eq.s32.totalorder %s36, 1
      %p395 = por %p393, %p394
      %p396 = scmp.ne.s32.totalorder %s387, %s388
      %p397 = scmp.eq.s32.totalorder %s36, 0
      %p398 = por %p396, %p397
      %p399 = scmp.ne.s32.totalorder %s387, %s388
      %p400 = scmp.eq.s32.totalorder %s37, 1
      %p401 = por %p399, %p400
      %p403 = scmp.ne.s32.totalorder %s388, %s402
      %p404 = scmp.eq.s32.totalorder %s37, 0
      %p405 = por %p403, %p404
      %s407 = sadd.s32 %s406, 1
      %p410 = scmp.eq.s32.totalorder %s31, 1
      %p411 = scmp.ne.s32.totalorder %s406, %s408
      %p412 = scmp.eq.s32.totalorder %s31, 0
      %p413 = por %p411, %p412
      %p414 = scmp.ne.s32.totalorder %s406, %s408
      %p415 = scmp.eq.s32.totalorder %s36, 1
      %p416 = por %p414, %p415
      %p417 = scmp.ne.s32.totalorder %s408, %s409
      %p418 = scmp.eq.s32.totalorder %s36, 0
      %p419 = por %p417, %p418
      %p420 = scmp.ne.s32.totalorder %s408, %s409
      %p421 = scmp.eq.s32.totalorder %s37, 1
      %p422 = por %p420, %p421
      %p424 = scmp.ne.s32.totalorder %s409, %s423
      %p425 = scmp.eq.s32.totalorder %s37, 0
      %p426 = por %p424, %p425
      %s428 = sadd.s32 %s427, 1
      %p431 = scmp.eq.s32.totalorder %s31, 1
      %p432 = scmp.ne.s32.totalorder %s427, %s429
      %p433 = scmp.eq.s32.totalorder %s31, 0
      %p434 = por %p432, %p433
      %p435 = scmp.ne.s32.totalorder %s427, %s429
      %p436 = scmp.eq.s32.totalorder %s36, 1
      %p437 = por %p435, %p436
      %p438 = scmp.ne.s32.totalorder %s429, %s430
      %p439 = scmp.eq.s32.totalorder %s36, 0
      %p440 = por %p438, %p439
      %p441 = scmp.ne.s32.totalorder %s429, %s430
      %p442 = scmp.eq.s32.totalorder %s37, 1
      %p443 = por %p441, %p442
      %p445 = scmp.ne.s32.totalorder %s430, %s444
      %p446 = scmp.eq.s32.totalorder %s37, 0
      %p447 = por %p445, %p446
      %s448 = ssub.s32 %s31, %s38
      %p449 = scmp.eq.s32.totalorder %s448, 0
      %s451 = sadd.s32 %s450, 1
      %s452 = scalar_select %p449, %s450, %s451
      %p455 = pneg %p449
      %p456 = scmp.eq.s32.totalorder %s31, 1
      %p457 = por %p455, %p456
      %p458 = scmp.ne.s32.totalorder %s450, %s453
      %p459 = scmp.eq.s32.totalorder %s31, 0
      %p460 = por %p458, %p459
      %p461 = scmp.ne.s32.totalorder %s450, %s453
      %p462 = scmp.eq.s32.totalorder %s36, 1
      %p463 = por %p461, %p462
      %p464 = scmp.ne.s32.totalorder %s453, %s454
      %p465 = scmp.eq.s32.totalorder %s36, 0
      %p466 = por %p464, %p465
      %p467 = scmp.ne.s32.totalorder %s453, %s454
      %p468 = scmp.eq.s32.totalorder %s37, 1
      %p469 = por %p467, %p468
      %p471 = scmp.ne.s32.totalorder %s454, %s470
      %p472 = scmp.eq.s32.totalorder %s37, 0
      %p473 = por %p471, %p472
      %p474 = scmp.le.s32.totalorder 1, %s31
      %p475 = scmp.lt.s32.totalorder %s31, 3
      %p476 = pnand %p474, %p475
      %p477 = pneg %p476
      // Predicated region
      $region9: #{tpu_custom_call.1} parent=5 // pred_check
        _
      $region10: #{tpu_custom_call.1} parent=5 // pred_check_branch
        %479 = sbr.rel (%p476) target = $region12
      $region11: #{tpu_custom_call.1} parent=5 // pred_region
        %s480 = ssub.s32 %s31, 1
        // Predicated region
        $region13: #{tpu_custom_call.1} parent=11 // pred_check
          %p481 = pneg %p104
        $region14: #{tpu_custom_call.1} parent=11 // pred_check_branch
          %483 = sbr.rel (%p481) target = $region16
        $region15: #{tpu_custom_call.1} parent=11 // pred_region
          _
        $region16: #{tpu_custom_call.1} parent=11 // pred_fallthru
          _
        // Predicated region
        $region17: #{tpu_custom_call.1} parent=11 // pred_check
          %p484 = pneg %p125
        $region18: #{tpu_custom_call.1} parent=11 // pred_check_branch
          %486 = sbr.rel (%p484) target = $region20
        $region19: #{tpu_custom_call.1} parent=11 // pred_region
          _
        $region20: #{tpu_custom_call.1} parent=11 // pred_fallthru
          _
        // Predicated region
        $region21: #{tpu_custom_call.1} parent=11 // pred_check
          %p487 = pneg %p146
        $region22: #{tpu_custom_call.1} parent=11 // pred_check_branch
          %489 = sbr.rel (%p487) target = $region24
        $region23: #{tpu_custom_call.1} parent=11 // pred_region
          _
        $region24: #{tpu_custom_call.1} parent=11 // pred_fallthru
          _
        // Predicated region
        $region25: #{tpu_custom_call.1} parent=11 // pred_check
          %p490 = pneg %p167
        $region26: #{tpu_custom_call.1} parent=11 // pred_check_branch
          %492 = sbr.rel (%p490) target = $region28
        $region27: #{tpu_custom_call.1} parent=11 // pred_region
          _
        $region28: #{tpu_custom_call.1} parent=11 // pred_fallthru
          _
        // Predicated region
        $region29: #{tpu_custom_call.1} parent=11 // pred_check
          %p493 = pneg %p188
        $region30: #{tpu_custom_call.1} parent=11 // pred_check_branch
          %495 = sbr.rel (%p493) target = $region32
        $region31: #{tpu_custom_call.1} parent=11 // pred_region
          %497 = vsyncadd [#allocation3], 0
          %s498 = sshll.u32 %s6, 4
          %s499 = int_to_ptr.hbm [resolvable:$true] %s498
          %s500 = sshll.u32 [#allocation2], 4
          %s501 = int_to_ptr.vmem [resolvable:$true] %s500
          %506 = dma.hbm_to_vmem [thread:$0]  %s499, 2048, %s501, [#allocation3], 128, 128, 8
        $region32: #{tpu_custom_call.1} parent=11 // pred_fallthru
          _
        // Predicated region
        $region33: #{tpu_custom_call.1} parent=11 // pred_check
          %p507 = pneg %p209
        $region34: #{tpu_custom_call.1} parent=11 // pred_check_branch
          %509 = sbr.rel (%p507) target = $region36
        $region35: #{tpu_custom_call.1} parent=11 // pred_region
          _
        $region36: #{tpu_custom_call.1} parent=11 // pred_fallthru
          _
        // Predicated region
        $region37: #{tpu_custom_call.1} parent=11 // pred_check
          %p510 = pneg %p230
        $region38: #{tpu_custom_call.1} parent=11 // pred_check_branch
          %512 = sbr.rel (%p510) target = $region40
        $region39: #{tpu_custom_call.1} parent=11 // pred_region
          %514 = vsyncadd [#allocation6], 0
          %s515 = sshll.u32 %s8, 4
          %s516 = int_to_ptr.hbm [resolvable:$true] %s515
          %s517 = sshll.u32 [#allocation5], 4
          %s518 = int_to_ptr.vmem [resolvable:$true] %s517
          %523 = dma.hbm_to_vmem [thread:$0]  %s516, 8192, %s518, [#allocation6], 256, 256, 16
        $region40: #{tpu_custom_call.1} parent=11 // pred_fallthru
          _
        // Predicated region
        $region41: #{tpu_custom_call.1} parent=11 // pred_check
          %p524 = pneg %p251
        $region42: #{tpu_custom_call.1} parent=11 // pred_check_branch
          %526 = sbr.rel (%p524) target = $region44
        $region43: #{tpu_custom_call.1} parent=11 // pred_region
          %528 = vsyncadd [#allocation6], 0
          %s529 = sshll.u32 %s9, 4
          %s530 = int_to_ptr.hbm [resolvable:$true] %s529
          %s531 = sshll.u32 [#allocation7], 4
          %s532 = int_to_ptr.vmem [resolvable:$true] %s531
          %537 = dma.hbm_to_vmem [thread:$0]  %s530, 8192, %s532, [#allocation6], 256, 256, 16
        $region44: #{tpu_custom_call.1} parent=11 // pred_fallthru
          _
        // Predicated region
        $region45: #{tpu_custom_call.1} parent=11 // pred_check
          %p538 = pneg %p272
        $region46: #{tpu_custom_call.1} parent=11 // pred_check_branch
          %540 = sbr.rel (%p538) target = $region48
        $region47: #{tpu_custom_call.1} parent=11 // pred_region
          _
        $region48: #{tpu_custom_call.1} parent=11 // pred_fallthru
          _
        // Predicated region
        $region49: #{tpu_custom_call.1} parent=11 // pred_check
          %p541 = pneg %p293
        $region50: #{tpu_custom_call.1} parent=11 // pred_check_branch
          %543 = sbr.rel (%p541) target = $region52
        $region51: #{tpu_custom_call.1} parent=11 // pred_region
          _
        $region52: #{tpu_custom_call.1} parent=11 // pred_fallthru
          _
        // Predicated region
        $region53: #{tpu_custom_call.1} parent=11 // pred_check
          %p544 = pneg %p314
        $region54: #{tpu_custom_call.1} parent=11 // pred_check_branch
          %546 = sbr.rel (%p544) target = $region56
        $region55: #{tpu_custom_call.1} parent=11 // pred_region
          _
        $region56: #{tpu_custom_call.1} parent=11 // pred_fallthru
          _
        // Predicated region
        $region57: #{tpu_custom_call.1} parent=11 // pred_check
          %p547 = pneg %p335
        $region58: #{tpu_custom_call.1} parent=11 // pred_check_branch
          %549 = sbr.rel (%p547) target = $region60
        $region59: #{tpu_custom_call.1} parent=11 // pred_region
          %551 = vsyncadd [#allocation9], 0
          %s552 = sshll.u32 %s13, 4
          %s553 = int_to_ptr.hbm [resolvable:$true] %s552
          %s554 = sshll.u32 [#allocation8], 4
          %s555 = int_to_ptr.vmem [resolvable:$true] %s554
          %560 = dma.hbm_to_vmem [thread:$0]  %s553, 16384, %s555, [#allocation9], 256, 256, 16
        $region60: #{tpu_custom_call.1} parent=11 // pred_fallthru
          _
        // Predicated region
        $region61: #{tpu_custom_call.1} parent=11 // pred_check
          %p561 = pneg %p356
        $region62: #{tpu_custom_call.1} parent=11 // pred_check_branch
          %563 = sbr.rel (%p561) target = $region64
        $region63: #{tpu_custom_call.1} parent=11 // pred_region
          _
        $region64: #{tpu_custom_call.1} parent=11 // pred_fallthru
          _
        // Predicated region
        $region65: #{tpu_custom_call.1} parent=11 // pred_check
          %p564 = pneg %p377
        $region66: #{tpu_custom_call.1} parent=11 // pred_check_branch
          %566 = sbr.rel (%p564) target = $region68
        $region67: #{tpu_custom_call.1} parent=11 // pred_region
          _
        $region68: #{tpu_custom_call.1} parent=11 // pred_fallthru
          _
        // Predicated region
        $region69: #{tpu_custom_call.1} parent=11 // pred_check
          %p567 = pneg %p398
        $region70: #{tpu_custom_call.1} parent=11 // pred_check_branch
          %569 = sbr.rel (%p567) target = $region72
        $region71: #{tpu_custom_call.1} parent=11 // pred_region
          _
        $region72: #{tpu_custom_call.1} parent=11 // pred_fallthru
          _
        // Predicated region
        $region73: #{tpu_custom_call.1} parent=11 // pred_check
          %p570 = pneg %p419
        $region74: #{tpu_custom_call.1} parent=11 // pred_check_branch
          %572 = sbr.rel (%p570) target = $region76
        $region75: #{tpu_custom_call.1} parent=11 // pred_region
          _
        $region76: #{tpu_custom_call.1} parent=11 // pred_fallthru
          _
        // Predicated region
        $region77: #{tpu_custom_call.1} parent=11 // pred_check
          %p573 = pneg %p440
        $region78: #{tpu_custom_call.1} parent=11 // pred_check_branch
          %575 = sbr.rel (%p573) target = $region80
        $region79: #{tpu_custom_call.1} parent=11 // pred_region
          _
        $region80: #{tpu_custom_call.1} parent=11 // pred_fallthru
          _
      $region12: #{tpu_custom_call.1} parent=5 // pred_fallthru
        _
      %p576 = scmp.lt.s32.totalorder %s31, 2
      // Predicated region
      $region81: #{tpu_custom_call.1} parent=5 // pred_check
        %p577 = pneg %p576
      $region82: #{tpu_custom_call.1} parent=5 // pred_check_branch
        %579 = sbr.rel (%p577) target = $region84
      $region83: #{tpu_custom_call.1} parent=5 // pred_region
        // Predicated region
        $region85: #{tpu_custom_call.1} parent=83 // pred_check
          %p580 = pneg %p51
        $region86: #{tpu_custom_call.1} parent=83 // pred_check_branch
          %582 = sbr.rel (%p580) target = $region88
        $region87: #{tpu_custom_call.1} parent=83 // pred_region
          %s583 = smul.u32 16, %s31
          %p584 = scmp.lt.s32.totalorder %s583, 31
          %s585 = scalar_select %p584, %s583, 31
          %s586 = smul.addr %s585, 8
          %s587 = scalar_lea.vmem %s0, %s586
          %s588 = smul.u32 16, %s31
        $region88: #{tpu_custom_call.1} parent=83 // pred_fallthru
          _
        // Predicated region
        $region89: #{tpu_custom_call.1} parent=83 // pred_check
          %p589 = pneg %p77
        $region90: #{tpu_custom_call.1} parent=83 // pred_check_branch
          %591 = sbr.rel (%p589) target = $region92
        $region91: #{tpu_custom_call.1} parent=83 // pred_region
          %p592 = scmp.lt.s32.totalorder %s31, 1
          %s593 = scalar_select %p592, %s31, 1
          %s594 = smul.addr %s593, 8
          %s595 = scalar_lea.vmem %s1, %s594
        $region92: #{tpu_custom_call.1} parent=83 // pred_fallthru
          _
      $region84: #{tpu_custom_call.1} parent=5 // pred_fallthru
        _
      %p596 = scmp.le.s32.totalorder 1, %s31
      %p597 = scmp.lt.s32.totalorder %s31, 3
      %p598 = pnand %p596, %p597
      %p599 = pneg %p598
      // Predicated region
      $region93: #{tpu_custom_call.1} parent=5 // pred_check
        _
      $region94: #{tpu_custom_call.1} parent=5 // pred_check_branch
        %601 = sbr.rel (%p598) target = $region96
      $region95: #{tpu_custom_call.1} parent=5 // pred_region
        %s602 = ssub.s32 %s31, 1
        // Predicated region
        $region97: #{tpu_custom_call.1} parent=95 // pred_check
          %p603 = pneg %p188
        $region98: #{tpu_custom_call.1} parent=95 // pred_check_branch
          %605 = sbr.rel (%p603) target = $region100
        $region99: #{tpu_custom_call.1} parent=95 // pred_region
          %607 = dma.done [#allocation3], 2048
        $region100: #{tpu_custom_call.1} parent=95 // pred_fallthru
          _
        // Predicated region
        $region101: #{tpu_custom_call.1} parent=95 // pred_check
          %p608 = pneg %p230
        $region102: #{tpu_custom_call.1} parent=95 // pred_check_branch
          %610 = sbr.rel (%p608) target = $region104
        $region103: #{tpu_custom_call.1} parent=95 // pred_region
          %612 = dma.done [#allocation6], 8192
        $region104: #{tpu_custom_call.1} parent=95 // pred_fallthru
          _
        // Predicated region
        $region105: #{tpu_custom_call.1} parent=95 // pred_check
          %p613 = pneg %p251
        $region106: #{tpu_custom_call.1} parent=95 // pred_check_branch
          %615 = sbr.rel (%p613) target = $region108
        $region107: #{tpu_custom_call.1} parent=95 // pred_region
          %617 = dma.done [#allocation6], 8192
        $region108: #{tpu_custom_call.1} parent=95 // pred_fallthru
          _
        // Predicated region
        $region109: #{tpu_custom_call.1} parent=95 // pred_check
          %p618 = pneg %p335
        $region110: #{tpu_custom_call.1} parent=95 // pred_check_branch
          %620 = sbr.rel (%p618) target = $region112
        $region111: #{tpu_custom_call.1} parent=95 // pred_region
          %622 = dma.done [#allocation9], 16384
        $region112: #{tpu_custom_call.1} parent=95 // pred_fallthru
          _
        %s623 = smul.u32 16, %s36
        %p624 = scmp.lt.s32.totalorder %s623, 31
        %s625 = scalar_select %p624, %s623, 31
        %s626 = smul.addr %s625, 8
        %s627 = scalar_lea.vmem %s0, %s626
        %p628 = pneg %p57
        %p629 = pneg %p54
        %p630 = scmp.lt.s32.totalorder %s36, 1
        %s631 = scalar_select %p630, %s36, 1
        %s632 = smul.addr %s631, 8
        %s633 = scalar_lea.vmem %s1, %s632
        %p634 = pneg %p83
        %p635 = pneg %p80
        %p636 = pneg %p104
        %p637 = pneg %p101
        %p638 = pneg %p125
        %p639 = pneg %p122
        %p640 = pneg %p146
        %p641 = pneg %p143
        %p642 = pneg %p167
        %p643 = pneg %p164
        %p644 = pneg %p188
        %p645 = pneg %p185
        %p646 = pneg %p209
        %p647 = pneg %p206
        %p648 = pneg %p230
        %p649 = pneg %p227
        %p650 = pneg %p251
        %p651 = pneg %p248
        %p652 = pneg %p272
        %p653 = pneg %p269
        %p654 = pneg %p293
        %p655 = pneg %p290
        %p656 = pneg %p314
        %p657 = pneg %p311
        %p658 = pneg %p335
        %p659 = pneg %p332
        %p660 = pneg %p356
        %p661 = pneg %p353
        %p662 = pneg %p377
        %p663 = pneg %p374
        %p664 = pneg %p398
        %p665 = pneg %p395
        %p666 = pneg %p419
        %p667 = pneg %p416
        %p668 = pneg %p440
        %p669 = pneg %p437
        %p670 = pneg %p466
        %p671 = pneg %p463
        %s672 = sand.u32 %s453, 1
        %s673 = scalar_lea.sflag [#allocation4], %s672
        %s674 = sand.u32 %s453, 1
        %s675 = smul.addr %s674, 32
        %s676 = scalar_lea.vmem [#allocation10], %s675
        %s677 = smul.u32 16, %s36
        %p678 = scmp.lt.s32.totalorder %s677, 31
        %s679 = scalar_select %p678, %s677, 31
        %s680 = smul.addr %s679, 8
        %s681 = scalar_lea.vmem %s0, %s680
        %s682 = smul.u32 16, %s36
        %p683 = scmp.lt.s32.totalorder %s36, 1
        %s684 = scalar_select %p683, %s36, 1
        %s685 = smul.addr %s684, 8
        %s686 = scalar_lea.vmem %s1, %s685
        %v687 = vld [vmem:[%s681] sm:$0xff]
        %v688 = vld [vmem:[%s681 + $0x8] sm:$0xff]
        %v689 = vld [vmem:[%s681 + $0x10] sm:$0xff]
        %v690 = vld [vmem:[%s681 + $0x18] sm:$0xff]
        %v691 = vld [vmem:[%s681 + $0x20] sm:$0xff]
        %v692 = vld [vmem:[%s681 + $0x28] sm:$0xff]
        %v693 = vld [vmem:[%s681 + $0x30] sm:$0xff]
        %v694 = vld [vmem:[%s681 + $0x38] sm:$0xff]
        %v695 = vld [vmem:[%s681 + $0x40] sm:$0xff]
        %v696 = vld [vmem:[%s681 + $0x48] sm:$0xff]
        %v697 = vld [vmem:[%s681 + $0x50] sm:$0xff]
        %v698 = vld [vmem:[%s681 + $0x58] sm:$0xff]
        %v699 = vld [vmem:[%s681 + $0x60] sm:$0xff]
        %v700 = vld [vmem:[%s681 + $0x68] sm:$0xff]
        %v701 = vld [vmem:[%s681 + $0x70] sm:$0xff]
        %v702 = vld [vmem:[%s681 + $0x78] sm:$0xff]
        %v703 = vld [vmem:[%s2] sm:$0x1]
        %705 = vset.pattern.permute.xlu0 0
        %706 = vperm.xlu0 %705, %v687
        %v707 = vpop.permute.xlu0 %706
        %710 = vset.pattern.permute.xlu0 0
        %711 = vperm.xlu0 %710, %v688
        %v712 = vpop.permute.xlu0 %711
        %715 = vset.pattern.permute.xlu0 0
        %716 = vperm.xlu0 %715, %v689
        %v717 = vpop.permute.xlu0 %716
        %720 = vset.pattern.permute.xlu0 0
        %721 = vperm.xlu0 %720, %v690
        %v722 = vpop.permute.xlu0 %721
        %725 = vset.pattern.permute.xlu0 0
        %726 = vperm.xlu0 %725, %v691
        %v727 = vpop.permute.xlu0 %726
        %730 = vset.pattern.permute.xlu0 0
        %731 = vperm.xlu0 %730, %v692
        %v732 = vpop.permute.xlu0 %731
        %735 = vset.pattern.permute.xlu0 0
        %736 = vperm.xlu0 %735, %v693
        %v737 = vpop.permute.xlu0 %736
        %740 = vset.pattern.permute.xlu0 0
        %741 = vperm.xlu0 %740, %v694
        %v742 = vpop.permute.xlu0 %741
        %745 = vset.pattern.permute.xlu0 0
        %746 = vperm.xlu0 %745, %v695
        %v747 = vpop.permute.xlu0 %746
        %750 = vset.pattern.permute.xlu0 0
        %751 = vperm.xlu0 %750, %v696
        %v752 = vpop.permute.xlu0 %751
        %755 = vset.pattern.permute.xlu0 0
        %756 = vperm.xlu0 %755, %v697
        %v757 = vpop.permute.xlu0 %756
        %760 = vset.pattern.permute.xlu0 0
        %761 = vperm.xlu0 %760, %v698
        %v762 = vpop.permute.xlu0 %761
        %765 = vset.pattern.permute.xlu0 0
        %766 = vperm.xlu0 %765, %v699
        %v767 = vpop.permute.xlu0 %766
        %770 = vset.pattern.permute.xlu0 0
        %771 = vperm.xlu0 %770, %v700
        %v772 = vpop.permute.xlu0 %771
        %775 = vset.pattern.permute.xlu0 0
        %776 = vperm.xlu0 %775, %v701
        %v777 = vpop.permute.xlu0 %776
        %780 = vset.pattern.permute.xlu0 0
        %781 = vperm.xlu0 %780, %v702
        %v782 = vpop.permute.xlu0 %781
        %v784 = vperm.slane %v703, 0
        %v785 = vmul.f32 %v707, %v784
        %v786 = vmul.f32 %v712, %v784
        %v787 = vmul.f32 %v717, %v784
        %v788 = vmul.f32 %v722, %v784
        %v789 = vmul.f32 %v727, %v784
        %v790 = vmul.f32 %v732, %v784
        %v791 = vmul.f32 %v737, %v784
        %v792 = vmul.f32 %v742, %v784
        %v793 = vmul.f32 %v747, %v784
        %v794 = vmul.f32 %v752, %v784
        %v795 = vmul.f32 %v757, %v784
        %v796 = vmul.f32 %v762, %v784
        %v797 = vmul.f32 %v767, %v784
        %v798 = vmul.f32 %v772, %v784
        %v799 = vmul.f32 %v777, %v784
        %v800 = vmul.f32 %v782, %v784
        %v801 = vld [vmem:[%s2 + $0x1] sm:$0x1]
        %802 = vset.pattern.permute.xlu0 1
        %803 = vperm.xlu0 %802, %v687
        %v804 = vpop.permute.xlu0 %803
        %806 = vset.pattern.permute.xlu0 1
        %807 = vperm.xlu0 %806, %v688
        %v808 = vpop.permute.xlu0 %807
        %810 = vset.pattern.permute.xlu0 1
        %811 = vperm.xlu0 %810, %v689
        %v812 = vpop.permute.xlu0 %811
        %814 = vset.pattern.permute.xlu0 1
        %815 = vperm.xlu0 %814, %v690
        %v816 = vpop.permute.xlu0 %815
        %818 = vset.pattern.permute.xlu0 1
        %819 = vperm.xlu0 %818, %v691
        %v820 = vpop.permute.xlu0 %819
        %822 = vset.pattern.permute.xlu0 1
        %823 = vperm.xlu0 %822, %v692
        %v824 = vpop.permute.xlu0 %823
        %826 = vset.pattern.permute.xlu0 1
        %827 = vperm.xlu0 %826, %v693
        %v828 = vpop.permute.xlu0 %827
        %830 = vset.pattern.permute.xlu0 1
        %831 = vperm.xlu0 %830, %v694
        %v832 = vpop.permute.xlu0 %831
        %834 = vset.pattern.permute.xlu0 1
        %835 = vperm.xlu0 %834, %v695
        %v836 = vpop.permute.xlu0 %835
        %838 = vset.pattern.permute.xlu0 1
        %839 = vperm.xlu0 %838, %v696
        %v840 = vpop.permute.xlu0 %839
        %842 = vset.pattern.permute.xlu0 1
        %843 = vperm.xlu0 %842, %v697
        %v844 = vpop.permute.xlu0 %843
        %846 = vset.pattern.permute.xlu0 1
        %847 = vperm.xlu0 %846, %v698
        %v848 = vpop.permute.xlu0 %847
        %850 = vset.pattern.permute.xlu0 1
        %851 = vperm.xlu0 %850, %v699
        %v852 = vpop.permute.xlu0 %851
        %854 = vset.pattern.permute.xlu0 1
        %855 = vperm.xlu0 %854, %v700
        %v856 = vpop.permute.xlu0 %855
        %858 = vset.pattern.permute.xlu0 1
        %859 = vperm.xlu0 %858, %v701
        %v860 = vpop.permute.xlu0 %859
        %862 = vset.pattern.permute.xlu0 1
        %863 = vperm.xlu0 %862, %v702
        %v864 = vpop.permute.xlu0 %863
        %v866 = vperm.slane %v801, 0
        %v867 = vmul.f32 %v804, %v866
        %v868 = vmul.f32 %v808, %v866
        %v869 = vmul.f32 %v812, %v866
        %v870 = vmul.f32 %v816, %v866
        %v871 = vmul.f32 %v820, %v866
        %v872 = vmul.f32 %v824, %v866
        %v873 = vmul.f32 %v828, %v866
        %v874 = vmul.f32 %v832, %v866
        %v875 = vmul.f32 %v836, %v866
        %v876 = vmul.f32 %v840, %v866
        %v877 = vmul.f32 %v844, %v866
        %v878 = vmul.f32 %v848, %v866
        %v879 = vmul.f32 %v852, %v866
        %v880 = vmul.f32 %v856, %v866
        %v881 = vmul.f32 %v860, %v866
        %v882 = vmul.f32 %v864, %v866
        %v883 = vadd.f32 %v785, %v867
        %v884 = vadd.f32 %v786, %v868
        %v885 = vadd.f32 %v787, %v869
        %v886 = vadd.f32 %v788, %v870
        %v887 = vadd.f32 %v789, %v871
        %v888 = vadd.f32 %v790, %v872
        %v889 = vadd.f32 %v791, %v873
        %v890 = vadd.f32 %v792, %v874
        %v891 = vadd.f32 %v793, %v875
        %v892 = vadd.f32 %v794, %v876
        %v893 = vadd.f32 %v795, %v877
        %v894 = vadd.f32 %v796, %v878
        %v895 = vadd.f32 %v797, %v879
        %v896 = vadd.f32 %v798, %v880
        %v897 = vadd.f32 %v799, %v881
        %v898 = vadd.f32 %v800, %v882
        %v899 = vld [vmem:[%s2 + $0x2] sm:$0x1]
        %900 = vset.pattern.permute.xlu0 2
        %901 = vperm.xlu0 %900, %v687
        %v902 = vpop.permute.xlu0 %901
        %904 = vset.pattern.permute.xlu0 2
        %905 = vperm.xlu0 %904, %v688
        %v906 = vpop.permute.xlu0 %905
        %908 = vset.pattern.permute.xlu0 2
        %909 = vperm.xlu0 %908, %v689
        %v910 = vpop.permute.xlu0 %909
        %912 = vset.pattern.permute.xlu0 2
        %913 = vperm.xlu0 %912, %v690
        %v914 = vpop.permute.xlu0 %913
        %916 = vset.pattern.permute.xlu0 2
        %917 = vperm.xlu0 %916, %v691
        %v918 = vpop.permute.xlu0 %917
        %920 = vset.pattern.permute.xlu0 2
        %921 = vperm.xlu0 %920, %v692
        %v922 = vpop.permute.xlu0 %921
        %924 = vset.pattern.permute.xlu0 2
        %925 = vperm.xlu0 %924, %v693
        %v926 = vpop.permute.xlu0 %925
        %928 = vset.pattern.permute.xlu0 2
        %929 = vperm.xlu0 %928, %v694
        %v930 = vpop.permute.xlu0 %929
        %932 = vset.pattern.permute.xlu0 2
        %933 = vperm.xlu0 %932, %v695
        %v934 = vpop.permute.xlu0 %933
        %936 = vset.pattern.permute.xlu0 2
        %937 = vperm.xlu0 %936, %v696
        %v938 = vpop.permute.xlu0 %937
        %940 = vset.pattern.permute.xlu0 2
        %941 = vperm.xlu0 %940, %v697
        %v942 = vpop.permute.xlu0 %941
        %944 = vset.pattern.permute.xlu0 2
        %945 = vperm.xlu0 %944, %v698
        %v946 = vpop.permute.xlu0 %945
        %948 = vset.pattern.permute.xlu0 2
        %949 = vperm.xlu0 %948, %v699
        %v950 = vpop.permute.xlu0 %949
        %952 = vset.pattern.permute.xlu0 2
        %953 = vperm.xlu0 %952, %v700
        %v954 = vpop.permute.xlu0 %953
        %956 = vset.pattern.permute.xlu0 2
        %957 = vperm.xlu0 %956, %v701
        %v958 = vpop.permute.xlu0 %957
        %960 = vset.pattern.permute.xlu0 2
        %961 = vperm.xlu0 %960, %v702
        %v962 = vpop.permute.xlu0 %961
        %v964 = vperm.slane %v899, 0
        %v965 = vmul.f32 %v902, %v964
        %v966 = vmul.f32 %v906, %v964
        %v967 = vmul.f32 %v910, %v964
        %v968 = vmul.f32 %v914, %v964
        %v969 = vmul.f32 %v918, %v964
        %v970 = vmul.f32 %v922, %v964
        %v971 = vmul.f32 %v926, %v964
        %v972 = vmul.f32 %v930, %v964
        %v973 = vmul.f32 %v934, %v964
        %v974 = vmul.f32 %v938, %v964
        %v975 = vmul.f32 %v942, %v964
        %v976 = vmul.f32 %v946, %v964
        %v977 = vmul.f32 %v950, %v964
        %v978 = vmul.f32 %v954, %v964
        %v979 = vmul.f32 %v958, %v964
        %v980 = vmul.f32 %v962, %v964
        %v981 = vadd.f32 %v883, %v965
        %v982 = vadd.f32 %v884, %v966
        %v983 = vadd.f32 %v885, %v967
        %v984 = vadd.f32 %v886, %v968
        %v985 = vadd.f32 %v887, %v969
        %v986 = vadd.f32 %v888, %v970
        %v987 = vadd.f32 %v889, %v971
        %v988 = vadd.f32 %v890, %v972
        %v989 = vadd.f32 %v891, %v973
        %v990 = vadd.f32 %v892, %v974
        %v991 = vadd.f32 %v893, %v975
        %v992 = vadd.f32 %v894, %v976
        %v993 = vadd.f32 %v895, %v977
        %v994 = vadd.f32 %v896, %v978
        %v995 = vadd.f32 %v897, %v979
        %v996 = vadd.f32 %v898, %v980
        %v997 = vld [vmem:[%s3] sm:$0x1]
        %v999 = vperm.slane %v997, 0
        %v1001 = vadd.f32 %v981, %v999
        %v1002 = vadd.f32 %v982, %v999
        %v1003 = vadd.f32 %v983, %v999
        %v1004 = vadd.f32 %v984, %v999
        %v1005 = vadd.f32 %v985, %v999
        %v1006 = vadd.f32 %v986, %v999
        %v1007 = vadd.f32 %v987, %v999
        %v1008 = vadd.f32 %v988, %v999
        %v1009 = vadd.f32 %v989, %v999
        %v1010 = vadd.f32 %v990, %v999
        %v1011 = vadd.f32 %v991, %v999
        %v1012 = vadd.f32 %v992, %v999
        %v1013 = vadd.f32 %v993, %v999
        %v1014 = vadd.f32 %v994, %v999
        %v1015 = vadd.f32 %v995, %v999
        %v1016 = vadd.f32 %v996, %v999
        %v1017 = vld [vmem:[%s4] sm:$0x1]
        %v1018 = vld [vmem:[%s5] sm:$0x1]
        %1019 = vadd.xlane.f32.xlu0 %v1001
        %v1020 = vpop.xlane.xlu0 %1019
        %1021 = vadd.xlane.f32.xlu0 %v1002
        %v1022 = vpop.xlane.xlu0 %1021
        %1023 = vadd.xlane.f32.xlu0 %v1003
        %v1024 = vpop.xlane.xlu0 %1023
        %1025 = vadd.xlane.f32.xlu0 %v1004
        %v1026 = vpop.xlane.xlu0 %1025
        %1027 = vadd.xlane.f32.xlu0 %v1005
        %v1028 = vpop.xlane.xlu0 %1027
        %1029 = vadd.xlane.f32.xlu0 %v1006
        %v1030 = vpop.xlane.xlu0 %1029
        %1031 = vadd.xlane.f32.xlu0 %v1007
        %v1032 = vpop.xlane.xlu0 %1031
        %1033 = vadd.xlane.f32.xlu0 %v1008
        %v1034 = vpop.xlane.xlu0 %1033
        %1035 = vadd.xlane.f32.xlu0 %v1009
        %v1036 = vpop.xlane.xlu0 %1035
        %1037 = vadd.xlane.f32.xlu0 %v1010
        %v1038 = vpop.xlane.xlu0 %1037
        %1039 = vadd.xlane.f32.xlu0 %v1011
        %v1040 = vpop.xlane.xlu0 %1039
        %1041 = vadd.xlane.f32.xlu0 %v1012
        %v1042 = vpop.xlane.xlu0 %1041
        %1043 = vadd.xlane.f32.xlu0 %v1013
        %v1044 = vpop.xlane.xlu0 %1043
        %1045 = vadd.xlane.f32.xlu0 %v1014
        %v1046 = vpop.xlane.xlu0 %1045
        %1047 = vadd.xlane.f32.xlu0 %v1015
        %v1048 = vpop.xlane.xlu0 %1047
        %1049 = vadd.xlane.f32.xlu0 %v1016
        %v1050 = vpop.xlane.xlu0 %1049
        %v1051 = vrcp.pop 128.0
        %v1052 = vmul.f32 128.0, %v1051
        %v1053 = vsub.f32 1.0, %v1052
        %v1054 = vmul.f32 %v1051, %v1053
        %v1055 = vadd.f32 %v1051, %v1054
        %vm1056 = vweird.f32 %v1051
        %v1057 = vsel %vm1056, %v1051, %v1055
        %v1058 = vmul.f32 %v1020, %v1057
        %v1059 = vmul.f32 %v1022, %v1057
        %v1060 = vmul.f32 %v1024, %v1057
        %v1061 = vmul.f32 %v1026, %v1057
        %v1062 = vmul.f32 %v1028, %v1057
        %v1063 = vmul.f32 %v1030, %v1057
        %v1064 = vmul.f32 %v1032, %v1057
        %v1065 = vmul.f32 %v1034, %v1057
        %v1066 = vmul.f32 %v1036, %v1057
        %v1067 = vmul.f32 %v1038, %v1057
        %v1068 = vmul.f32 %v1040, %v1057
        %v1069 = vmul.f32 %v1042, %v1057
        %v1070 = vmul.f32 %v1044, %v1057
        %v1071 = vmul.f32 %v1046, %v1057
        %v1072 = vmul.f32 %v1048, %v1057
        %v1073 = vmul.f32 %v1050, %v1057
        %v1074 = vmul.f32 %v1001, %v1001
        %v1075 = vmul.f32 %v1002, %v1002
        %v1076 = vmul.f32 %v1003, %v1003
        %v1077 = vmul.f32 %v1004, %v1004
        %v1078 = vmul.f32 %v1005, %v1005
        %v1079 = vmul.f32 %v1006, %v1006
        %v1080 = vmul.f32 %v1007, %v1007
        %v1081 = vmul.f32 %v1008, %v1008
        %v1082 = vmul.f32 %v1009, %v1009
        %v1083 = vmul.f32 %v1010, %v1010
        %v1084 = vmul.f32 %v1011, %v1011
        %v1085 = vmul.f32 %v1012, %v1012
        %v1086 = vmul.f32 %v1013, %v1013
        %v1087 = vmul.f32 %v1014, %v1014
        %v1088 = vmul.f32 %v1015, %v1015
        %v1089 = vmul.f32 %v1016, %v1016
        %1090 = vadd.xlane.f32.xlu0 %v1074
        %v1091 = vpop.xlane.xlu0 %1090
        %1092 = vadd.xlane.f32.xlu0 %v1075
        %v1093 = vpop.xlane.xlu0 %1092
        %1094 = vadd.xlane.f32.xlu0 %v1076
        %v1095 = vpop.xlane.xlu0 %1094
        %1096 = vadd.xlane.f32.xlu0 %v1077
        %v1097 = vpop.xlane.xlu0 %1096
        %1098 = vadd.xlane.f32.xlu0 %v1078
        %v1099 = vpop.xlane.xlu0 %1098
        %1100 = vadd.xlane.f32.xlu0 %v1079
        %v1101 = vpop.xlane.xlu0 %1100
        %1102 = vadd.xlane.f32.xlu0 %v1080
        %v1103 = vpop.xlane.xlu0 %1102
        %1104 = vadd.xlane.f32.xlu0 %v1081
        %v1105 = vpop.xlane.xlu0 %1104
        %1106 = vadd.xlane.f32.xlu0 %v1082
        %v1107 = vpop.xlane.xlu0 %1106
        %1108 = vadd.xlane.f32.xlu0 %v1083
        %v1109 = vpop.xlane.xlu0 %1108
        %1110 = vadd.xlane.f32.xlu0 %v1084
        %v1111 = vpop.xlane.xlu0 %1110
        %1112 = vadd.xlane.f32.xlu0 %v1085
        %v1113 = vpop.xlane.xlu0 %1112
        %1114 = vadd.xlane.f32.xlu0 %v1086
        %v1115 = vpop.xlane.xlu0 %1114
        %1116 = vadd.xlane.f32.xlu0 %v1087
        %v1117 = vpop.xlane.xlu0 %1116
        %1118 = vadd.xlane.f32.xlu0 %v1088
        %v1119 = vpop.xlane.xlu0 %1118
        %1120 = vadd.xlane.f32.xlu0 %v1089
        %v1121 = vpop.xlane.xlu0 %1120
        %v1122 = vmul.f32 %v1091, %v1057
        %v1123 = vmul.f32 %v1093, %v1057
        %v1124 = vmul.f32 %v1095, %v1057
        %v1125 = vmul.f32 %v1097, %v1057
        %v1126 = vmul.f32 %v1099, %v1057
        %v1127 = vmul.f32 %v1101, %v1057
        %v1128 = vmul.f32 %v1103, %v1057
        %v1129 = vmul.f32 %v1105, %v1057
        %v1130 = vmul.f32 %v1107, %v1057
        %v1131 = vmul.f32 %v1109, %v1057
        %v1132 = vmul.f32 %v1111, %v1057
        %v1133 = vmul.f32 %v1113, %v1057
        %v1134 = vmul.f32 %v1115, %v1057
        %v1135 = vmul.f32 %v1117, %v1057
        %v1136 = vmul.f32 %v1119, %v1057
        %v1137 = vmul.f32 %v1121, %v1057
        %v1138 = vmul.f32 %v1058, %v1058
        %v1139 = vmul.f32 %v1059, %v1059
        %v1140 = vmul.f32 %v1060, %v1060
        %v1141 = vmul.f32 %v1061, %v1061
        %v1142 = vmul.f32 %v1062, %v1062
        %v1143 = vmul.f32 %v1063, %v1063
        %v1144 = vmul.f32 %v1064, %v1064
        %v1145 = vmul.f32 %v1065, %v1065
        %v1146 = vmul.f32 %v1066, %v1066
        %v1147 = vmul.f32 %v1067, %v1067
        %v1148 = vmul.f32 %v1068, %v1068
        %v1149 = vmul.f32 %v1069, %v1069
        %v1150 = vmul.f32 %v1070, %v1070
        %v1151 = vmul.f32 %v1071, %v1071
        %v1152 = vmul.f32 %v1072, %v1072
        %v1153 = vmul.f32 %v1073, %v1073
        %v1154 = vsub.f32 %v1122, %v1138
        %v1155 = vsub.f32 %v1123, %v1139
        %v1156 = vsub.f32 %v1124, %v1140
        %v1157 = vsub.f32 %v1125, %v1141
        %v1158 = vsub.f32 %v1126, %v1142
        %v1159 = vsub.f32 %v1127, %v1143
        %v1160 = vsub.f32 %v1128, %v1144
        %v1161 = vsub.f32 %v1129, %v1145
        %v1162 = vsub.f32 %v1130, %v1146
        %v1163 = vsub.f32 %v1131, %v1147
        %v1164 = vsub.f32 %v1132, %v1148
        %v1165 = vsub.f32 %v1133, %v1149
        %v1166 = vsub.f32 %v1134, %v1150
        %v1167 = vsub.f32 %v1135, %v1151
        %v1168 = vsub.f32 %v1136, %v1152
        %v1169 = vsub.f32 %v1137, %v1153
        %v1170 = vsub.f32 %v1001, %v1058
        %v1171 = vsub.f32 %v1002, %v1059
        %v1172 = vsub.f32 %v1003, %v1060
        %v1173 = vsub.f32 %v1004, %v1061
        %v1174 = vsub.f32 %v1005, %v1062
        %v1175 = vsub.f32 %v1006, %v1063
        %v1176 = vsub.f32 %v1007, %v1064
        %v1177 = vsub.f32 %v1008, %v1065
        %v1178 = vsub.f32 %v1009, %v1066
        %v1179 = vsub.f32 %v1010, %v1067
        %v1180 = vsub.f32 %v1011, %v1068
        %v1181 = vsub.f32 %v1012, %v1069
        %v1182 = vsub.f32 %v1013, %v1070
        %v1183 = vsub.f32 %v1014, %v1071
        %v1184 = vsub.f32 %v1015, %v1072
        %v1185 = vsub.f32 %v1016, %v1073
        %v1186 = vadd.f32 %v1154, 1e-05
        %v1187 = vadd.f32 %v1155, 1e-05
        %v1188 = vadd.f32 %v1156, 1e-05
        %v1189 = vadd.f32 %v1157, 1e-05
        %v1190 = vadd.f32 %v1158, 1e-05
        %v1191 = vadd.f32 %v1159, 1e-05
        %v1192 = vadd.f32 %v1160, 1e-05
        %v1193 = vadd.f32 %v1161, 1e-05
        %v1194 = vadd.f32 %v1162, 1e-05
        %v1195 = vadd.f32 %v1163, 1e-05
        %v1196 = vadd.f32 %v1164, 1e-05
        %v1197 = vadd.f32 %v1165, 1e-05
        %v1198 = vadd.f32 %v1166, 1e-05
        %v1199 = vadd.f32 %v1167, 1e-05
        %v1200 = vadd.f32 %v1168, 1e-05
        %v1201 = vadd.f32 %v1169, 1e-05
        %v1202 = vrsqrt.pop %v1186
        %v1203 = vmul.f32 %v1202, %v1186
        %v1204 = vmul.f32 %v1203, %v1202
        %v1205 = vmul.f32 0.5, %v1204
        %v1206 = vsub.f32 1.5, %v1205
        %v1207 = vmul.f32 %v1202, %v1206
        %vm1208 = vweird.f32 %v1186
        %vm1209 = vweird.f32 %v1202
        %vm1210 = vmor %vm1208, %vm1209
        %v1211 = vsel %vm1210, %v1202, %v1207
        %v1212 = vrsqrt.pop %v1187
        %v1213 = vmul.f32 %v1212, %v1187
        %v1214 = vmul.f32 %v1213, %v1212
        %v1215 = vmul.f32 0.5, %v1214
        %v1216 = vsub.f32 1.5, %v1215
        %v1217 = vmul.f32 %v1212, %v1216
        %vm1218 = vweird.f32 %v1187
        %vm1219 = vweird.f32 %v1212
        %vm1220 = vmor %vm1218, %vm1219
        %v1221 = vsel %vm1220, %v1212, %v1217
        %v1222 = vrsqrt.pop %v1188
        %v1223 = vmul.f32 %v1222, %v1188
        %v1224 = vmul.f32 %v1223, %v1222
        %v1225 = vmul.f32 0.5, %v1224
        %v1226 = vsub.f32 1.5, %v1225
        %v1227 = vmul.f32 %v1222, %v1226
        %vm1228 = vweird.f32 %v1188
        %vm1229 = vweird.f32 %v1222
        %vm1230 = vmor %vm1228, %vm1229
        %v1231 = vsel %vm1230, %v1222, %v1227
        %v1232 = vrsqrt.pop %v1189
        %v1233 = vmul.f32 %v1232, %v1189
        %v1234 = vmul.f32 %v1233, %v1232
        %v1235 = vmul.f32 0.5, %v1234
        %v1236 = vsub.f32 1.5, %v1235
        %v1237 = vmul.f32 %v1232, %v1236
        %vm1238 = vweird.f32 %v1189
        %vm1239 = vweird.f32 %v1232
        %vm1240 = vmor %vm1238, %vm1239
        %v1241 = vsel %vm1240, %v1232, %v1237
        %v1242 = vrsqrt.pop %v1190
        %v1243 = vmul.f32 %v1242, %v1190
        %v1244 = vmul.f32 %v1243, %v1242
        %v1245 = vmul.f32 0.5, %v1244
        %v1246 = vsub.f32 1.5, %v1245
        %v1247 = vmul.f32 %v1242, %v1246
        %vm1248 = vweird.f32 %v1190
        %vm1249 = vweird.f32 %v1242
        %vm1250 = vmor %vm1248, %vm1249
        %v1251 = vsel %vm1250, %v1242, %v1247
        %v1252 = vrsqrt.pop %v1191
        %v1253 = vmul.f32 %v1252, %v1191
        %v1254 = vmul.f32 %v1253, %v1252
        %v1255 = vmul.f32 0.5, %v1254
        %v1256 = vsub.f32 1.5, %v1255
        %v1257 = vmul.f32 %v1252, %v1256
        %vm1258 = vweird.f32 %v1191
        %vm1259 = vweird.f32 %v1252
        %vm1260 = vmor %vm1258, %vm1259
        %v1261 = vsel %vm1260, %v1252, %v1257
        %v1262 = vrsqrt.pop %v1192
        %v1263 = vmul.f32 %v1262, %v1192
        %v1264 = vmul.f32 %v1263, %v1262
        %v1265 = vmul.f32 0.5, %v1264
        %v1266 = vsub.f32 1.5, %v1265
        %v1267 = vmul.f32 %v1262, %v1266
        %vm1268 = vweird.f32 %v1192
        %vm1269 = vweird.f32 %v1262
        %vm1270 = vmor %vm1268, %vm1269
        %v1271 = vsel %vm1270, %v1262, %v1267
        %v1272 = vrsqrt.pop %v1193
        %v1273 = vmul.f32 %v1272, %v1193
        %v1274 = vmul.f32 %v1273, %v1272
        %v1275 = vmul.f32 0.5, %v1274
        %v1276 = vsub.f32 1.5, %v1275
        %v1277 = vmul.f32 %v1272, %v1276
        %vm1278 = vweird.f32 %v1193
        %vm1279 = vweird.f32 %v1272
        %vm1280 = vmor %vm1278, %vm1279
        %v1281 = vsel %vm1280, %v1272, %v1277
        %v1282 = vrsqrt.pop %v1194
        %v1283 = vmul.f32 %v1282, %v1194
        %v1284 = vmul.f32 %v1283, %v1282
        %v1285 = vmul.f32 0.5, %v1284
        %v1286 = vsub.f32 1.5, %v1285
        %v1287 = vmul.f32 %v1282, %v1286
        %vm1288 = vweird.f32 %v1194
        %vm1289 = vweird.f32 %v1282
        %vm1290 = vmor %vm1288, %vm1289
        %v1291 = vsel %vm1290, %v1282, %v1287
        %v1292 = vrsqrt.pop %v1195
        %v1293 = vmul.f32 %v1292, %v1195
        %v1294 = vmul.f32 %v1293, %v1292
        %v1295 = vmul.f32 0.5, %v1294
        %v1296 = vsub.f32 1.5, %v1295
        %v1297 = vmul.f32 %v1292, %v1296
        %vm1298 = vweird.f32 %v1195
        %vm1299 = vweird.f32 %v1292
        %vm1300 = vmor %vm1298, %vm1299
        %v1301 = vsel %vm1300, %v1292, %v1297
        %v1302 = vrsqrt.pop %v1196
        %v1303 = vmul.f32 %v1302, %v1196
        %v1304 = vmul.f32 %v1303, %v1302
        %v1305 = vmul.f32 0.5, %v1304
        %v1306 = vsub.f32 1.5, %v1305
        %v1307 = vmul.f32 %v1302, %v1306
        %vm1308 = vweird.f32 %v1196
        %vm1309 = vweird.f32 %v1302
        %vm1310 = vmor %vm1308, %vm1309
        %v1311 = vsel %vm1310, %v1302, %v1307
        %v1312 = vrsqrt.pop %v1197
        %v1313 = vmul.f32 %v1312, %v1197
        %v1314 = vmul.f32 %v1313, %v1312
        %v1315 = vmul.f32 0.5, %v1314
        %v1316 = vsub.f32 1.5, %v1315
        %v1317 = vmul.f32 %v1312, %v1316
        %vm1318 = vweird.f32 %v1197
        %vm1319 = vweird.f32 %v1312
        %vm1320 = vmor %vm1318, %vm1319
        %v1321 = vsel %vm1320, %v1312, %v1317
        %v1322 = vrsqrt.pop %v1198
        %v1323 = vmul.f32 %v1322, %v1198
        %v1324 = vmul.f32 %v1323, %v1322
        %v1325 = vmul.f32 0.5, %v1324
        %v1326 = vsub.f32 1.5, %v1325
        %v1327 = vmul.f32 %v1322, %v1326
        %vm1328 = vweird.f32 %v1198
        %vm1329 = vweird.f32 %v1322
        %vm1330 = vmor %vm1328, %vm1329
        %v1331 = vsel %vm1330, %v1322, %v1327
        %v1332 = vrsqrt.pop %v1199
        %v1333 = vmul.f32 %v1332, %v1199
        %v1334 = vmul.f32 %v1333, %v1332
        %v1335 = vmul.f32 0.5, %v1334
        %v1336 = vsub.f32 1.5, %v1335
        %v1337 = vmul.f32 %v1332, %v1336
        %vm1338 = vweird.f32 %v1199
        %vm1339 = vweird.f32 %v1332
        %vm1340 = vmor %vm1338, %vm1339
        %v1341 = vsel %vm1340, %v1332, %v1337
        %v1342 = vrsqrt.pop %v1200
        %v1343 = vmul.f32 %v1342, %v1200
        %v1344 = vmul.f32 %v1343, %v1342
        %v1345 = vmul.f32 0.5, %v1344
        %v1346 = vsub.f32 1.5, %v1345
        %v1347 = vmul.f32 %v1342, %v1346
        %vm1348 = vweird.f32 %v1200
        %vm1349 = vweird.f32 %v1342
        %vm1350 = vmor %vm1348, %vm1349
        %v1351 = vsel %vm1350, %v1342, %v1347
        %v1352 = vrsqrt.pop %v1201
        %v1353 = vmul.f32 %v1352, %v1201
        %v1354 = vmul.f32 %v1353, %v1352
        %v1355 = vmul.f32 0.5, %v1354
        %v1356 = vsub.f32 1.5, %v1355
        %v1357 = vmul.f32 %v1352, %v1356
        %vm1358 = vweird.f32 %v1201
        %vm1359 = vweird.f32 %v1352
        %vm1360 = vmor %vm1358, %vm1359
        %v1361 = vsel %vm1360, %v1352, %v1357
        %v1362 = vmul.f32 %v1170, %v1211
        %v1363 = vmul.f32 %v1171, %v1221
        %v1364 = vmul.f32 %v1172, %v1231
        %v1365 = vmul.f32 %v1173, %v1241
        %v1366 = vmul.f32 %v1174, %v1251
        %v1367 = vmul.f32 %v1175, %v1261
        %v1368 = vmul.f32 %v1176, %v1271
        %v1369 = vmul.f32 %v1177, %v1281
        %v1370 = vmul.f32 %v1178, %v1291
        %v1371 = vmul.f32 %v1179, %v1301
        %v1372 = vmul.f32 %v1180, %v1311
        %v1373 = vmul.f32 %v1181, %v1321
        %v1374 = vmul.f32 %v1182, %v1331
        %v1375 = vmul.f32 %v1183, %v1341
        %v1376 = vmul.f32 %v1184, %v1351
        %v1377 = vmul.f32 %v1185, %v1361
        %v1379 = vperm.slane %v1017, 0
        %v1381 = vmul.f32 %v1362, %v1379
        %v1382 = vmul.f32 %v1363, %v1379
        %v1383 = vmul.f32 %v1364, %v1379
        %v1384 = vmul.f32 %v1365, %v1379
        %v1385 = vmul.f32 %v1366, %v1379
        %v1386 = vmul.f32 %v1367, %v1379
        %v1387 = vmul.f32 %v1368, %v1379
        %v1388 = vmul.f32 %v1369, %v1379
        %v1389 = vmul.f32 %v1370, %v1379
        %v1390 = vmul.f32 %v1371, %v1379
        %v1391 = vmul.f32 %v1372, %v1379
        %v1392 = vmul.f32 %v1373, %v1379
        %v1393 = vmul.f32 %v1374, %v1379
        %v1394 = vmul.f32 %v1375, %v1379
        %v1395 = vmul.f32 %v1376, %v1379
        %v1396 = vmul.f32 %v1377, %v1379
        %v1398 = vperm.slane %v1018, 0
        %v1400 = vadd.f32 %v1381, %v1398
        %v1401 = vadd.f32 %v1382, %v1398
        %v1402 = vadd.f32 %v1383, %v1398
        %v1403 = vadd.f32 %v1384, %v1398
        %v1404 = vadd.f32 %v1385, %v1398
        %v1405 = vadd.f32 %v1386, %v1398
        %v1406 = vadd.f32 %v1387, %v1398
        %v1407 = vadd.f32 %v1388, %v1398
        %v1408 = vadd.f32 %v1389, %v1398
        %v1409 = vadd.f32 %v1390, %v1398
        %v1410 = vadd.f32 %v1391, %v1398
        %v1411 = vadd.f32 %v1392, %v1398
        %v1412 = vadd.f32 %v1393, %v1398
        %v1413 = vadd.f32 %v1394, %v1398
        %v1414 = vadd.f32 %v1395, %v1398
        %v1415 = vadd.f32 %v1396, %v1398
        %v1416 = vmax.f32 %v1400, 0.0
        %v1417 = vmax.f32 %v1401, 0.0
        %v1418 = vmax.f32 %v1402, 0.0
        %v1419 = vmax.f32 %v1403, 0.0
        %v1420 = vmax.f32 %v1404, 0.0
        %v1421 = vmax.f32 %v1405, 0.0
        %v1422 = vmax.f32 %v1406, 0.0
        %v1423 = vmax.f32 %v1407, 0.0
        %v1424 = vmax.f32 %v1408, 0.0
        %v1425 = vmax.f32 %v1409, 0.0
        %v1426 = vmax.f32 %v1410, 0.0
        %v1427 = vmax.f32 %v1411, 0.0
        %v1428 = vmax.f32 %v1412, 0.0
        %v1429 = vmax.f32 %v1413, 0.0
        %v1430 = vmax.f32 %v1414, 0.0
        %v1431 = vmax.f32 %v1415, 0.0
        %v1432 = vpack.c.bf16 %v1417, %v1416
        %v1433 = vpack.c.bf16 %v1419, %v1418
        %v1434 = vpack.c.bf16 %v1421, %v1420
        %v1435 = vpack.c.bf16 %v1423, %v1422
        %v1436 = vpack.c.bf16 %v1425, %v1424
        %v1437 = vpack.c.bf16 %v1427, %v1426
        %v1438 = vpack.c.bf16 %v1429, %v1428
        %v1439 = vpack.c.bf16 %v1431, %v1430
        %v1440 = vld [vmem:[#allocation2] sm:$0xff]
        %v1441 = vld [vmem:[#allocation2 + $0x8] sm:$0xff]
        %v1442 = vld [vmem:[#allocation2 + $0x10] sm:$0xff]
        %v1443 = vld [vmem:[#allocation2 + $0x18] sm:$0xff]
        %v1444 = vld [vmem:[#allocation2 + $0x20] sm:$0xff]
        %v1445 = vld [vmem:[#allocation2 + $0x28] sm:$0xff]
        %v1446 = vld [vmem:[#allocation2 + $0x30] sm:$0xff]
        %v1447 = vld [vmem:[#allocation2 + $0x38] sm:$0xff]
        %v1448 = vld [vmem:[#allocation2 + $0x40] sm:$0xff]
        %v1449 = vld [vmem:[#allocation2 + $0x48] sm:$0xff]
        %v1450 = vld [vmem:[#allocation2 + $0x50] sm:$0xff]
        %v1451 = vld [vmem:[#allocation2 + $0x58] sm:$0xff]
        %v1452 = vld [vmem:[#allocation2 + $0x60] sm:$0xff]
        %v1453 = vld [vmem:[#allocation2 + $0x68] sm:$0xff]
        %v1454 = vld [vmem:[#allocation2 + $0x70] sm:$0xff]
        %v1455 = vld [vmem:[#allocation2 + $0x78] sm:$0xff]
        %v1456 = vld [vmem:[%s7] sm:$0x3]
        %v1458 = vperm.slane %v1456, 0
        %v1459 = vperm.slane %v1456, 1
        %v1478 = vunpack.c.l.b16 %v1440
        %v1479 = vunpack.c.h.b16 %v1440
        %v1480 = vunpack.c.l.b16 %v1441
        %v1481 = vunpack.c.h.b16 %v1441
        %v1482 = vunpack.c.l.b16 %v1442
        %v1483 = vunpack.c.h.b16 %v1442
        %v1484 = vunpack.c.l.b16 %v1443
        %v1485 = vunpack.c.h.b16 %v1443
        %v1486 = vunpack.c.l.b16 %v1444
        %v1487 = vunpack.c.h.b16 %v1444
        %v1488 = vunpack.c.l.b16 %v1445
        %v1489 = vunpack.c.h.b16 %v1445
        %v1490 = vunpack.c.l.b16 %v1446
        %v1491 = vunpack.c.h.b16 %v1446
        %v1492 = vunpack.c.l.b16 %v1447
        %v1493 = vunpack.c.h.b16 %v1447
        %v1494 = vunpack.c.l.b16 %v1448
        %v1495 = vunpack.c.h.b16 %v1448
        %v1496 = vunpack.c.l.b16 %v1449
        %v1497 = vunpack.c.h.b16 %v1449
        %v1498 = vunpack.c.l.b16 %v1450
        %v1499 = vunpack.c.h.b16 %v1450
        %v1500 = vunpack.c.l.b16 %v1451
        %v1501 = vunpack.c.h.b16 %v1451
        %v1502 = vunpack.c.l.b16 %v1452
        %v1503 = vunpack.c.h.b16 %v1452
        %v1504 = vunpack.c.l.b16 %v1453
        %v1505 = vunpack.c.h.b16 %v1453
        %v1506 = vunpack.c.l.b16 %v1454
        %v1507 = vunpack.c.h.b16 %v1454
        %v1508 = vunpack.c.l.b16 %v1455
        %v1509 = vunpack.c.h.b16 %v1455
        %v1510 = vpack.c.b16 %v1480, %v1478
        %v1511 = vpack.c.b16 %v1481, %v1479
        %v1512 = vpack.c.b16 %v1484, %v1482
        %v1513 = vpack.c.b16 %v1485, %v1483
        %v1514 = vpack.c.b16 %v1488, %v1486
        %v1515 = vpack.c.b16 %v1489, %v1487
        %v1516 = vpack.c.b16 %v1492, %v1490
        %v1517 = vpack.c.b16 %v1493, %v1491
        %v1518 = vpack.c.b16 %v1496, %v1494
        %v1519 = vpack.c.b16 %v1497, %v1495
        %v1520 = vpack.c.b16 %v1500, %v1498
        %v1521 = vpack.c.b16 %v1501, %v1499
        %v1522 = vpack.c.b16 %v1504, %v1502
        %v1523 = vpack.c.b16 %v1505, %v1503
        %v1524 = vpack.c.b16 %v1508, %v1506
        %v1525 = vpack.c.b16 %v1509, %v1507
        %1542 = vmatpush.bf16.msra.mxu0 %v1524
        %1543 = vmatpush.bf16.msra.mxu0 %v1522
        %1544 = vmatpush.bf16.msra.mxu0 %v1520
        %1545 = vmatpush.bf16.msra.mxu0 %v1518
        %1546 = vmatpush.bf16.msra.mxu0 %v1516
        %1547 = vmatpush.bf16.msra.mxu0 %v1514
        %1548 = vmatpush.bf16.msra.mxu0 %v1512
        %1549 = vmatpush.bf16.msra.mxu0 %v1510
        %1550 = vmatmul.bf16.gmra.mxu0 %v1432
        %v1551 = vpop.f32.mrf.mxu0
        %v1552 = vadd.f32 %v1458, %v1551
        %v1553 = vpop.f32.mrf.mxu0
        %v1554 = vadd.f32 %v1458, %v1553
        %1555 = vmatmul.bf16.gmra.mxu0 %v1433
        %v1556 = vpop.f32.mrf.mxu0
        %v1557 = vadd.f32 %v1458, %v1556
        %v1558 = vpop.f32.mrf.mxu0
        %v1559 = vadd.f32 %v1458, %v1558
        %1560 = vmatmul.bf16.gmra.mxu0 %v1434
        %v1561 = vpop.f32.mrf.mxu0
        %v1562 = vadd.f32 %v1458, %v1561
        %v1563 = vpop.f32.mrf.mxu0
        %v1564 = vadd.f32 %v1458, %v1563
        %1565 = vmatmul.bf16.gmra.mxu0 %v1435
        %v1566 = vpop.f32.mrf.mxu0
        %v1567 = vadd.f32 %v1458, %v1566
        %v1568 = vpop.f32.mrf.mxu0
        %v1569 = vadd.f32 %v1458, %v1568
        %1570 = vmatmul.bf16.gmra.mxu0 %v1436
        %v1571 = vpop.f32.mrf.mxu0
        %v1572 = vadd.f32 %v1458, %v1571
        %v1573 = vpop.f32.mrf.mxu0
        %v1574 = vadd.f32 %v1458, %v1573
        %1575 = vmatmul.bf16.gmra.mxu0 %v1437
        %v1576 = vpop.f32.mrf.mxu0
        %v1577 = vadd.f32 %v1458, %v1576
        %v1578 = vpop.f32.mrf.mxu0
        %v1579 = vadd.f32 %v1458, %v1578
        %1580 = vmatmul.bf16.gmra.mxu0 %v1438
        %v1581 = vpop.f32.mrf.mxu0
        %v1582 = vadd.f32 %v1458, %v1581
        %v1583 = vpop.f32.mrf.mxu0
        %v1584 = vadd.f32 %v1458, %v1583
        %1585 = vmatmul.bf16.gmra.mxu0 %v1439
        %v1586 = vpop.f32.mrf.mxu0
        %v1587 = vadd.f32 %v1458, %v1586
        %v1588 = vpop.f32.mrf.mxu0
        %v1589 = vadd.f32 %v1458, %v1588
        %1590 = vdwg.mxu0
        %1591 = vmatpush.bf16.msra.mxu0 %v1525
        %1592 = vmatpush.bf16.msra.mxu0 %v1523
        %1593 = vmatpush.bf16.msra.mxu0 %v1521
        %1594 = vmatpush.bf16.msra.mxu0 %v1519
        %1595 = vmatpush.bf16.msra.mxu0 %v1517
        %1596 = vmatpush.bf16.msra.mxu0 %v1515
        %1597 = vmatpush.bf16.msra.mxu0 %v1513
        %1598 = vmatpush.bf16.msra.mxu0 %v1511
        %1599 = vmatmul.bf16.gmra.mxu0 %v1432
        %v1600 = vpop.f32.mrf.mxu0
        %v1601 = vadd.f32 %v1459, %v1600
        %v1602 = vpop.f32.mrf.mxu0
        %v1603 = vadd.f32 %v1459, %v1602
        %1604 = vmatmul.bf16.gmra.mxu0 %v1433
        %v1605 = vpop.f32.mrf.mxu0
        %v1606 = vadd.f32 %v1459, %v1605
        %v1607 = vpop.f32.mrf.mxu0
        %v1608 = vadd.f32 %v1459, %v1607
        %1609 = vmatmul.bf16.gmra.mxu0 %v1434
        %v1610 = vpop.f32.mrf.mxu0
        %v1611 = vadd.f32 %v1459, %v1610
        %v1612 = vpop.f32.mrf.mxu0
        %v1613 = vadd.f32 %v1459, %v1612
        %1614 = vmatmul.bf16.gmra.mxu0 %v1435
        %v1615 = vpop.f32.mrf.mxu0
        %v1616 = vadd.f32 %v1459, %v1615
        %v1617 = vpop.f32.mrf.mxu0
        %v1618 = vadd.f32 %v1459, %v1617
        %1619 = vmatmul.bf16.gmra.mxu0 %v1436
        %v1620 = vpop.f32.mrf.mxu0
        %v1621 = vadd.f32 %v1459, %v1620
        %v1622 = vpop.f32.mrf.mxu0
        %v1623 = vadd.f32 %v1459, %v1622
        %1624 = vmatmul.bf16.gmra.mxu0 %v1437
        %v1625 = vpop.f32.mrf.mxu0
        %v1626 = vadd.f32 %v1459, %v1625
        %v1627 = vpop.f32.mrf.mxu0
        %v1628 = vadd.f32 %v1459, %v1627
        %1629 = vmatmul.bf16.gmra.mxu0 %v1438
        %v1630 = vpop.f32.mrf.mxu0
        %v1631 = vadd.f32 %v1459, %v1630
        %v1632 = vpop.f32.mrf.mxu0
        %v1633 = vadd.f32 %v1459, %v1632
        %1634 = vmatmul.bf16.gmra.mxu0 %v1439
        %v1635 = vpop.f32.mrf.mxu0
        %v1636 = vadd.f32 %v1459, %v1635
        %v1637 = vpop.f32.mrf.mxu0
        %v1638 = vadd.f32 %v1459, %v1637
        %1639 = vdwg.mxu0
        %v1640 = vmax.f32 %v1552, %v1554
        %v1641 = vrot.slane %v1640, 4
        %v1642 = vmax.f32 %v1640, %v1641
        %v1643 = vrot.slane %v1642, 2
        %v1644 = vmax.f32 %v1642, %v1643
        %v1645 = vrot.slane %v1644, 1
        %v1646 = vmax.f32 %v1644, %v1645
        %v1647 = vmax.f32 %v1601, %v1603
        %v1648 = vrot.slane %v1647, 4
        %v1649 = vmax.f32 %v1647, %v1648
        %v1650 = vrot.slane %v1649, 2
        %v1651 = vmax.f32 %v1649, %v1650
        %v1652 = vrot.slane %v1651, 1
        %v1653 = vmax.f32 %v1651, %v1652
        %v1654 = vmax.f32 %v1557, %v1559
        %v1655 = vrot.slane %v1654, 4
        %v1656 = vmax.f32 %v1654, %v1655
        %v1657 = vrot.slane %v1656, 2
        %v1658 = vmax.f32 %v1656, %v1657
        %v1659 = vrot.slane %v1658, 1
        %v1660 = vmax.f32 %v1658, %v1659
        %v1661 = vmax.f32 %v1606, %v1608
        %v1662 = vrot.slane %v1661, 4
        %v1663 = vmax.f32 %v1661, %v1662
        %v1664 = vrot.slane %v1663, 2
        %v1665 = vmax.f32 %v1663, %v1664
        %v1666 = vrot.slane %v1665, 1
        %v1667 = vmax.f32 %v1665, %v1666
        %v1668 = vmax.f32 %v1562, %v1564
        %v1669 = vrot.slane %v1668, 4
        %v1670 = vmax.f32 %v1668, %v1669
        %v1671 = vrot.slane %v1670, 2
        %v1672 = vmax.f32 %v1670, %v1671
        %v1673 = vrot.slane %v1672, 1
        %v1674 = vmax.f32 %v1672, %v1673
        %v1675 = vmax.f32 %v1611, %v1613
        %v1676 = vrot.slane %v1675, 4
        %v1677 = vmax.f32 %v1675, %v1676
        %v1678 = vrot.slane %v1677, 2
        %v1679 = vmax.f32 %v1677, %v1678
        %v1680 = vrot.slane %v1679, 1
        %v1681 = vmax.f32 %v1679, %v1680
        %v1682 = vmax.f32 %v1567, %v1569
        %v1683 = vrot.slane %v1682, 4
        %v1684 = vmax.f32 %v1682, %v1683
        %v1685 = vrot.slane %v1684, 2
        %v1686 = vmax.f32 %v1684, %v1685
        %v1687 = vrot.slane %v1686, 1
        %v1688 = vmax.f32 %v1686, %v1687
        %v1689 = vmax.f32 %v1616, %v1618
        %v1690 = vrot.slane %v1689, 4
        %v1691 = vmax.f32 %v1689, %v1690
        %v1692 = vrot.slane %v1691, 2
        %v1693 = vmax.f32 %v1691, %v1692
        %v1694 = vrot.slane %v1693, 1
        %v1695 = vmax.f32 %v1693, %v1694
        %v1696 = vmax.f32 %v1572, %v1574
        %v1697 = vrot.slane %v1696, 4
        %v1698 = vmax.f32 %v1696, %v1697
        %v1699 = vrot.slane %v1698, 2
        %v1700 = vmax.f32 %v1698, %v1699
        %v1701 = vrot.slane %v1700, 1
        %v1702 = vmax.f32 %v1700, %v1701
        %v1703 = vmax.f32 %v1621, %v1623
        %v1704 = vrot.slane %v1703, 4
        %v1705 = vmax.f32 %v1703, %v1704
        %v1706 = vrot.slane %v1705, 2
        %v1707 = vmax.f32 %v1705, %v1706
        %v1708 = vrot.slane %v1707, 1
        %v1709 = vmax.f32 %v1707, %v1708
        %v1710 = vmax.f32 %v1577, %v1579
        %v1711 = vrot.slane %v1710, 4
        %v1712 = vmax.f32 %v1710, %v1711
        %v1713 = vrot.slane %v1712, 2
        %v1714 = vmax.f32 %v1712, %v1713
        %v1715 = vrot.slane %v1714, 1
        %v1716 = vmax.f32 %v1714, %v1715
        %v1717 = vmax.f32 %v1626, %v1628
        %v1718 = vrot.slane %v1717, 4
        %v1719 = vmax.f32 %v1717, %v1718
        %v1720 = vrot.slane %v1719, 2
        %v1721 = vmax.f32 %v1719, %v1720
        %v1722 = vrot.slane %v1721, 1
        %v1723 = vmax.f32 %v1721, %v1722
        %v1724 = vmax.f32 %v1582, %v1584
        %v1725 = vrot.slane %v1724, 4
        %v1726 = vmax.f32 %v1724, %v1725
        %v1727 = vrot.slane %v1726, 2
        %v1728 = vmax.f32 %v1726, %v1727
        %v1729 = vrot.slane %v1728, 1
        %v1730 = vmax.f32 %v1728, %v1729
        %v1731 = vmax.f32 %v1631, %v1633
        %v1732 = vrot.slane %v1731, 4
        %v1733 = vmax.f32 %v1731, %v1732
        %v1734 = vrot.slane %v1733, 2
        %v1735 = vmax.f32 %v1733, %v1734
        %v1736 = vrot.slane %v1735, 1
        %v1737 = vmax.f32 %v1735, %v1736
        %v1738 = vmax.f32 %v1587, %v1589
        %v1739 = vrot.slane %v1738, 4
        %v1740 = vmax.f32 %v1738, %v1739
        %v1741 = vrot.slane %v1740, 2
        %v1742 = vmax.f32 %v1740, %v1741
        %v1743 = vrot.slane %v1742, 1
        %v1744 = vmax.f32 %v1742, %v1743
        %v1745 = vmax.f32 %v1636, %v1638
        %v1746 = vrot.slane %v1745, 4
        %v1747 = vmax.f32 %v1745, %v1746
        %v1748 = vrot.slane %v1747, 2
        %v1749 = vmax.f32 %v1747, %v1748
        %v1750 = vrot.slane %v1749, 1
        %v1751 = vmax.f32 %v1749, %v1750
        %v1752 = vpack.c.bf16 %v1554, %v1552
        %v1753 = vpack.c.bf16 %v1603, %v1601
        %v1754 = vpack.c.bf16 %v1559, %v1557
        %v1755 = vpack.c.bf16 %v1608, %v1606
        %v1756 = vpack.c.bf16 %v1564, %v1562
        %v1757 = vpack.c.bf16 %v1613, %v1611
        %v1758 = vpack.c.bf16 %v1569, %v1567
        %v1759 = vpack.c.bf16 %v1618, %v1616
        %v1760 = vpack.c.bf16 %v1574, %v1572
        %v1761 = vpack.c.bf16 %v1623, %v1621
        %v1762 = vpack.c.bf16 %v1579, %v1577
        %v1763 = vpack.c.bf16 %v1628, %v1626
        %v1764 = vpack.c.bf16 %v1584, %v1582
        %v1765 = vpack.c.bf16 %v1633, %v1631
        %v1766 = vpack.c.bf16 %v1589, %v1587
        %v1767 = vpack.c.bf16 %v1638, %v1636
        %v1768 = vld [vmem:[#allocation7] sm:$0xff]
        %v1769 = vld [vmem:[#allocation7 + $0x8] sm:$0xff]
        %v1770 = vld [vmem:[#allocation7 + $0x10] sm:$0xff]
        %v1771 = vld [vmem:[#allocation7 + $0x18] sm:$0xff]
        %v1772 = vld [vmem:[#allocation7 + $0x20] sm:$0xff]
        %v1773 = vld [vmem:[#allocation7 + $0x28] sm:$0xff]
        %v1774 = vld [vmem:[#allocation7 + $0x30] sm:$0xff]
        %v1775 = vld [vmem:[#allocation7 + $0x38] sm:$0xff]
        %v1776 = vld [vmem:[#allocation7 + $0x40] sm:$0xff]
        %v1777 = vld [vmem:[#allocation7 + $0x48] sm:$0xff]
        %v1778 = vld [vmem:[#allocation7 + $0x50] sm:$0xff]
        %v1779 = vld [vmem:[#allocation7 + $0x58] sm:$0xff]
        %v1780 = vld [vmem:[#allocation7 + $0x60] sm:$0xff]
        %v1781 = vld [vmem:[#allocation7 + $0x68] sm:$0xff]
        %v1782 = vld [vmem:[#allocation7 + $0x70] sm:$0xff]
        %v1783 = vld [vmem:[#allocation7 + $0x78] sm:$0xff]
        %v1784 = vld [vmem:[#allocation7 + $0x80] sm:$0xff]
        %v1785 = vld [vmem:[#allocation7 + $0x88] sm:$0xff]
        %v1786 = vld [vmem:[#allocation7 + $0x90] sm:$0xff]
        %v1787 = vld [vmem:[#allocation7 + $0x98] sm:$0xff]
        %v1788 = vld [vmem:[#allocation7 + $0xa0] sm:$0xff]
        %v1789 = vld [vmem:[#allocation7 + $0xa8] sm:$0xff]
        %v1790 = vld [vmem:[#allocation7 + $0xb0] sm:$0xff]
        %v1791 = vld [vmem:[#allocation7 + $0xb8] sm:$0xff]
        %v1792 = vld [vmem:[#allocation7 + $0xc0] sm:$0xff]
        %v1793 = vld [vmem:[#allocation7 + $0xc8] sm:$0xff]
        %v1794 = vld [vmem:[#allocation7 + $0xd0] sm:$0xff]
        %v1795 = vld [vmem:[#allocation7 + $0xd8] sm:$0xff]
        %v1796 = vld [vmem:[#allocation7 + $0xe0] sm:$0xff]
        %v1797 = vld [vmem:[#allocation7 + $0xe8] sm:$0xff]
        %v1798 = vld [vmem:[#allocation7 + $0xf0] sm:$0xff]
        %v1799 = vld [vmem:[#allocation7 + $0xf8] sm:$0xff]
        %v1800 = vld [vmem:[#allocation7 + $0x100] sm:$0xff]
        %v1801 = vld [vmem:[#allocation7 + $0x108] sm:$0xff]
        %v1802 = vld [vmem:[#allocation7 + $0x110] sm:$0xff]
        %v1803 = vld [vmem:[#allocation7 + $0x118] sm:$0xff]
        %v1804 = vld [vmem:[#allocation7 + $0x120] sm:$0xff]
        %v1805 = vld [vmem:[#allocation7 + $0x128] sm:$0xff]
        %v1806 = vld [vmem:[#allocation7 + $0x130] sm:$0xff]
        %v1807 = vld [vmem:[#allocation7 + $0x138] sm:$0xff]
        %v1808 = vld [vmem:[#allocation7 + $0x140] sm:$0xff]
        %v1809 = vld [vmem:[#allocation7 + $0x148] sm:$0xff]
        %v1810 = vld [vmem:[#allocation7 + $0x150] sm:$0xff]
        %v1811 = vld [vmem:[#allocation7 + $0x158] sm:$0xff]
        %v1812 = vld [vmem:[#allocation7 + $0x160] sm:$0xff]
        %v1813 = vld [vmem:[#allocation7 + $0x168] sm:$0xff]
        %v1814 = vld [vmem:[#allocation7 + $0x170] sm:$0xff]
        %v1815 = vld [vmem:[#allocation7 + $0x178] sm:$0xff]
        %v1816 = vld [vmem:[#allocation7 + $0x180] sm:$0xff]
        %v1817 = vld [vmem:[#allocation7 + $0x188] sm:$0xff]
        %v1818 = vld [vmem:[#allocation7 + $0x190] sm:$0xff]
        %v1819 = vld [vmem:[#allocation7 + $0x198] sm:$0xff]
        %v1820 = vld [vmem:[#allocation7 + $0x1a0] sm:$0xff]
        %v1821 = vld [vmem:[#allocation7 + $0x1a8] sm:$0xff]
        %v1822 = vld [vmem:[#allocation7 + $0x1b0] sm:$0xff]
        %v1823 = vld [vmem:[#allocation7 + $0x1b8] sm:$0xff]
        %v1824 = vld [vmem:[#allocation7 + $0x1c0] sm:$0xff]
        %v1825 = vld [vmem:[#allocation7 + $0x1c8] sm:$0xff]
        %v1826 = vld [vmem:[#allocation7 + $0x1d0] sm:$0xff]
        %v1827 = vld [vmem:[#allocation7 + $0x1d8] sm:$0xff]
        %v1828 = vld [vmem:[#allocation7 + $0x1e0] sm:$0xff]
        %v1829 = vld [vmem:[#allocation7 + $0x1e8] sm:$0xff]
        %v1830 = vld [vmem:[#allocation7 + $0x1f0] sm:$0xff]
        %v1831 = vld [vmem:[#allocation7 + $0x1f8] sm:$0xff]
        %v1896 = vunpack.c.l.b16 %v1768
        %v1897 = vunpack.c.h.b16 %v1768
        %v1898 = vunpack.c.l.b16 %v1769
        %v1899 = vunpack.c.h.b16 %v1769
        %v1900 = vunpack.c.l.b16 %v1770
        %v1901 = vunpack.c.h.b16 %v1770
        %v1902 = vunpack.c.l.b16 %v1771
        %v1903 = vunpack.c.h.b16 %v1771
        %v1904 = vunpack.c.l.b16 %v1772
        %v1905 = vunpack.c.h.b16 %v1772
        %v1906 = vunpack.c.l.b16 %v1773
        %v1907 = vunpack.c.h.b16 %v1773
        %v1908 = vunpack.c.l.b16 %v1774
        %v1909 = vunpack.c.h.b16 %v1774
        %v1910 = vunpack.c.l.b16 %v1775
        %v1911 = vunpack.c.h.b16 %v1775
        %v1912 = vunpack.c.l.b16 %v1776
        %v1913 = vunpack.c.h.b16 %v1776
        %v1914 = vunpack.c.l.b16 %v1777
        %v1915 = vunpack.c.h.b16 %v1777
        %v1916 = vunpack.c.l.b16 %v1778
        %v1917 = vunpack.c.h.b16 %v1778
        %v1918 = vunpack.c.l.b16 %v1779
        %v1919 = vunpack.c.h.b16 %v1779
        %v1920 = vunpack.c.l.b16 %v1780
        %v1921 = vunpack.c.h.b16 %v1780
        %v1922 = vunpack.c.l.b16 %v1781
        %v1923 = vunpack.c.h.b16 %v1781
        %v1924 = vunpack.c.l.b16 %v1782
        %v1925 = vunpack.c.h.b16 %v1782
        %v1926 = vunpack.c.l.b16 %v1783
        %v1927 = vunpack.c.h.b16 %v1783
        %v1928 = vunpack.c.l.b16 %v1784
        %v1929 = vunpack.c.h.b16 %v1784
        %v1930 = vunpack.c.l.b16 %v1785
        %v1931 = vunpack.c.h.b16 %v1785
        %v1932 = vunpack.c.l.b16 %v1786
        %v1933 = vunpack.c.h.b16 %v1786
        %v1934 = vunpack.c.l.b16 %v1787
        %v1935 = vunpack.c.h.b16 %v1787
        %v1936 = vunpack.c.l.b16 %v1788
        %v1937 = vunpack.c.h.b16 %v1788
        %v1938 = vunpack.c.l.b16 %v1789
        %v1939 = vunpack.c.h.b16 %v1789
        %v1940 = vunpack.c.l.b16 %v1790
        %v1941 = vunpack.c.h.b16 %v1790
        %v1942 = vunpack.c.l.b16 %v1791
        %v1943 = vunpack.c.h.b16 %v1791
        %v1944 = vunpack.c.l.b16 %v1792
        %v1945 = vunpack.c.h.b16 %v1792
        %v1946 = vunpack.c.l.b16 %v1793
        %v1947 = vunpack.c.h.b16 %v1793
        %v1948 = vunpack.c.l.b16 %v1794
        %v1949 = vunpack.c.h.b16 %v1794
        %v1950 = vunpack.c.l.b16 %v1795
        %v1951 = vunpack.c.h.b16 %v1795
        %v1952 = vunpack.c.l.b16 %v1796
        %v1953 = vunpack.c.h.b16 %v1796
        %v1954 = vunpack.c.l.b16 %v1797
        %v1955 = vunpack.c.h.b16 %v1797
        %v1956 = vunpack.c.l.b16 %v1798
        %v1957 = vunpack.c.h.b16 %v1798
        %v1958 = vunpack.c.l.b16 %v1799
        %v1959 = vunpack.c.h.b16 %v1799
        %v1960 = vunpack.c.l.b16 %v1800
        %v1961 = vunpack.c.h.b16 %v1800
        %v1962 = vunpack.c.l.b16 %v1801
        %v1963 = vunpack.c.h.b16 %v1801
        %v1964 = vunpack.c.l.b16 %v1802
        %v1965 = vunpack.c.h.b16 %v1802
        %v1966 = vunpack.c.l.b16 %v1803
        %v1967 = vunpack.c.h.b16 %v1803
        %v1968 = vunpack.c.l.b16 %v1804
        %v1969 = vunpack.c.h.b16 %v1804
        %v1970 = vunpack.c.l.b16 %v1805
        %v1971 = vunpack.c.h.b16 %v1805
        %v1972 = vunpack.c.l.b16 %v1806
        %v1973 = vunpack.c.h.b16 %v1806
        %v1974 = vunpack.c.l.b16 %v1807
        %v1975 = vunpack.c.h.b16 %v1807
        %v1976 = vunpack.c.l.b16 %v1808
        %v1977 = vunpack.c.h.b16 %v1808
        %v1978 = vunpack.c.l.b16 %v1809
        %v1979 = vunpack.c.h.b16 %v1809
        %v1980 = vunpack.c.l.b16 %v1810
        %v1981 = vunpack.c.h.b16 %v1810
        %v1982 = vunpack.c.l.b16 %v1811
        %v1983 = vunpack.c.h.b16 %v1811
        %v1984 = vunpack.c.l.b16 %v1812
        %v1985 = vunpack.c.h.b16 %v1812
        %v1986 = vunpack.c.l.b16 %v1813
        %v1987 = vunpack.c.h.b16 %v1813
        %v1988 = vunpack.c.l.b16 %v1814
        %v1989 = vunpack.c.h.b16 %v1814
        %v1990 = vunpack.c.l.b16 %v1815
        %v1991 = vunpack.c.h.b16 %v1815
        %v1992 = vunpack.c.l.b16 %v1816
        %v1993 = vunpack.c.h.b16 %v1816
        %v1994 = vunpack.c.l.b16 %v1817
        %v1995 = vunpack.c.h.b16 %v1817
        %v1996 = vunpack.c.l.b16 %v1818
        %v1997 = vunpack.c.h.b16 %v1818
        %v1998 = vunpack.c.l.b16 %v1819
        %v1999 = vunpack.c.h.b16 %v1819
        %v2000 = vunpack.c.l.b16 %v1820
        %v2001 = vunpack.c.h.b16 %v1820
        %v2002 = vunpack.c.l.b16 %v1821
        %v2003 = vunpack.c.h.b16 %v1821
        %v2004 = vunpack.c.l.b16 %v1822
        %v2005 = vunpack.c.h.b16 %v1822
        %v2006 = vunpack.c.l.b16 %v1823
        %v2007 = vunpack.c.h.b16 %v1823
        %v2008 = vunpack.c.l.b16 %v1824
        %v2009 = vunpack.c.h.b16 %v1824
        %v2010 = vunpack.c.l.b16 %v1825
        %v2011 = vunpack.c.h.b16 %v1825
        %v2012 = vunpack.c.l.b16 %v1826
        %v2013 = vunpack.c.h.b16 %v1826
        %v2014 = vunpack.c.l.b16 %v1827
        %v2015 = vunpack.c.h.b16 %v1827
        %v2016 = vunpack.c.l.b16 %v1828
        %v2017 = vunpack.c.h.b16 %v1828
        %v2018 = vunpack.c.l.b16 %v1829
        %v2019 = vunpack.c.h.b16 %v1829
        %v2020 = vunpack.c.l.b16 %v1830
        %v2021 = vunpack.c.h.b16 %v1830
        %v2022 = vunpack.c.l.b16 %v1831
        %v2023 = vunpack.c.h.b16 %v1831
        %v2024 = vpack.c.b16 %v1900, %v1896
        %v2025 = vpack.c.b16 %v1901, %v1897
        %v2026 = vpack.c.b16 %v1902, %v1898
        %v2027 = vpack.c.b16 %v1903, %v1899
        %v2028 = vpack.c.b16 %v1908, %v1904
        %v2029 = vpack.c.b16 %v1909, %v1905
        %v2030 = vpack.c.b16 %v1910, %v1906
        %v2031 = vpack.c.b16 %v1911, %v1907
        %v2032 = vpack.c.b16 %v1916, %v1912
        %v2033 = vpack.c.b16 %v1917, %v1913
        %v2034 = vpack.c.b16 %v1918, %v1914
        %v2035 = vpack.c.b16 %v1919, %v1915
        %v2036 = vpack.c.b16 %v1924, %v1920
        %v2037 = vpack.c.b16 %v1925, %v1921
        %v2038 = vpack.c.b16 %v1926, %v1922
        %v2039 = vpack.c.b16 %v1927, %v1923
        %v2040 = vpack.c.b16 %v1932, %v1928
        %v2041 = vpack.c.b16 %v1933, %v1929
        %v2042 = vpack.c.b16 %v1934, %v1930
        %v2043 = vpack.c.b16 %v1935, %v1931
        %v2044 = vpack.c.b16 %v1940, %v1936
        %v2045 = vpack.c.b16 %v1941, %v1937
        %v2046 = vpack.c.b16 %v1942, %v1938
        %v2047 = vpack.c.b16 %v1943, %v1939
        %v2048 = vpack.c.b16 %v1948, %v1944
        %v2049 = vpack.c.b16 %v1949, %v1945
        %v2050 = vpack.c.b16 %v1950, %v1946
        %v2051 = vpack.c.b16 %v1951, %v1947
        %v2052 = vpack.c.b16 %v1956, %v1952
        %v2053 = vpack.c.b16 %v1957, %v1953
        %v2054 = vpack.c.b16 %v1958, %v1954
        %v2055 = vpack.c.b16 %v1959, %v1955
        %v2056 = vpack.c.b16 %v1964, %v1960
        %v2057 = vpack.c.b16 %v1965, %v1961
        %v2058 = vpack.c.b16 %v1966, %v1962
        %v2059 = vpack.c.b16 %v1967, %v1963
        %v2060 = vpack.c.b16 %v1972, %v1968
        %v2061 = vpack.c.b16 %v1973, %v1969
        %v2062 = vpack.c.b16 %v1974, %v1970
        %v2063 = vpack.c.b16 %v1975, %v1971
        %v2064 = vpack.c.b16 %v1980, %v1976
        %v2065 = vpack.c.b16 %v1981, %v1977
        %v2066 = vpack.c.b16 %v1982, %v1978
        %v2067 = vpack.c.b16 %v1983, %v1979
        %v2068 = vpack.c.b16 %v1988, %v1984
        %v2069 = vpack.c.b16 %v1989, %v1985
        %v2070 = vpack.c.b16 %v1990, %v1986
        %v2071 = vpack.c.b16 %v1991, %v1987
        %v2072 = vpack.c.b16 %v1996, %v1992
        %v2073 = vpack.c.b16 %v1997, %v1993
        %v2074 = vpack.c.b16 %v1998, %v1994
        %v2075 = vpack.c.b16 %v1999, %v1995
        %v2076 = vpack.c.b16 %v2004, %v2000
        %v2077 = vpack.c.b16 %v2005, %v2001
        %v2078 = vpack.c.b16 %v2006, %v2002
        %v2079 = vpack.c.b16 %v2007, %v2003
        %v2080 = vpack.c.b16 %v2012, %v2008
        %v2081 = vpack.c.b16 %v2013, %v2009
        %v2082 = vpack.c.b16 %v2014, %v2010
        %v2083 = vpack.c.b16 %v2015, %v2011
        %v2084 = vpack.c.b16 %v2020, %v2016
        %v2085 = vpack.c.b16 %v2021, %v2017
        %v2086 = vpack.c.b16 %v2022, %v2018
        %v2087 = vpack.c.b16 %v2023, %v2019
        %2152 = vmatpush.bf16.msra.mxu0 %v2052
        %2153 = vmatpush.bf16.msra.mxu0 %v2048
        %2154 = vmatpush.bf16.msra.mxu0 %v2044
        %2155 = vmatpush.bf16.msra.mxu0 %v2040
        %2156 = vmatpush.bf16.msra.mxu0 %v2036
        %2157 = vmatpush.bf16.msra.mxu0 %v2032
        %2158 = vmatpush.bf16.msra.mxu0 %v2028
        %2159 = vmatpush.bf16.msra.mxu0 %v2024
        %2160 = vmatmul.bf16.gmra.mxu0 %v1752
        %v2161 = vpop.f32.mrf.mxu0
        %v2162 = vadd.f32 0.0, %v2161
        %v2163 = vpop.f32.mrf.mxu0
        %v2164 = vadd.f32 0.0, %v2163
        %2165 = vmatmul.bf16.gmra.mxu0 %v1754
        %v2166 = vpop.f32.mrf.mxu0
        %v2167 = vadd.f32 0.0, %v2166
        %v2168 = vpop.f32.mrf.mxu0
        %v2169 = vadd.f32 0.0, %v2168
        %2170 = vmatmul.bf16.gmra.mxu0 %v1756
        %v2171 = vpop.f32.mrf.mxu0
        %v2172 = vadd.f32 0.0, %v2171
        %v2173 = vpop.f32.mrf.mxu0
        %v2174 = vadd.f32 0.0, %v2173
        %2175 = vmatmul.bf16.gmra.mxu0 %v1758
        %v2176 = vpop.f32.mrf.mxu0
        %v2177 = vadd.f32 0.0, %v2176
        %v2178 = vpop.f32.mrf.mxu0
        %v2179 = vadd.f32 0.0, %v2178
        %2180 = vmatmul.bf16.gmra.mxu0 %v1760
        %v2181 = vpop.f32.mrf.mxu0
        %v2182 = vadd.f32 0.0, %v2181
        %v2183 = vpop.f32.mrf.mxu0
        %v2184 = vadd.f32 0.0, %v2183
        %2185 = vmatmul.bf16.gmra.mxu0 %v1762
        %v2186 = vpop.f32.mrf.mxu0
        %v2187 = vadd.f32 0.0, %v2186
        %v2188 = vpop.f32.mrf.mxu0
        %v2189 = vadd.f32 0.0, %v2188
        %2190 = vmatmul.bf16.gmra.mxu0 %v1764
        %v2191 = vpop.f32.mrf.mxu0
        %v2192 = vadd.f32 0.0, %v2191
        %v2193 = vpop.f32.mrf.mxu0
        %v2194 = vadd.f32 0.0, %v2193
        %2195 = vmatmul.bf16.gmra.mxu0 %v1766
        %v2196 = vpop.f32.mrf.mxu0
        %v2197 = vadd.f32 0.0, %v2196
        %v2198 = vpop.f32.mrf.mxu0
        %v2199 = vadd.f32 0.0, %v2198
        %2200 = vdwg.mxu0
        %2201 = vmatpush.bf16.msra.mxu0 %v2084
        %2202 = vmatpush.bf16.msra.mxu0 %v2080
        %2203 = vmatpush.bf16.msra.mxu0 %v2076
        %2204 = vmatpush.bf16.msra.mxu0 %v2072
        %2205 = vmatpush.bf16.msra.mxu0 %v2068
        %2206 = vmatpush.bf16.msra.mxu0 %v2064
        %2207 = vmatpush.bf16.msra.mxu0 %v2060
        %2208 = vmatpush.bf16.msra.mxu0 %v2056
        %2209 = vmatmul.bf16.gmra.mxu0 %v1753
        %v2210 = vpop.f32.mrf.mxu0
        %v2211 = vadd.f32 %v2162, %v2210
        %v2212 = vpop.f32.mrf.mxu0
        %v2213 = vadd.f32 %v2164, %v2212
        %2214 = vmatmul.bf16.gmra.mxu0 %v1755
        %v2215 = vpop.f32.mrf.mxu0
        %v2216 = vadd.f32 %v2167, %v2215
        %v2217 = vpop.f32.mrf.mxu0
        %v2218 = vadd.f32 %v2169, %v2217
        %2219 = vmatmul.bf16.gmra.mxu0 %v1757
        %v2220 = vpop.f32.mrf.mxu0
        %v2221 = vadd.f32 %v2172, %v2220
        %v2222 = vpop.f32.mrf.mxu0
        %v2223 = vadd.f32 %v2174, %v2222
        %2224 = vmatmul.bf16.gmra.mxu0 %v1759
        %v2225 = vpop.f32.mrf.mxu0
        %v2226 = vadd.f32 %v2177, %v2225
        %v2227 = vpop.f32.mrf.mxu0
        %v2228 = vadd.f32 %v2179, %v2227
        %2229 = vmatmul.bf16.gmra.mxu0 %v1761
        %v2230 = vpop.f32.mrf.mxu0
        %v2231 = vadd.f32 %v2182, %v2230
        %v2232 = vpop.f32.mrf.mxu0
        %v2233 = vadd.f32 %v2184, %v2232
        %2234 = vmatmul.bf16.gmra.mxu0 %v1763
        %v2235 = vpop.f32.mrf.mxu0
        %v2236 = vadd.f32 %v2187, %v2235
        %v2237 = vpop.f32.mrf.mxu0
        %v2238 = vadd.f32 %v2189, %v2237
        %2239 = vmatmul.bf16.gmra.mxu0 %v1765
        %v2240 = vpop.f32.mrf.mxu0
        %v2241 = vadd.f32 %v2192, %v2240
        %v2242 = vpop.f32.mrf.mxu0
        %v2243 = vadd.f32 %v2194, %v2242
        %2244 = vmatmul.bf16.gmra.mxu0 %v1767
        %v2245 = vpop.f32.mrf.mxu0
        %v2246 = vadd.f32 %v2197, %v2245
        %v2247 = vpop.f32.mrf.mxu0
        %v2248 = vadd.f32 %v2199, %v2247
        %2249 = vdwg.mxu0
        %2250 = vmatpush.bf16.msra.mxu0 %v2053
        %2251 = vmatpush.bf16.msra.mxu0 %v2049
        %2252 = vmatpush.bf16.msra.mxu0 %v2045
        %2253 = vmatpush.bf16.msra.mxu0 %v2041
        %2254 = vmatpush.bf16.msra.mxu0 %v2037
        %2255 = vmatpush.bf16.msra.mxu0 %v2033
        %2256 = vmatpush.bf16.msra.mxu0 %v2029
        %2257 = vmatpush.bf16.msra.mxu0 %v2025
        %2258 = vmatmul.bf16.gmra.mxu0 %v1752
        %v2259 = vpop.f32.mrf.mxu0
        %v2260 = vadd.f32 0.0, %v2259
        %v2261 = vpop.f32.mrf.mxu0
        %v2262 = vadd.f32 0.0, %v2261
        %2263 = vmatmul.bf16.gmra.mxu0 %v1754
        %v2264 = vpop.f32.mrf.mxu0
        %v2265 = vadd.f32 0.0, %v2264
        %v2266 = vpop.f32.mrf.mxu0
        %v2267 = vadd.f32 0.0, %v2266
        %2268 = vmatmul.bf16.gmra.mxu0 %v1756
        %v2269 = vpop.f32.mrf.mxu0
        %v2270 = vadd.f32 0.0, %v2269
        %v2271 = vpop.f32.mrf.mxu0
        %v2272 = vadd.f32 0.0, %v2271
        %2273 = vmatmul.bf16.gmra.mxu0 %v1758
        %v2274 = vpop.f32.mrf.mxu0
        %v2275 = vadd.f32 0.0, %v2274
        %v2276 = vpop.f32.mrf.mxu0
        %v2277 = vadd.f32 0.0, %v2276
        %2278 = vmatmul.bf16.gmra.mxu0 %v1760
        %v2279 = vpop.f32.mrf.mxu0
        %v2280 = vadd.f32 0.0, %v2279
        %v2281 = vpop.f32.mrf.mxu0
        %v2282 = vadd.f32 0.0, %v2281
        %2283 = vmatmul.bf16.gmra.mxu0 %v1762
        %v2284 = vpop.f32.mrf.mxu0
        %v2285 = vadd.f32 0.0, %v2284
        %v2286 = vpop.f32.mrf.mxu0
        %v2287 = vadd.f32 0.0, %v2286
        %2288 = vmatmul.bf16.gmra.mxu0 %v1764
        %v2289 = vpop.f32.mrf.mxu0
        %v2290 = vadd.f32 0.0, %v2289
        %v2291 = vpop.f32.mrf.mxu0
        %v2292 = vadd.f32 0.0, %v2291
        %2293 = vmatmul.bf16.gmra.mxu0 %v1766
        %v2294 = vpop.f32.mrf.mxu0
        %v2295 = vadd.f32 0.0, %v2294
        %v2296 = vpop.f32.mrf.mxu0
        %v2297 = vadd.f32 0.0, %v2296
        %2298 = vdwg.mxu0
        %2299 = vmatpush.bf16.msra.mxu0 %v2085
        %2300 = vmatpush.bf16.msra.mxu0 %v2081
        %2301 = vmatpush.bf16.msra.mxu0 %v2077
        %2302 = vmatpush.bf16.msra.mxu0 %v2073
        %2303 = vmatpush.bf16.msra.mxu0 %v2069
        %2304 = vmatpush.bf16.msra.mxu0 %v2065
        %2305 = vmatpush.bf16.msra.mxu0 %v2061
        %2306 = vmatpush.bf16.msra.mxu0 %v2057
        %2307 = vmatmul.bf16.gmra.mxu0 %v1753
        %v2308 = vpop.f32.mrf.mxu0
        %v2309 = vadd.f32 %v2260, %v2308
        %v2310 = vpop.f32.mrf.mxu0
        %v2311 = vadd.f32 %v2262, %v2310
        %2312 = vmatmul.bf16.gmra.mxu0 %v1755
        %v2313 = vpop.f32.mrf.mxu0
        %v2314 = vadd.f32 %v2265, %v2313
        %v2315 = vpop.f32.mrf.mxu0
        %v2316 = vadd.f32 %v2267, %v2315
        %2317 = vmatmul.bf16.gmra.mxu0 %v1757
        %v2318 = vpop.f32.mrf.mxu0
        %v2319 = vadd.f32 %v2270, %v2318
        %v2320 = vpop.f32.mrf.mxu0
        %v2321 = vadd.f32 %v2272, %v2320
        %2322 = vmatmul.bf16.gmra.mxu0 %v1759
        %v2323 = vpop.f32.mrf.mxu0
        %v2324 = vadd.f32 %v2275, %v2323
        %v2325 = vpop.f32.mrf.mxu0
        %v2326 = vadd.f32 %v2277, %v2325
        %2327 = vmatmul.bf16.gmra.mxu0 %v1761
        %v2328 = vpop.f32.mrf.mxu0
        %v2329 = vadd.f32 %v2280, %v2328
        %v2330 = vpop.f32.mrf.mxu0
        %v2331 = vadd.f32 %v2282, %v2330
        %2332 = vmatmul.bf16.gmra.mxu0 %v1763
        %v2333 = vpop.f32.mrf.mxu0
        %v2334 = vadd.f32 %v2285, %v2333
        %v2335 = vpop.f32.mrf.mxu0
        %v2336 = vadd.f32 %v2287, %v2335
        %2337 = vmatmul.bf16.gmra.mxu0 %v1765
        %v2338 = vpop.f32.mrf.mxu0
        %v2339 = vadd.f32 %v2290, %v2338
        %v2340 = vpop.f32.mrf.mxu0
        %v2341 = vadd.f32 %v2292, %v2340
        %2342 = vmatmul.bf16.gmra.mxu0 %v1767
        %v2343 = vpop.f32.mrf.mxu0
        %v2344 = vadd.f32 %v2295, %v2343
        %v2345 = vpop.f32.mrf.mxu0
        %v2346 = vadd.f32 %v2297, %v2345
        %2347 = vdwg.mxu0
        %2348 = vmatpush.bf16.msra.mxu0 %v2054
        %2349 = vmatpush.bf16.msra.mxu0 %v2050
        %2350 = vmatpush.bf16.msra.mxu0 %v2046
        %2351 = vmatpush.bf16.msra.mxu0 %v2042
        %2352 = vmatpush.bf16.msra.mxu0 %v2038
        %2353 = vmatpush.bf16.msra.mxu0 %v2034
        %2354 = vmatpush.bf16.msra.mxu0 %v2030
        %2355 = vmatpush.bf16.msra.mxu0 %v2026
        %2356 = vmatmul.bf16.gmra.mxu0 %v1752
        %v2357 = vpop.f32.mrf.mxu0
        %v2358 = vadd.f32 0.0, %v2357
        %v2359 = vpop.f32.mrf.mxu0
        %v2360 = vadd.f32 0.0, %v2359
        %2361 = vmatmul.bf16.gmra.mxu0 %v1754
        %v2362 = vpop.f32.mrf.mxu0
        %v2363 = vadd.f32 0.0, %v2362
        %v2364 = vpop.f32.mrf.mxu0
        %v2365 = vadd.f32 0.0, %v2364
        %2366 = vmatmul.bf16.gmra.mxu0 %v1756
        %v2367 = vpop.f32.mrf.mxu0
        %v2368 = vadd.f32 0.0, %v2367
        %v2369 = vpop.f32.mrf.mxu0
        %v2370 = vadd.f32 0.0, %v2369
        %2371 = vmatmul.bf16.gmra.mxu0 %v1758
        %v2372 = vpop.f32.mrf.mxu0
        %v2373 = vadd.f32 0.0, %v2372
        %v2374 = vpop.f32.mrf.mxu0
        %v2375 = vadd.f32 0.0, %v2374
        %2376 = vmatmul.bf16.gmra.mxu0 %v1760
        %v2377 = vpop.f32.mrf.mxu0
        %v2378 = vadd.f32 0.0, %v2377
        %v2379 = vpop.f32.mrf.mxu0
        %v2380 = vadd.f32 0.0, %v2379
        %2381 = vmatmul.bf16.gmra.mxu0 %v1762
        %v2382 = vpop.f32.mrf.mxu0
        %v2383 = vadd.f32 0.0, %v2382
        %v2384 = vpop.f32.mrf.mxu0
        %v2385 = vadd.f32 0.0, %v2384
        %2386 = vmatmul.bf16.gmra.mxu0 %v1764
        %v2387 = vpop.f32.mrf.mxu0
        %v2388 = vadd.f32 0.0, %v2387
        %v2389 = vpop.f32.mrf.mxu0
        %v2390 = vadd.f32 0.0, %v2389
        %2391 = vmatmul.bf16.gmra.mxu0 %v1766
        %v2392 = vpop.f32.mrf.mxu0
        %v2393 = vadd.f32 0.0, %v2392
        %v2394 = vpop.f32.mrf.mxu0
        %v2395 = vadd.f32 0.0, %v2394
        %2396 = vdwg.mxu0
        %2397 = vmatpush.bf16.msra.mxu0 %v2086
        %2398 = vmatpush.bf16.msra.mxu0 %v2082
        %2399 = vmatpush.bf16.msra.mxu0 %v2078
        %2400 = vmatpush.bf16.msra.mxu0 %v2074
        %2401 = vmatpush.bf16.msra.mxu0 %v2070
        %2402 = vmatpush.bf16.msra.mxu0 %v2066
        %2403 = vmatpush.bf16.msra.mxu0 %v2062
        %2404 = vmatpush.bf16.msra.mxu0 %v2058
        %2405 = vmatmul.bf16.gmra.mxu0 %v1753
        %v2406 = vpop.f32.mrf.mxu0
        %v2407 = vadd.f32 %v2358, %v2406
        %v2408 = vpop.f32.mrf.mxu0
        %v2409 = vadd.f32 %v2360, %v2408
        %2410 = vmatmul.bf16.gmra.mxu0 %v1755
        %v2411 = vpop.f32.mrf.mxu0
        %v2412 = vadd.f32 %v2363, %v2411
        %v2413 = vpop.f32.mrf.mxu0
        %v2414 = vadd.f32 %v2365, %v2413
        %2415 = vmatmul.bf16.gmra.mxu0 %v1757
        %v2416 = vpop.f32.mrf.mxu0
        %v2417 = vadd.f32 %v2368, %v2416
        %v2418 = vpop.f32.mrf.mxu0
        %v2419 = vadd.f32 %v2370, %v2418
        %2420 = vmatmul.bf16.gmra.mxu0 %v1759
        %v2421 = vpop.f32.mrf.mxu0
        %v2422 = vadd.f32 %v2373, %v2421
        %v2423 = vpop.f32.mrf.mxu0
        %v2424 = vadd.f32 %v2375, %v2423
        %2425 = vmatmul.bf16.gmra.mxu0 %v1761
        %v2426 = vpop.f32.mrf.mxu0
        %v2427 = vadd.f32 %v2378, %v2426
        %v2428 = vpop.f32.mrf.mxu0
        %v2429 = vadd.f32 %v2380, %v2428
        %2430 = vmatmul.bf16.gmra.mxu0 %v1763
        %v2431 = vpop.f32.mrf.mxu0
        %v2432 = vadd.f32 %v2383, %v2431
        %v2433 = vpop.f32.mrf.mxu0
        %v2434 = vadd.f32 %v2385, %v2433
        %2435 = vmatmul.bf16.gmra.mxu0 %v1765
        %v2436 = vpop.f32.mrf.mxu0
        %v2437 = vadd.f32 %v2388, %v2436
        %v2438 = vpop.f32.mrf.mxu0
        %v2439 = vadd.f32 %v2390, %v2438
        %2440 = vmatmul.bf16.gmra.mxu0 %v1767
        %v2441 = vpop.f32.mrf.mxu0
        %v2442 = vadd.f32 %v2393, %v2441
        %v2443 = vpop.f32.mrf.mxu0
        %v2444 = vadd.f32 %v2395, %v2443
        %2445 = vdwg.mxu0
        %2446 = vmatpush.bf16.msra.mxu0 %v2055
        %2447 = vmatpush.bf16.msra.mxu0 %v2051
        %2448 = vmatpush.bf16.msra.mxu0 %v2047
        %2449 = vmatpush.bf16.msra.mxu0 %v2043
        %2450 = vmatpush.bf16.msra.mxu0 %v2039
        %2451 = vmatpush.bf16.msra.mxu0 %v2035
        %2452 = vmatpush.bf16.msra.mxu0 %v2031
        %2453 = vmatpush.bf16.msra.mxu0 %v2027
        %2454 = vmatmul.bf16.gmra.mxu0 %v1752
        %v2455 = vpop.f32.mrf.mxu0
        %v2456 = vadd.f32 0.0, %v2455
        %v2457 = vpop.f32.mrf.mxu0
        %v2458 = vadd.f32 0.0, %v2457
        %2459 = vmatmul.bf16.gmra.mxu0 %v1754
        %v2460 = vpop.f32.mrf.mxu0
        %v2461 = vadd.f32 0.0, %v2460
        %v2462 = vpop.f32.mrf.mxu0
        %v2463 = vadd.f32 0.0, %v2462
        %2464 = vmatmul.bf16.gmra.mxu0 %v1756
        %v2465 = vpop.f32.mrf.mxu0
        %v2466 = vadd.f32 0.0, %v2465
        %v2467 = vpop.f32.mrf.mxu0
        %v2468 = vadd.f32 0.0, %v2467
        %2469 = vmatmul.bf16.gmra.mxu0 %v1758
        %v2470 = vpop.f32.mrf.mxu0
        %v2471 = vadd.f32 0.0, %v2470
        %v2472 = vpop.f32.mrf.mxu0
        %v2473 = vadd.f32 0.0, %v2472
        %2474 = vmatmul.bf16.gmra.mxu0 %v1760
        %v2475 = vpop.f32.mrf.mxu0
        %v2476 = vadd.f32 0.0, %v2475
        %v2477 = vpop.f32.mrf.mxu0
        %v2478 = vadd.f32 0.0, %v2477
        %2479 = vmatmul.bf16.gmra.mxu0 %v1762
        %v2480 = vpop.f32.mrf.mxu0
        %v2481 = vadd.f32 0.0, %v2480
        %v2482 = vpop.f32.mrf.mxu0
        %v2483 = vadd.f32 0.0, %v2482
        %2484 = vmatmul.bf16.gmra.mxu0 %v1764
        %v2485 = vpop.f32.mrf.mxu0
        %v2486 = vadd.f32 0.0, %v2485
        %v2487 = vpop.f32.mrf.mxu0
        %v2488 = vadd.f32 0.0, %v2487
        %2489 = vmatmul.bf16.gmra.mxu0 %v1766
        %v2490 = vpop.f32.mrf.mxu0
        %v2491 = vadd.f32 0.0, %v2490
        %v2492 = vpop.f32.mrf.mxu0
        %v2493 = vadd.f32 0.0, %v2492
        %2494 = vdwg.mxu0
        %2495 = vmatpush.bf16.msra.mxu0 %v2087
        %2496 = vmatpush.bf16.msra.mxu0 %v2083
        %2497 = vmatpush.bf16.msra.mxu0 %v2079
        %2498 = vmatpush.bf16.msra.mxu0 %v2075
        %2499 = vmatpush.bf16.msra.mxu0 %v2071
        %2500 = vmatpush.bf16.msra.mxu0 %v2067
        %2501 = vmatpush.bf16.msra.mxu0 %v2063
        %2502 = vmatpush.bf16.msra.mxu0 %v2059
        %2503 = vmatmul.bf16.gmra.mxu0 %v1753
        %v2504 = vpop.f32.mrf.mxu0
        %v2505 = vadd.f32 %v2456, %v2504
        %v2506 = vpop.f32.mrf.mxu0
        %v2507 = vadd.f32 %v2458, %v2506
        %2508 = vmatmul.bf16.gmra.mxu0 %v1755
        %v2509 = vpop.f32.mrf.mxu0
        %v2510 = vadd.f32 %v2461, %v2509
        %v2511 = vpop.f32.mrf.mxu0
        %v2512 = vadd.f32 %v2463, %v2511
        %2513 = vmatmul.bf16.gmra.mxu0 %v1757
        %v2514 = vpop.f32.mrf.mxu0
        %v2515 = vadd.f32 %v2466, %v2514
        %v2516 = vpop.f32.mrf.mxu0
        %v2517 = vadd.f32 %v2468, %v2516
        %2518 = vmatmul.bf16.gmra.mxu0 %v1759
        %v2519 = vpop.f32.mrf.mxu0
        %v2520 = vadd.f32 %v2471, %v2519
        %v2521 = vpop.f32.mrf.mxu0
        %v2522 = vadd.f32 %v2473, %v2521
        %2523 = vmatmul.bf16.gmra.mxu0 %v1761
        %v2524 = vpop.f32.mrf.mxu0
        %v2525 = vadd.f32 %v2476, %v2524
        %v2526 = vpop.f32.mrf.mxu0
        %v2527 = vadd.f32 %v2478, %v2526
        %2528 = vmatmul.bf16.gmra.mxu0 %v1763
        %v2529 = vpop.f32.mrf.mxu0
        %v2530 = vadd.f32 %v2481, %v2529
        %v2531 = vpop.f32.mrf.mxu0
        %v2532 = vadd.f32 %v2483, %v2531
        %2533 = vmatmul.bf16.gmra.mxu0 %v1765
        %v2534 = vpop.f32.mrf.mxu0
        %v2535 = vadd.f32 %v2486, %v2534
        %v2536 = vpop.f32.mrf.mxu0
        %v2537 = vadd.f32 %v2488, %v2536
        %2538 = vmatmul.bf16.gmra.mxu0 %v1767
        %v2539 = vpop.f32.mrf.mxu0
        %v2540 = vadd.f32 %v2491, %v2539
        %v2541 = vpop.f32.mrf.mxu0
        %v2542 = vadd.f32 %v2493, %v2541
        %2543 = vdwg.mxu0
        %v2544 = vpack.c.bf16 %v1646, %v1646
        %v2545 = vpack.c.bf16 %v1653, %v1653
        %v2546 = vpack.c.bf16 %v1660, %v1660
        %v2547 = vpack.c.bf16 %v1667, %v1667
        %v2548 = vpack.c.bf16 %v1674, %v1674
        %v2549 = vpack.c.bf16 %v1681, %v1681
        %v2550 = vpack.c.bf16 %v1688, %v1688
        %v2551 = vpack.c.bf16 %v1695, %v1695
        %v2552 = vpack.c.bf16 %v1702, %v1702
        %v2553 = vpack.c.bf16 %v1709, %v1709
        %v2554 = vpack.c.bf16 %v1716, %v1716
        %v2555 = vpack.c.bf16 %v1723, %v1723
        %v2556 = vpack.c.bf16 %v1730, %v1730
        %v2557 = vpack.c.bf16 %v1737, %v1737
        %v2558 = vpack.c.bf16 %v1744, %v1744
        %v2559 = vpack.c.bf16 %v1751, %v1751
        %v2560 = vld [vmem:[#allocation5] sm:$0xff]
        %v2561 = vld [vmem:[#allocation5 + $0x8] sm:$0xff]
        %v2562 = vld [vmem:[#allocation5 + $0x10] sm:$0xff]
        %v2563 = vld [vmem:[#allocation5 + $0x18] sm:$0xff]
        %v2564 = vld [vmem:[#allocation5 + $0x20] sm:$0xff]
        %v2565 = vld [vmem:[#allocation5 + $0x28] sm:$0xff]
        %v2566 = vld [vmem:[#allocation5 + $0x30] sm:$0xff]
        %v2567 = vld [vmem:[#allocation5 + $0x38] sm:$0xff]
        %v2568 = vld [vmem:[#allocation5 + $0x40] sm:$0xff]
        %v2569 = vld [vmem:[#allocation5 + $0x48] sm:$0xff]
        %v2570 = vld [vmem:[#allocation5 + $0x50] sm:$0xff]
        %v2571 = vld [vmem:[#allocation5 + $0x58] sm:$0xff]
        %v2572 = vld [vmem:[#allocation5 + $0x60] sm:$0xff]
        %v2573 = vld [vmem:[#allocation5 + $0x68] sm:$0xff]
        %v2574 = vld [vmem:[#allocation5 + $0x70] sm:$0xff]
        %v2575 = vld [vmem:[#allocation5 + $0x78] sm:$0xff]
        %v2576 = vld [vmem:[#allocation5 + $0x80] sm:$0xff]
        %v2577 = vld [vmem:[#allocation5 + $0x88] sm:$0xff]
        %v2578 = vld [vmem:[#allocation5 + $0x90] sm:$0xff]
        %v2579 = vld [vmem:[#allocation5 + $0x98] sm:$0xff]
        %v2580 = vld [vmem:[#allocation5 + $0xa0] sm:$0xff]
        %v2581 = vld [vmem:[#allocation5 + $0xa8] sm:$0xff]
        %v2582 = vld [vmem:[#allocation5 + $0xb0] sm:$0xff]
        %v2583 = vld [vmem:[#allocation5 + $0xb8] sm:$0xff]
        %v2584 = vld [vmem:[#allocation5 + $0xc0] sm:$0xff]
        %v2585 = vld [vmem:[#allocation5 + $0xc8] sm:$0xff]
        %v2586 = vld [vmem:[#allocation5 + $0xd0] sm:$0xff]
        %v2587 = vld [vmem:[#allocation5 + $0xd8] sm:$0xff]
        %v2588 = vld [vmem:[#allocation5 + $0xe0] sm:$0xff]
        %v2589 = vld [vmem:[#allocation5 + $0xe8] sm:$0xff]
        %v2590 = vld [vmem:[#allocation5 + $0xf0] sm:$0xff]
        %v2591 = vld [vmem:[#allocation5 + $0xf8] sm:$0xff]
        %v2592 = vld [vmem:[#allocation5 + $0x100] sm:$0xff]
        %v2593 = vld [vmem:[#allocation5 + $0x108] sm:$0xff]
        %v2594 = vld [vmem:[#allocation5 + $0x110] sm:$0xff]
        %v2595 = vld [vmem:[#allocation5 + $0x118] sm:$0xff]
        %v2596 = vld [vmem:[#allocation5 + $0x120] sm:$0xff]
        %v2597 = vld [vmem:[#allocation5 + $0x128] sm:$0xff]
        %v2598 = vld [vmem:[#allocation5 + $0x130] sm:$0xff]
        %v2599 = vld [vmem:[#allocation5 + $0x138] sm:$0xff]
        %v2600 = vld [vmem:[#allocation5 + $0x140] sm:$0xff]
        %v2601 = vld [vmem:[#allocation5 + $0x148] sm:$0xff]
        %v2602 = vld [vmem:[#allocation5 + $0x150] sm:$0xff]
        %v2603 = vld [vmem:[#allocation5 + $0x158] sm:$0xff]
        %v2604 = vld [vmem:[#allocation5 + $0x160] sm:$0xff]
        %v2605 = vld [vmem:[#allocation5 + $0x168] sm:$0xff]
        %v2606 = vld [vmem:[#allocation5 + $0x170] sm:$0xff]
        %v2607 = vld [vmem:[#allocation5 + $0x178] sm:$0xff]
        %v2608 = vld [vmem:[#allocation5 + $0x180] sm:$0xff]
        %v2609 = vld [vmem:[#allocation5 + $0x188] sm:$0xff]
        %v2610 = vld [vmem:[#allocation5 + $0x190] sm:$0xff]
        %v2611 = vld [vmem:[#allocation5 + $0x198] sm:$0xff]
        %v2612 = vld [vmem:[#allocation5 + $0x1a0] sm:$0xff]
        %v2613 = vld [vmem:[#allocation5 + $0x1a8] sm:$0xff]
        %v2614 = vld [vmem:[#allocation5 + $0x1b0] sm:$0xff]
        %v2615 = vld [vmem:[#allocation5 + $0x1b8] sm:$0xff]
        %v2616 = vld [vmem:[#allocation5 + $0x1c0] sm:$0xff]
        %v2617 = vld [vmem:[#allocation5 + $0x1c8] sm:$0xff]
        %v2618 = vld [vmem:[#allocation5 + $0x1d0] sm:$0xff]
        %v2619 = vld [vmem:[#allocation5 + $0x1d8] sm:$0xff]
        %v2620 = vld [vmem:[#allocation5 + $0x1e0] sm:$0xff]
        %v2621 = vld [vmem:[#allocation5 + $0x1e8] sm:$0xff]
        %v2622 = vld [vmem:[#allocation5 + $0x1f0] sm:$0xff]
        %v2623 = vld [vmem:[#allocation5 + $0x1f8] sm:$0xff]
        %v2640 = vunpack.c.l.b16 %v2544
        %v2641 = vunpack.c.l.b16 %v2545
        %v2642 = vunpack.c.l.b16 %v2546
        %v2643 = vunpack.c.l.b16 %v2547
        %v2644 = vunpack.c.l.b16 %v2548
        %v2645 = vunpack.c.l.b16 %v2549
        %v2646 = vunpack.c.l.b16 %v2550
        %v2647 = vunpack.c.l.b16 %v2551
        %v2648 = vunpack.c.l.b16 %v2552
        %v2649 = vunpack.c.l.b16 %v2553
        %v2650 = vunpack.c.l.b16 %v2554
        %v2651 = vunpack.c.l.b16 %v2555
        %v2652 = vunpack.c.l.b16 %v2556
        %v2653 = vunpack.c.l.b16 %v2557
        %v2654 = vunpack.c.l.b16 %v2558
        %v2655 = vunpack.c.l.b16 %v2559
        %vm2656 = vcmask 1041409
        %v2657 = vsel %vm2656, %v2642, %v2640
        %vm2658 = vcmask 1042434
        %v2659 = vsel %vm2658, %v2644, %v2657
        %vm2660 = vcmask 1043459
        %v2661 = vsel %vm2660, %v2646, %v2659
        %vm2662 = vcmask 1044484
        %v2663 = vsel %vm2662, %v2648, %v2661
        %vm2664 = vcmask 1045509
        %v2665 = vsel %vm2664, %v2650, %v2663
        %vm2666 = vcmask 1046534
        %v2667 = vsel %vm2666, %v2652, %v2665
        %vm2668 = vcmask 1047559
        %v2669 = vsel %vm2668, %v2654, %v2667
        %v2670 = vsel %vm2656, %v2643, %v2641
        %v2671 = vsel %vm2658, %v2645, %v2670
        %v2672 = vsel %vm2660, %v2647, %v2671
        %v2673 = vsel %vm2662, %v2649, %v2672
        %v2674 = vsel %vm2664, %v2651, %v2673
        %v2675 = vsel %vm2666, %v2653, %v2674
        %v2676 = vsel %vm2668, %v2655, %v2675
        %v2677 = vpack.c.b16 %v2669, %v2669
        %v2678 = vpack.c.b16 %v2676, %v2676
        %v2745 = vunpack.c.l.b16 %v2560
        %v2746 = vunpack.c.h.b16 %v2560
        %v2747 = vunpack.c.l.b16 %v2561
        %v2748 = vunpack.c.h.b16 %v2561
        %v2749 = vunpack.c.l.b16 %v2562
        %v2750 = vunpack.c.h.b16 %v2562
        %v2751 = vunpack.c.l.b16 %v2563
        %v2752 = vunpack.c.h.b16 %v2563
        %v2753 = vunpack.c.l.b16 %v2564
        %v2754 = vunpack.c.h.b16 %v2564
        %v2755 = vunpack.c.l.b16 %v2565
        %v2756 = vunpack.c.h.b16 %v2565
        %v2757 = vunpack.c.l.b16 %v2566
        %v2758 = vunpack.c.h.b16 %v2566
        %v2759 = vunpack.c.l.b16 %v2567
        %v2760 = vunpack.c.h.b16 %v2567
        %v2761 = vunpack.c.l.b16 %v2568
        %v2762 = vunpack.c.h.b16 %v2568
        %v2763 = vunpack.c.l.b16 %v2569
        %v2764 = vunpack.c.h.b16 %v2569
        %v2765 = vunpack.c.l.b16 %v2570
        %v2766 = vunpack.c.h.b16 %v2570
        %v2767 = vunpack.c.l.b16 %v2571
        %v2768 = vunpack.c.h.b16 %v2571
        %v2769 = vunpack.c.l.b16 %v2572
        %v2770 = vunpack.c.h.b16 %v2572
        %v2771 = vunpack.c.l.b16 %v2573
        %v2772 = vunpack.c.h.b16 %v2573
        %v2773 = vunpack.c.l.b16 %v2574
        %v2774 = vunpack.c.h.b16 %v2574
        %v2775 = vunpack.c.l.b16 %v2575
        %v2776 = vunpack.c.h.b16 %v2575
        %v2777 = vunpack.c.l.b16 %v2576
        %v2778 = vunpack.c.h.b16 %v2576
        %v2779 = vunpack.c.l.b16 %v2577
        %v2780 = vunpack.c.h.b16 %v2577
        %v2781 = vunpack.c.l.b16 %v2578
        %v2782 = vunpack.c.h.b16 %v2578
        %v2783 = vunpack.c.l.b16 %v2579
        %v2784 = vunpack.c.h.b16 %v2579
        %v2785 = vunpack.c.l.b16 %v2580
        %v2786 = vunpack.c.h.b16 %v2580
        %v2787 = vunpack.c.l.b16 %v2581
        %v2788 = vunpack.c.h.b16 %v2581
        %v2789 = vunpack.c.l.b16 %v2582
        %v2790 = vunpack.c.h.b16 %v2582
        %v2791 = vunpack.c.l.b16 %v2583
        %v2792 = vunpack.c.h.b16 %v2583
        %v2793 = vunpack.c.l.b16 %v2584
        %v2794 = vunpack.c.h.b16 %v2584
        %v2795 = vunpack.c.l.b16 %v2585
        %v2796 = vunpack.c.h.b16 %v2585
        %v2797 = vunpack.c.l.b16 %v2586
        %v2798 = vunpack.c.h.b16 %v2586
        %v2799 = vunpack.c.l.b16 %v2587
        %v2800 = vunpack.c.h.b16 %v2587
        %v2801 = vunpack.c.l.b16 %v2588
        %v2802 = vunpack.c.h.b16 %v2588
        %v2803 = vunpack.c.l.b16 %v2589
        %v2804 = vunpack.c.h.b16 %v2589
        %v2805 = vunpack.c.l.b16 %v2590
        %v2806 = vunpack.c.h.b16 %v2590
        %v2807 = vunpack.c.l.b16 %v2591
        %v2808 = vunpack.c.h.b16 %v2591
        %v2809 = vunpack.c.l.b16 %v2592
        %v2810 = vunpack.c.h.b16 %v2592
        %v2811 = vunpack.c.l.b16 %v2593
        %v2812 = vunpack.c.h.b16 %v2593
        %v2813 = vunpack.c.l.b16 %v2594
        %v2814 = vunpack.c.h.b16 %v2594
        %v2815 = vunpack.c.l.b16 %v2595
        %v2816 = vunpack.c.h.b16 %v2595
        %v2817 = vunpack.c.l.b16 %v2596
        %v2818 = vunpack.c.h.b16 %v2596
        %v2819 = vunpack.c.l.b16 %v2597
        %v2820 = vunpack.c.h.b16 %v2597
        %v2821 = vunpack.c.l.b16 %v2598
        %v2822 = vunpack.c.h.b16 %v2598
        %v2823 = vunpack.c.l.b16 %v2599
        %v2824 = vunpack.c.h.b16 %v2599
        %v2825 = vunpack.c.l.b16 %v2600
        %v2826 = vunpack.c.h.b16 %v2600
        %v2827 = vunpack.c.l.b16 %v2601
        %v2828 = vunpack.c.h.b16 %v2601
        %v2829 = vunpack.c.l.b16 %v2602
        %v2830 = vunpack.c.h.b16 %v2602
        %v2831 = vunpack.c.l.b16 %v2603
        %v2832 = vunpack.c.h.b16 %v2603
        %v2833 = vunpack.c.l.b16 %v2604
        %v2834 = vunpack.c.h.b16 %v2604
        %v2835 = vunpack.c.l.b16 %v2605
        %v2836 = vunpack.c.h.b16 %v2605
        %v2837 = vunpack.c.l.b16 %v2606
        %v2838 = vunpack.c.h.b16 %v2606
        %v2839 = vunpack.c.l.b16 %v2607
        %v2840 = vunpack.c.h.b16 %v2607
        %v2841 = vunpack.c.l.b16 %v2608
        %v2842 = vunpack.c.h.b16 %v2608
        %v2843 = vunpack.c.l.b16 %v2609
        %v2844 = vunpack.c.h.b16 %v2609
        %v2845 = vunpack.c.l.b16 %v2610
        %v2846 = vunpack.c.h.b16 %v2610
        %v2847 = vunpack.c.l.b16 %v2611
        %v2848 = vunpack.c.h.b16 %v2611
        %v2849 = vunpack.c.l.b16 %v2612
        %v2850 = vunpack.c.h.b16 %v2612
        %v2851 = vunpack.c.l.b16 %v2613
        %v2852 = vunpack.c.h.b16 %v2613
        %v2853 = vunpack.c.l.b16 %v2614
        %v2854 = vunpack.c.h.b16 %v2614
        %v2855 = vunpack.c.l.b16 %v2615
        %v2856 = vunpack.c.h.b16 %v2615
        %v2857 = vunpack.c.l.b16 %v2616
        %v2858 = vunpack.c.h.b16 %v2616
        %v2859 = vunpack.c.l.b16 %v2617
        %v2860 = vunpack.c.h.b16 %v2617
        %v2861 = vunpack.c.l.b16 %v2618
        %v2862 = vunpack.c.h.b16 %v2618
        %v2863 = vunpack.c.l.b16 %v2619
        %v2864 = vunpack.c.h.b16 %v2619
        %v2865 = vunpack.c.l.b16 %v2620
        %v2866 = vunpack.c.h.b16 %v2620
        %v2867 = vunpack.c.l.b16 %v2621
        %v2868 = vunpack.c.h.b16 %v2621
        %v2869 = vunpack.c.l.b16 %v2622
        %v2870 = vunpack.c.h.b16 %v2622
        %v2871 = vunpack.c.l.b16 %v2623
        %v2872 = vunpack.c.h.b16 %v2623
        %v2873 = vpack.c.b16 %v2749, %v2745
        %v2874 = vpack.c.b16 %v2750, %v2746
        %v2875 = vpack.c.b16 %v2751, %v2747
        %v2876 = vpack.c.b16 %v2752, %v2748
        %v2877 = vpack.c.b16 %v2757, %v2753
        %v2878 = vpack.c.b16 %v2758, %v2754
        %v2879 = vpack.c.b16 %v2759, %v2755
        %v2880 = vpack.c.b16 %v2760, %v2756
        %v2881 = vpack.c.b16 %v2765, %v2761
        %v2882 = vpack.c.b16 %v2766, %v2762
        %v2883 = vpack.c.b16 %v2767, %v2763
        %v2884 = vpack.c.b16 %v2768, %v2764
        %v2885 = vpack.c.b16 %v2773, %v2769
        %v2886 = vpack.c.b16 %v2774, %v2770
        %v2887 = vpack.c.b16 %v2775, %v2771
        %v2888 = vpack.c.b16 %v2776, %v2772
        %v2889 = vpack.c.b16 %v2781, %v2777
        %v2890 = vpack.c.b16 %v2782, %v2778
        %v2891 = vpack.c.b16 %v2783, %v2779
        %v2892 = vpack.c.b16 %v2784, %v2780
        %v2893 = vpack.c.b16 %v2789, %v2785
        %v2894 = vpack.c.b16 %v2790, %v2786
        %v2895 = vpack.c.b16 %v2791, %v2787
        %v2896 = vpack.c.b16 %v2792, %v2788
        %v2897 = vpack.c.b16 %v2797, %v2793
        %v2898 = vpack.c.b16 %v2798, %v2794
        %v2899 = vpack.c.b16 %v2799, %v2795
        %v2900 = vpack.c.b16 %v2800, %v2796
        %v2901 = vpack.c.b16 %v2805, %v2801
        %v2902 = vpack.c.b16 %v2806, %v2802
        %v2903 = vpack.c.b16 %v2807, %v2803
        %v2904 = vpack.c.b16 %v2808, %v2804
        %v2905 = vpack.c.b16 %v2813, %v2809
        %v2906 = vpack.c.b16 %v2814, %v2810
        %v2907 = vpack.c.b16 %v2815, %v2811
        %v2908 = vpack.c.b16 %v2816, %v2812
        %v2909 = vpack.c.b16 %v2821, %v2817
        %v2910 = vpack.c.b16 %v2822, %v2818
        %v2911 = vpack.c.b16 %v2823, %v2819
        %v2912 = vpack.c.b16 %v2824, %v2820
        %v2913 = vpack.c.b16 %v2829, %v2825
        %v2914 = vpack.c.b16 %v2830, %v2826
        %v2915 = vpack.c.b16 %v2831, %v2827
        %v2916 = vpack.c.b16 %v2832, %v2828
        %v2917 = vpack.c.b16 %v2837, %v2833
        %v2918 = vpack.c.b16 %v2838, %v2834
        %v2919 = vpack.c.b16 %v2839, %v2835
        %v2920 = vpack.c.b16 %v2840, %v2836
        %v2921 = vpack.c.b16 %v2845, %v2841
        %v2922 = vpack.c.b16 %v2846, %v2842
        %v2923 = vpack.c.b16 %v2847, %v2843
        %v2924 = vpack.c.b16 %v2848, %v2844
        %v2925 = vpack.c.b16 %v2853, %v2849
        %v2926 = vpack.c.b16 %v2854, %v2850
        %v2927 = vpack.c.b16 %v2855, %v2851
        %v2928 = vpack.c.b16 %v2856, %v2852
        %v2929 = vpack.c.b16 %v2861, %v2857
        %v2930 = vpack.c.b16 %v2862, %v2858
        %v2931 = vpack.c.b16 %v2863, %v2859
        %v2932 = vpack.c.b16 %v2864, %v2860
        %v2933 = vpack.c.b16 %v2869, %v2865
        %v2934 = vpack.c.b16 %v2870, %v2866
        %v2935 = vpack.c.b16 %v2871, %v2867
        %v2936 = vpack.c.b16 %v2872, %v2868
        %3001 = vmatpush.bf16.msra.mxu0 %v2901
        %3002 = vmatpush.bf16.msra.mxu0 %v2897
        %3003 = vmatpush.bf16.msra.mxu0 %v2893
        %3004 = vmatpush.bf16.msra.mxu0 %v2889
        %3005 = vmatpush.bf16.msra.mxu0 %v2885
        %3006 = vmatpush.bf16.msra.mxu0 %v2881
        %3007 = vmatpush.bf16.msra.mxu0 %v2877
        %3008 = vmatpush.bf16.msra.mxu0 %v2873
        %3009 = vmatmul.bf16.gmra.mxu0 %v2677
        %v3010 = vpop.f32.mrf.mxu0
        %v3011 = vadd.f32 0.0, %v3010
        %v3012 = vpop.f32.mrf.mxu0
        %3013 = vdwg.mxu0
        %3014 = vmatpush.bf16.msra.mxu0 %v2933
        %3015 = vmatpush.bf16.msra.mxu0 %v2929
        %3016 = vmatpush.bf16.msra.mxu0 %v2925
        %3017 = vmatpush.bf16.msra.mxu0 %v2921
        %3018 = vmatpush.bf16.msra.mxu0 %v2917
        %3019 = vmatpush.bf16.msra.mxu0 %v2913
        %3020 = vmatpush.bf16.msra.mxu0 %v2909
        %3021 = vmatpush.bf16.msra.mxu0 %v2905
        %3022 = vmatmul.bf16.gmra.mxu0 %v2678
        %v3023 = vpop.f32.mrf.mxu0
        %v3024 = vadd.f32 %v3011, %v3023
        %v3025 = vpop.f32.mrf.mxu0
        %3026 = vdwg.mxu0
        %3027 = vmatpush.bf16.msra.mxu0 %v2902
        %3028 = vmatpush.bf16.msra.mxu0 %v2898
        %3029 = vmatpush.bf16.msra.mxu0 %v2894
        %3030 = vmatpush.bf16.msra.mxu0 %v2890
        %3031 = vmatpush.bf16.msra.mxu0 %v2886
        %3032 = vmatpush.bf16.msra.mxu0 %v2882
        %3033 = vmatpush.bf16.msra.mxu0 %v2878
        %3034 = vmatpush.bf16.msra.mxu0 %v2874
        %3035 = vmatmul.bf16.gmra.mxu0 %v2677
        %v3036 = vpop.f32.mrf.mxu0
        %v3037 = vadd.f32 0.0, %v3036
        %v3038 = vpop.f32.mrf.mxu0
        %3039 = vdwg.mxu0
        %3040 = vmatpush.bf16.msra.mxu0 %v2934
        %3041 = vmatpush.bf16.msra.mxu0 %v2930
        %3042 = vmatpush.bf16.msra.mxu0 %v2926
        %3043 = vmatpush.bf16.msra.mxu0 %v2922
        %3044 = vmatpush.bf16.msra.mxu0 %v2918
        %3045 = vmatpush.bf16.msra.mxu0 %v2914
        %3046 = vmatpush.bf16.msra.mxu0 %v2910
        %3047 = vmatpush.bf16.msra.mxu0 %v2906
        %3048 = vmatmul.bf16.gmra.mxu0 %v2678
        %v3049 = vpop.f32.mrf.mxu0
        %v3050 = vadd.f32 %v3037, %v3049
        %v3051 = vpop.f32.mrf.mxu0
        %3052 = vdwg.mxu0
        %3053 = vmatpush.bf16.msra.mxu0 %v2903
        %3054 = vmatpush.bf16.msra.mxu0 %v2899
        %3055 = vmatpush.bf16.msra.mxu0 %v2895
        %3056 = vmatpush.bf16.msra.mxu0 %v2891
        %3057 = vmatpush.bf16.msra.mxu0 %v2887
        %3058 = vmatpush.bf16.msra.mxu0 %v2883
        %3059 = vmatpush.bf16.msra.mxu0 %v2879
        %3060 = vmatpush.bf16.msra.mxu0 %v2875
        %3061 = vmatmul.bf16.gmra.mxu0 %v2677
        %v3062 = vpop.f32.mrf.mxu0
        %v3063 = vadd.f32 0.0, %v3062
        %v3064 = vpop.f32.mrf.mxu0
        %3065 = vdwg.mxu0
        %3066 = vmatpush.bf16.msra.mxu0 %v2935
        %3067 = vmatpush.bf16.msra.mxu0 %v2931
        %3068 = vmatpush.bf16.msra.mxu0 %v2927
        %3069 = vmatpush.bf16.msra.mxu0 %v2923
        %3070 = vmatpush.bf16.msra.mxu0 %v2919
        %3071 = vmatpush.bf16.msra.mxu0 %v2915
        %3072 = vmatpush.bf16.msra.mxu0 %v2911
        %3073 = vmatpush.bf16.msra.mxu0 %v2907
        %3074 = vmatmul.bf16.gmra.mxu0 %v2678
        %v3075 = vpop.f32.mrf.mxu0
        %v3076 = vadd.f32 %v3063, %v3075
        %v3077 = vpop.f32.mrf.mxu0
        %3078 = vdwg.mxu0
        %3079 = vmatpush.bf16.msra.mxu0 %v2904
        %3080 = vmatpush.bf16.msra.mxu0 %v2900
        %3081 = vmatpush.bf16.msra.mxu0 %v2896
        %3082 = vmatpush.bf16.msra.mxu0 %v2892
        %3083 = vmatpush.bf16.msra.mxu0 %v2888
        %3084 = vmatpush.bf16.msra.mxu0 %v2884
        %3085 = vmatpush.bf16.msra.mxu0 %v2880
        %3086 = vmatpush.bf16.msra.mxu0 %v2876
        %3087 = vmatmul.bf16.gmra.mxu0 %v2677
        %v3088 = vpop.f32.mrf.mxu0
        %v3089 = vadd.f32 0.0, %v3088
        %v3090 = vpop.f32.mrf.mxu0
        %3091 = vdwg.mxu0
        %3092 = vmatpush.bf16.msra.mxu0 %v2936
        %3093 = vmatpush.bf16.msra.mxu0 %v2932
        %3094 = vmatpush.bf16.msra.mxu0 %v2928
        %3095 = vmatpush.bf16.msra.mxu0 %v2924
        %3096 = vmatpush.bf16.msra.mxu0 %v2920
        %3097 = vmatpush.bf16.msra.mxu0 %v2916
        %3098 = vmatpush.bf16.msra.mxu0 %v2912
        %3099 = vmatpush.bf16.msra.mxu0 %v2908
        %3100 = vmatmul.bf16.gmra.mxu0 %v2678
        %v3101 = vpop.f32.mrf.mxu0
        %v3102 = vadd.f32 %v3089, %v3101
        %v3103 = vpop.f32.mrf.mxu0
        %3104 = vdwg.mxu0
        %v3109 = vrot.slane %v3050, 7
        %v3110 = vrot.slane %v3076, 6
        %v3111 = vrot.slane %v3102, 5
        %vm3112 = vcmask 1040384
        %v3113 = vsel %vm3112, %v3024, %v3109
        %v3114 = vsel %vm2658, %v3110, %v3111
        %vm3115 = vcmask 1041408
        %v3116 = vsel %vm3115, %v3113, %v3114
        %v3117 = vsel %vm2656, %v3024, %v3109
        %v3118 = vsel %vm2660, %v3110, %v3111
        %vm3119 = vcmask 1042433
        %v3120 = vsel %vm3119, %v3117, %v3118
        %v3121 = vrot.slane %v3120, 1
        %v3122 = vsel %vm2658, %v3024, %v3109
        %v3123 = vsel %vm2662, %v3110, %v3111
        %vm3124 = vcmask 1043458
        %v3125 = vsel %vm3124, %v3122, %v3123
        %v3126 = vrot.slane %v3125, 2
        %v3127 = vsel %vm2660, %v3024, %v3109
        %v3128 = vsel %vm2664, %v3110, %v3111
        %vm3129 = vcmask 1044483
        %v3130 = vsel %vm3129, %v3127, %v3128
        %v3131 = vrot.slane %v3130, 3
        %v3132 = vsel %vm2662, %v3024, %v3109
        %v3133 = vsel %vm2666, %v3110, %v3111
        %vm3134 = vcmask 1045508
        %v3135 = vsel %vm3134, %v3132, %v3133
        %v3136 = vrot.slane %v3135, 4
        %v3137 = vsel %vm2664, %v3024, %v3109
        %vm3138 = vcmask 1046528
        %v3139 = vsel %vm3138, %v3111, %v3110
        %vm3140 = vcmask 1046533
        %v3141 = vsel %vm3140, %v3137, %v3139
        %v3142 = vrot.slane %v3141, 5
        %v3143 = vsel %vm2666, %v3024, %v3109
        %v3144 = vsel %vm3112, %v3110, %v3111
        %vm3145 = vcmask 1045504
        %v3146 = vsel %vm3145, %v3144, %v3143
        %v3147 = vrot.slane %v3146, 6
        %v3148 = vsel %vm3138, %v3109, %v3024
        %v3149 = vsel %vm2656, %v3110, %v3111
        %vm3150 = vcmask 1046529
        %v3151 = vsel %vm3150, %v3149, %v3148
        %v3152 = vrot.slane %v3151, 7
        %v3153 = vperm.slane %v3116, 0
        %v3154 = vperm.slane %v3116, 1
        %v3155 = vperm.slane %v3116, 2
        %v3156 = vperm.slane %v3116, 3
        %v3157 = vperm.slane %v3121, 0
        %v3158 = vperm.slane %v3121, 1
        %v3159 = vperm.slane %v3121, 2
        %v3160 = vperm.slane %v3121, 3
        %v3161 = vperm.slane %v3126, 0
        %v3162 = vperm.slane %v3126, 1
        %v3163 = vperm.slane %v3126, 2
        %v3164 = vperm.slane %v3126, 3
        %v3165 = vperm.slane %v3131, 0
        %v3166 = vperm.slane %v3131, 1
        %v3167 = vperm.slane %v3131, 2
        %v3168 = vperm.slane %v3131, 3
        %v3169 = vperm.slane %v3136, 0
        %v3170 = vperm.slane %v3136, 1
        %v3171 = vperm.slane %v3136, 2
        %v3172 = vperm.slane %v3136, 3
        %v3173 = vperm.slane %v3142, 0
        %v3174 = vperm.slane %v3142, 1
        %v3175 = vperm.slane %v3142, 2
        %v3176 = vperm.slane %v3142, 3
        %v3177 = vperm.slane %v3147, 0
        %v3178 = vperm.slane %v3147, 1
        %v3179 = vperm.slane %v3147, 2
        %v3180 = vperm.slane %v3147, 3
        %v3181 = vperm.slane %v3152, 0
        %v3182 = vperm.slane %v3152, 1
        %v3183 = vperm.slane %v3152, 2
        %v3184 = vperm.slane %v3152, 3
        %v3217 = vadd.f32 %v2211, %v3153
        %v3218 = vadd.f32 %v2309, %v3154
        %v3219 = vadd.f32 %v2407, %v3155
        %v3220 = vadd.f32 %v2505, %v3156
        %v3221 = vadd.f32 %v2213, %v3153
        %v3222 = vadd.f32 %v2311, %v3154
        %v3223 = vadd.f32 %v2409, %v3155
        %v3224 = vadd.f32 %v2507, %v3156
        %v3225 = vadd.f32 %v2216, %v3157
        %v3226 = vadd.f32 %v2314, %v3158
        %v3227 = vadd.f32 %v2412, %v3159
        %v3228 = vadd.f32 %v2510, %v3160
        %v3229 = vadd.f32 %v2218, %v3157
        %v3230 = vadd.f32 %v2316, %v3158
        %v3231 = vadd.f32 %v2414, %v3159
        %v3232 = vadd.f32 %v2512, %v3160
        %v3233 = vadd.f32 %v2221, %v3161
        %v3234 = vadd.f32 %v2319, %v3162
        %v3235 = vadd.f32 %v2417, %v3163
        %v3236 = vadd.f32 %v2515, %v3164
        %v3237 = vadd.f32 %v2223, %v3161
        %v3238 = vadd.f32 %v2321, %v3162
        %v3239 = vadd.f32 %v2419, %v3163
        %v3240 = vadd.f32 %v2517, %v3164
        %v3241 = vadd.f32 %v2226, %v3165
        %v3242 = vadd.f32 %v2324, %v3166
        %v3243 = vadd.f32 %v2422, %v3167
        %v3244 = vadd.f32 %v2520, %v3168
        %v3245 = vadd.f32 %v2228, %v3165
        %v3246 = vadd.f32 %v2326, %v3166
        %v3247 = vadd.f32 %v2424, %v3167
        %v3248 = vadd.f32 %v2522, %v3168
        %v3249 = vadd.f32 %v2231, %v3169
        %v3250 = vadd.f32 %v2329, %v3170
        %v3251 = vadd.f32 %v2427, %v3171
        %v3252 = vadd.f32 %v2525, %v3172
        %v3253 = vadd.f32 %v2233, %v3169
        %v3254 = vadd.f32 %v2331, %v3170
        %v3255 = vadd.f32 %v2429, %v3171
        %v3256 = vadd.f32 %v2527, %v3172
        %v3257 = vadd.f32 %v2236, %v3173
        %v3258 = vadd.f32 %v2334, %v3174
        %v3259 = vadd.f32 %v2432, %v3175
        %v3260 = vadd.f32 %v2530, %v3176
        %v3261 = vadd.f32 %v2238, %v3173
        %v3262 = vadd.f32 %v2336, %v3174
        %v3263 = vadd.f32 %v2434, %v3175
        %v3264 = vadd.f32 %v2532, %v3176
        %v3265 = vadd.f32 %v2241, %v3177
        %v3266 = vadd.f32 %v2339, %v3178
        %v3267 = vadd.f32 %v2437, %v3179
        %v3268 = vadd.f32 %v2535, %v3180
        %v3269 = vadd.f32 %v2243, %v3177
        %v3270 = vadd.f32 %v2341, %v3178
        %v3271 = vadd.f32 %v2439, %v3179
        %v3272 = vadd.f32 %v2537, %v3180
        %v3273 = vadd.f32 %v2246, %v3181
        %v3274 = vadd.f32 %v2344, %v3182
        %v3275 = vadd.f32 %v2442, %v3183
        %v3276 = vadd.f32 %v2540, %v3184
        %v3277 = vadd.f32 %v2248, %v3181
        %v3278 = vadd.f32 %v2346, %v3182
        %v3279 = vadd.f32 %v2444, %v3183
        %v3280 = vadd.f32 %v2542, %v3184
        %v3281 = vld [vmem:[%s10] sm:$0xf]
        %v3283 = vperm.slane %v3281, 0
        %v3284 = vperm.slane %v3281, 1
        %v3285 = vperm.slane %v3281, 2
        %v3286 = vperm.slane %v3281, 3
        %v3291 = vadd.f32 %v3217, %v3283
        %v3292 = vadd.f32 %v3218, %v3284
        %v3293 = vadd.f32 %v3219, %v3285
        %v3294 = vadd.f32 %v3220, %v3286
        %v3295 = vadd.f32 %v3221, %v3283
        %v3296 = vadd.f32 %v3222, %v3284
        %v3297 = vadd.f32 %v3223, %v3285
        %v3298 = vadd.f32 %v3224, %v3286
        %v3299 = vadd.f32 %v3225, %v3283
        %v3300 = vadd.f32 %v3226, %v3284
        %v3301 = vadd.f32 %v3227, %v3285
        %v3302 = vadd.f32 %v3228, %v3286
        %v3303 = vadd.f32 %v3229, %v3283
        %v3304 = vadd.f32 %v3230, %v3284
        %v3305 = vadd.f32 %v3231, %v3285
        %v3306 = vadd.f32 %v3232, %v3286
        %v3307 = vadd.f32 %v3233, %v3283
        %v3308 = vadd.f32 %v3234, %v3284
        %v3309 = vadd.f32 %v3235, %v3285
        %v3310 = vadd.f32 %v3236, %v3286
        %v3311 = vadd.f32 %v3237, %v3283
        %v3312 = vadd.f32 %v3238, %v3284
        %v3313 = vadd.f32 %v3239, %v3285
        %v3314 = vadd.f32 %v3240, %v3286
        %v3315 = vadd.f32 %v3241, %v3283
        %v3316 = vadd.f32 %v3242, %v3284
        %v3317 = vadd.f32 %v3243, %v3285
        %v3318 = vadd.f32 %v3244, %v3286
        %v3319 = vadd.f32 %v3245, %v3283
        %v3320 = vadd.f32 %v3246, %v3284
        %v3321 = vadd.f32 %v3247, %v3285
        %v3322 = vadd.f32 %v3248, %v3286
        %v3323 = vadd.f32 %v3249, %v3283
        %v3324 = vadd.f32 %v3250, %v3284
        %v3325 = vadd.f32 %v3251, %v3285
        %v3326 = vadd.f32 %v3252, %v3286
        %v3327 = vadd.f32 %v3253, %v3283
        %v3328 = vadd.f32 %v3254, %v3284
        %v3329 = vadd.f32 %v3255, %v3285
        %v3330 = vadd.f32 %v3256, %v3286
        %v3331 = vadd.f32 %v3257, %v3283
        %v3332 = vadd.f32 %v3258, %v3284
        %v3333 = vadd.f32 %v3259, %v3285
        %v3334 = vadd.f32 %v3260, %v3286
        %v3335 = vadd.f32 %v3261, %v3283
        %v3336 = vadd.f32 %v3262, %v3284
        %v3337 = vadd.f32 %v3263, %v3285
        %v3338 = vadd.f32 %v3264, %v3286
        %v3339 = vadd.f32 %v3265, %v3283
        %v3340 = vadd.f32 %v3266, %v3284
        %v3341 = vadd.f32 %v3267, %v3285
        %v3342 = vadd.f32 %v3268, %v3286
        %v3343 = vadd.f32 %v3269, %v3283
        %v3344 = vadd.f32 %v3270, %v3284
        %v3345 = vadd.f32 %v3271, %v3285
        %v3346 = vadd.f32 %v3272, %v3286
        %v3347 = vadd.f32 %v3273, %v3283
        %v3348 = vadd.f32 %v3274, %v3284
        %v3349 = vadd.f32 %v3275, %v3285
        %v3350 = vadd.f32 %v3276, %v3286
        %v3351 = vadd.f32 %v3277, %v3283
        %v3352 = vadd.f32 %v3278, %v3284
        %v3353 = vadd.f32 %v3279, %v3285
        %v3354 = vadd.f32 %v3280, %v3286
        %v3355 = vld [vmem:[%s11] sm:$0xf]
        %v3356 = vld [vmem:[%s12] sm:$0xf]
        %v3357 = vadd.f32 %v3291, %v3292
        %v3358 = vadd.f32 %v3357, %v3293
        %v3359 = vadd.f32 %v3358, %v3294
        %3360 = vadd.xlane.f32.xlu0 %v3359
        %v3361 = vpop.xlane.xlu0 %3360
        %v3362 = vadd.f32 %v3295, %v3296
        %v3363 = vadd.f32 %v3362, %v3297
        %v3364 = vadd.f32 %v3363, %v3298
        %3365 = vadd.xlane.f32.xlu0 %v3364
        %v3366 = vpop.xlane.xlu0 %3365
        %v3367 = vadd.f32 %v3299, %v3300
        %v3368 = vadd.f32 %v3367, %v3301
        %v3369 = vadd.f32 %v3368, %v3302
        %3370 = vadd.xlane.f32.xlu0 %v3369
        %v3371 = vpop.xlane.xlu0 %3370
        %v3372 = vadd.f32 %v3303, %v3304
        %v3373 = vadd.f32 %v3372, %v3305
        %v3374 = vadd.f32 %v3373, %v3306
        %3375 = vadd.xlane.f32.xlu0 %v3374
        %v3376 = vpop.xlane.xlu0 %3375
        %v3377 = vadd.f32 %v3307, %v3308
        %v3378 = vadd.f32 %v3377, %v3309
        %v3379 = vadd.f32 %v3378, %v3310
        %3380 = vadd.xlane.f32.xlu0 %v3379
        %v3381 = vpop.xlane.xlu0 %3380
        %v3382 = vadd.f32 %v3311, %v3312
        %v3383 = vadd.f32 %v3382, %v3313
        %v3384 = vadd.f32 %v3383, %v3314
        %3385 = vadd.xlane.f32.xlu0 %v3384
        %v3386 = vpop.xlane.xlu0 %3385
        %v3387 = vadd.f32 %v3315, %v3316
        %v3388 = vadd.f32 %v3387, %v3317
        %v3389 = vadd.f32 %v3388, %v3318
        %3390 = vadd.xlane.f32.xlu0 %v3389
        %v3391 = vpop.xlane.xlu0 %3390
        %v3392 = vadd.f32 %v3319, %v3320
        %v3393 = vadd.f32 %v3392, %v3321
        %v3394 = vadd.f32 %v3393, %v3322
        %3395 = vadd.xlane.f32.xlu0 %v3394
        %v3396 = vpop.xlane.xlu0 %3395
        %v3397 = vadd.f32 %v3323, %v3324
        %v3398 = vadd.f32 %v3397, %v3325
        %v3399 = vadd.f32 %v3398, %v3326
        %3400 = vadd.xlane.f32.xlu0 %v3399
        %v3401 = vpop.xlane.xlu0 %3400
        %v3402 = vadd.f32 %v3327, %v3328
        %v3403 = vadd.f32 %v3402, %v3329
        %v3404 = vadd.f32 %v3403, %v3330
        %3405 = vadd.xlane.f32.xlu0 %v3404
        %v3406 = vpop.xlane.xlu0 %3405
        %v3407 = vadd.f32 %v3331, %v3332
        %v3408 = vadd.f32 %v3407, %v3333
        %v3409 = vadd.f32 %v3408, %v3334
        %3410 = vadd.xlane.f32.xlu0 %v3409
        %v3411 = vpop.xlane.xlu0 %3410
        %v3412 = vadd.f32 %v3335, %v3336
        %v3413 = vadd.f32 %v3412, %v3337
        %v3414 = vadd.f32 %v3413, %v3338
        %3415 = vadd.xlane.f32.xlu0 %v3414
        %v3416 = vpop.xlane.xlu0 %3415
        %v3417 = vadd.f32 %v3339, %v3340
        %v3418 = vadd.f32 %v3417, %v3341
        %v3419 = vadd.f32 %v3418, %v3342
        %3420 = vadd.xlane.f32.xlu0 %v3419
        %v3421 = vpop.xlane.xlu0 %3420
        %v3422 = vadd.f32 %v3343, %v3344
        %v3423 = vadd.f32 %v3422, %v3345
        %v3424 = vadd.f32 %v3423, %v3346
        %3425 = vadd.xlane.f32.xlu0 %v3424
        %v3426 = vpop.xlane.xlu0 %3425
        %v3427 = vadd.f32 %v3347, %v3348
        %v3428 = vadd.f32 %v3427, %v3349
        %v3429 = vadd.f32 %v3428, %v3350
        %3430 = vadd.xlane.f32.xlu0 %v3429
        %v3431 = vpop.xlane.xlu0 %3430
        %v3432 = vadd.f32 %v3351, %v3352
        %v3433 = vadd.f32 %v3432, %v3353
        %v3434 = vadd.f32 %v3433, %v3354
        %3435 = vadd.xlane.f32.xlu0 %v3434
        %v3436 = vpop.xlane.xlu0 %3435
        %v3437 = vrcp.pop 512.0
        %v3438 = vmul.f32 512.0, %v3437
        %v3439 = vsub.f32 1.0, %v3438
        %v3440 = vmul.f32 %v3437, %v3439
        %v3441 = vadd.f32 %v3437, %v3440
        %vm3442 = vweird.f32 %v3437
        %v3443 = vsel %vm3442, %v3437, %v3441
        %v3444 = vmul.f32 %v3361, %v3443
        %v3445 = vmul.f32 %v3366, %v3443
        %v3446 = vmul.f32 %v3371, %v3443
        %v3447 = vmul.f32 %v3376, %v3443
        %v3448 = vmul.f32 %v3381, %v3443
        %v3449 = vmul.f32 %v3386, %v3443
        %v3450 = vmul.f32 %v3391, %v3443
        %v3451 = vmul.f32 %v3396, %v3443
        %v3452 = vmul.f32 %v3401, %v3443
        %v3453 = vmul.f32 %v3406, %v3443
        %v3454 = vmul.f32 %v3411, %v3443
        %v3455 = vmul.f32 %v3416, %v3443
        %v3456 = vmul.f32 %v3421, %v3443
        %v3457 = vmul.f32 %v3426, %v3443
        %v3458 = vmul.f32 %v3431, %v3443
        %v3459 = vmul.f32 %v3436, %v3443
        %v3460 = vmul.f32 %v3291, %v3291
        %v3461 = vmul.f32 %v3292, %v3292
        %v3462 = vmul.f32 %v3293, %v3293
        %v3463 = vmul.f32 %v3294, %v3294
        %v3464 = vmul.f32 %v3295, %v3295
        %v3465 = vmul.f32 %v3296, %v3296
        %v3466 = vmul.f32 %v3297, %v3297
        %v3467 = vmul.f32 %v3298, %v3298
        %v3468 = vmul.f32 %v3299, %v3299
        %v3469 = vmul.f32 %v3300, %v3300
        %v3470 = vmul.f32 %v3301, %v3301
        %v3471 = vmul.f32 %v3302, %v3302
        %v3472 = vmul.f32 %v3303, %v3303
        %v3473 = vmul.f32 %v3304, %v3304
        %v3474 = vmul.f32 %v3305, %v3305
        %v3475 = vmul.f32 %v3306, %v3306
        %v3476 = vmul.f32 %v3307, %v3307
        %v3477 = vmul.f32 %v3308, %v3308
        %v3478 = vmul.f32 %v3309, %v3309
        %v3479 = vmul.f32 %v3310, %v3310
        %v3480 = vmul.f32 %v3311, %v3311
        %v3481 = vmul.f32 %v3312, %v3312
        %v3482 = vmul.f32 %v3313, %v3313
        %v3483 = vmul.f32 %v3314, %v3314
        %v3484 = vmul.f32 %v3315, %v3315
        %v3485 = vmul.f32 %v3316, %v3316
        %v3486 = vmul.f32 %v3317, %v3317
        %v3487 = vmul.f32 %v3318, %v3318
        %v3488 = vmul.f32 %v3319, %v3319
        %v3489 = vmul.f32 %v3320, %v3320
        %v3490 = vmul.f32 %v3321, %v3321
        %v3491 = vmul.f32 %v3322, %v3322
        %v3492 = vmul.f32 %v3323, %v3323
        %v3493 = vmul.f32 %v3324, %v3324
        %v3494 = vmul.f32 %v3325, %v3325
        %v3495 = vmul.f32 %v3326, %v3326
        %v3496 = vmul.f32 %v3327, %v3327
        %v3497 = vmul.f32 %v3328, %v3328
        %v3498 = vmul.f32 %v3329, %v3329
        %v3499 = vmul.f32 %v3330, %v3330
        %v3500 = vmul.f32 %v3331, %v3331
        %v3501 = vmul.f32 %v3332, %v3332
        %v3502 = vmul.f32 %v3333, %v3333
        %v3503 = vmul.f32 %v3334, %v3334
        %v3504 = vmul.f32 %v3335, %v3335
        %v3505 = vmul.f32 %v3336, %v3336
        %v3506 = vmul.f32 %v3337, %v3337
        %v3507 = vmul.f32 %v3338, %v3338
        %v3508 = vmul.f32 %v3339, %v3339
        %v3509 = vmul.f32 %v3340, %v3340
        %v3510 = vmul.f32 %v3341, %v3341
        %v3511 = vmul.f32 %v3342, %v3342
        %v3512 = vmul.f32 %v3343, %v3343
        %v3513 = vmul.f32 %v3344, %v3344
        %v3514 = vmul.f32 %v3345, %v3345
        %v3515 = vmul.f32 %v3346, %v3346
        %v3516 = vmul.f32 %v3347, %v3347
        %v3517 = vmul.f32 %v3348, %v3348
        %v3518 = vmul.f32 %v3349, %v3349
        %v3519 = vmul.f32 %v3350, %v3350
        %v3520 = vmul.f32 %v3351, %v3351
        %v3521 = vmul.f32 %v3352, %v3352
        %v3522 = vmul.f32 %v3353, %v3353
        %v3523 = vmul.f32 %v3354, %v3354
        %v3524 = vadd.f32 %v3460, %v3461
        %v3525 = vadd.f32 %v3524, %v3462
        %v3526 = vadd.f32 %v3525, %v3463
        %3527 = vadd.xlane.f32.xlu0 %v3526
        %v3528 = vpop.xlane.xlu0 %3527
        %v3529 = vadd.f32 %v3464, %v3465
        %v3530 = vadd.f32 %v3529, %v3466
        %v3531 = vadd.f32 %v3530, %v3467
        %3532 = vadd.xlane.f32.xlu0 %v3531
        %v3533 = vpop.xlane.xlu0 %3532
        %v3534 = vadd.f32 %v3468, %v3469
        %v3535 = vadd.f32 %v3534, %v3470
        %v3536 = vadd.f32 %v3535, %v3471
        %3537 = vadd.xlane.f32.xlu0 %v3536
        %v3538 = vpop.xlane.xlu0 %3537
        %v3539 = vadd.f32 %v3472, %v3473
        %v3540 = vadd.f32 %v3539, %v3474
        %v3541 = vadd.f32 %v3540, %v3475
        %3542 = vadd.xlane.f32.xlu0 %v3541
        %v3543 = vpop.xlane.xlu0 %3542
        %v3544 = vadd.f32 %v3476, %v3477
        %v3545 = vadd.f32 %v3544, %v3478
        %v3546 = vadd.f32 %v3545, %v3479
        %3547 = vadd.xlane.f32.xlu0 %v3546
        %v3548 = vpop.xlane.xlu0 %3547
        %v3549 = vadd.f32 %v3480, %v3481
        %v3550 = vadd.f32 %v3549, %v3482
        %v3551 = vadd.f32 %v3550, %v3483
        %3552 = vadd.xlane.f32.xlu0 %v3551
        %v3553 = vpop.xlane.xlu0 %3552
        %v3554 = vadd.f32 %v3484, %v3485
        %v3555 = vadd.f32 %v3554, %v3486
        %v3556 = vadd.f32 %v3555, %v3487
        %3557 = vadd.xlane.f32.xlu0 %v3556
        %v3558 = vpop.xlane.xlu0 %3557
        %v3559 = vadd.f32 %v3488, %v3489
        %v3560 = vadd.f32 %v3559, %v3490
        %v3561 = vadd.f32 %v3560, %v3491
        %3562 = vadd.xlane.f32.xlu0 %v3561
        %v3563 = vpop.xlane.xlu0 %3562
        %v3564 = vadd.f32 %v3492, %v3493
        %v3565 = vadd.f32 %v3564, %v3494
        %v3566 = vadd.f32 %v3565, %v3495
        %3567 = vadd.xlane.f32.xlu0 %v3566
        %v3568 = vpop.xlane.xlu0 %3567
        %v3569 = vadd.f32 %v3496, %v3497
        %v3570 = vadd.f32 %v3569, %v3498
        %v3571 = vadd.f32 %v3570, %v3499
        %3572 = vadd.xlane.f32.xlu0 %v3571
        %v3573 = vpop.xlane.xlu0 %3572
        %v3574 = vadd.f32 %v3500, %v3501
        %v3575 = vadd.f32 %v3574, %v3502
        %v3576 = vadd.f32 %v3575, %v3503
        %3577 = vadd.xlane.f32.xlu0 %v3576
        %v3578 = vpop.xlane.xlu0 %3577
        %v3579 = vadd.f32 %v3504, %v3505
        %v3580 = vadd.f32 %v3579, %v3506
        %v3581 = vadd.f32 %v3580, %v3507
        %3582 = vadd.xlane.f32.xlu0 %v3581
        %v3583 = vpop.xlane.xlu0 %3582
        %v3584 = vadd.f32 %v3508, %v3509
        %v3585 = vadd.f32 %v3584, %v3510
        %v3586 = vadd.f32 %v3585, %v3511
        %3587 = vadd.xlane.f32.xlu0 %v3586
        %v3588 = vpop.xlane.xlu0 %3587
        %v3589 = vadd.f32 %v3512, %v3513
        %v3590 = vadd.f32 %v3589, %v3514
        %v3591 = vadd.f32 %v3590, %v3515
        %3592 = vadd.xlane.f32.xlu0 %v3591
        %v3593 = vpop.xlane.xlu0 %3592
        %v3594 = vadd.f32 %v3516, %v3517
        %v3595 = vadd.f32 %v3594, %v3518
        %v3596 = vadd.f32 %v3595, %v3519
        %3597 = vadd.xlane.f32.xlu0 %v3596
        %v3598 = vpop.xlane.xlu0 %3597
        %v3599 = vadd.f32 %v3520, %v3521
        %v3600 = vadd.f32 %v3599, %v3522
        %v3601 = vadd.f32 %v3600, %v3523
        %3602 = vadd.xlane.f32.xlu0 %v3601
        %v3603 = vpop.xlane.xlu0 %3602
        %v3604 = vmul.f32 %v3528, %v3443
        %v3605 = vmul.f32 %v3533, %v3443
        %v3606 = vmul.f32 %v3538, %v3443
        %v3607 = vmul.f32 %v3543, %v3443
        %v3608 = vmul.f32 %v3548, %v3443
        %v3609 = vmul.f32 %v3553, %v3443
        %v3610 = vmul.f32 %v3558, %v3443
        %v3611 = vmul.f32 %v3563, %v3443
        %v3612 = vmul.f32 %v3568, %v3443
        %v3613 = vmul.f32 %v3573, %v3443
        %v3614 = vmul.f32 %v3578, %v3443
        %v3615 = vmul.f32 %v3583, %v3443
        %v3616 = vmul.f32 %v3588, %v3443
        %v3617 = vmul.f32 %v3593, %v3443
        %v3618 = vmul.f32 %v3598, %v3443
        %v3619 = vmul.f32 %v3603, %v3443
        %v3620 = vmul.f32 %v3444, %v3444
        %v3621 = vmul.f32 %v3445, %v3445
        %v3622 = vmul.f32 %v3446, %v3446
        %v3623 = vmul.f32 %v3447, %v3447
        %v3624 = vmul.f32 %v3448, %v3448
        %v3625 = vmul.f32 %v3449, %v3449
        %v3626 = vmul.f32 %v3450, %v3450
        %v3627 = vmul.f32 %v3451, %v3451
        %v3628 = vmul.f32 %v3452, %v3452
        %v3629 = vmul.f32 %v3453, %v3453
        %v3630 = vmul.f32 %v3454, %v3454
        %v3631 = vmul.f32 %v3455, %v3455
        %v3632 = vmul.f32 %v3456, %v3456
        %v3633 = vmul.f32 %v3457, %v3457
        %v3634 = vmul.f32 %v3458, %v3458
        %v3635 = vmul.f32 %v3459, %v3459
        %v3636 = vsub.f32 %v3604, %v3620
        %v3637 = vsub.f32 %v3605, %v3621
        %v3638 = vsub.f32 %v3606, %v3622
        %v3639 = vsub.f32 %v3607, %v3623
        %v3640 = vsub.f32 %v3608, %v3624
        %v3641 = vsub.f32 %v3609, %v3625
        %v3642 = vsub.f32 %v3610, %v3626
        %v3643 = vsub.f32 %v3611, %v3627
        %v3644 = vsub.f32 %v3612, %v3628
        %v3645 = vsub.f32 %v3613, %v3629
        %v3646 = vsub.f32 %v3614, %v3630
        %v3647 = vsub.f32 %v3615, %v3631
        %v3648 = vsub.f32 %v3616, %v3632
        %v3649 = vsub.f32 %v3617, %v3633
        %v3650 = vsub.f32 %v3618, %v3634
        %v3651 = vsub.f32 %v3619, %v3635
        %v3652 = vsub.f32 %v3291, %v3444
        %v3653 = vsub.f32 %v3292, %v3444
        %v3654 = vsub.f32 %v3293, %v3444
        %v3655 = vsub.f32 %v3294, %v3444
        %v3656 = vsub.f32 %v3295, %v3445
        %v3657 = vsub.f32 %v3296, %v3445
        %v3658 = vsub.f32 %v3297, %v3445
        %v3659 = vsub.f32 %v3298, %v3445
        %v3660 = vsub.f32 %v3299, %v3446
        %v3661 = vsub.f32 %v3300, %v3446
        %v3662 = vsub.f32 %v3301, %v3446
        %v3663 = vsub.f32 %v3302, %v3446
        %v3664 = vsub.f32 %v3303, %v3447
        %v3665 = vsub.f32 %v3304, %v3447
        %v3666 = vsub.f32 %v3305, %v3447
        %v3667 = vsub.f32 %v3306, %v3447
        %v3668 = vsub.f32 %v3307, %v3448
        %v3669 = vsub.f32 %v3308, %v3448
        %v3670 = vsub.f32 %v3309, %v3448
        %v3671 = vsub.f32 %v3310, %v3448
        %v3672 = vsub.f32 %v3311, %v3449
        %v3673 = vsub.f32 %v3312, %v3449
        %v3674 = vsub.f32 %v3313, %v3449
        %v3675 = vsub.f32 %v3314, %v3449
        %v3676 = vsub.f32 %v3315, %v3450
        %v3677 = vsub.f32 %v3316, %v3450
        %v3678 = vsub.f32 %v3317, %v3450
        %v3679 = vsub.f32 %v3318, %v3450
        %v3680 = vsub.f32 %v3319, %v3451
        %v3681 = vsub.f32 %v3320, %v3451
        %v3682 = vsub.f32 %v3321, %v3451
        %v3683 = vsub.f32 %v3322, %v3451
        %v3684 = vsub.f32 %v3323, %v3452
        %v3685 = vsub.f32 %v3324, %v3452
        %v3686 = vsub.f32 %v3325, %v3452
        %v3687 = vsub.f32 %v3326, %v3452
        %v3688 = vsub.f32 %v3327, %v3453
        %v3689 = vsub.f32 %v3328, %v3453
        %v3690 = vsub.f32 %v3329, %v3453
        %v3691 = vsub.f32 %v3330, %v3453
        %v3692 = vsub.f32 %v3331, %v3454
        %v3693 = vsub.f32 %v3332, %v3454
        %v3694 = vsub.f32 %v3333, %v3454
        %v3695 = vsub.f32 %v3334, %v3454
        %v3696 = vsub.f32 %v3335, %v3455
        %v3697 = vsub.f32 %v3336, %v3455
        %v3698 = vsub.f32 %v3337, %v3455
        %v3699 = vsub.f32 %v3338, %v3455
        %v3700 = vsub.f32 %v3339, %v3456
        %v3701 = vsub.f32 %v3340, %v3456
        %v3702 = vsub.f32 %v3341, %v3456
        %v3703 = vsub.f32 %v3342, %v3456
        %v3704 = vsub.f32 %v3343, %v3457
        %v3705 = vsub.f32 %v3344, %v3457
        %v3706 = vsub.f32 %v3345, %v3457
        %v3707 = vsub.f32 %v3346, %v3457
        %v3708 = vsub.f32 %v3347, %v3458
        %v3709 = vsub.f32 %v3348, %v3458
        %v3710 = vsub.f32 %v3349, %v3458
        %v3711 = vsub.f32 %v3350, %v3458
        %v3712 = vsub.f32 %v3351, %v3459
        %v3713 = vsub.f32 %v3352, %v3459
        %v3714 = vsub.f32 %v3353, %v3459
        %v3715 = vsub.f32 %v3354, %v3459
        %v3716 = vadd.f32 %v3636, 1e-05
        %v3717 = vadd.f32 %v3637, 1e-05
        %v3718 = vadd.f32 %v3638, 1e-05
        %v3719 = vadd.f32 %v3639, 1e-05
        %v3720 = vadd.f32 %v3640, 1e-05
        %v3721 = vadd.f32 %v3641, 1e-05
        %v3722 = vadd.f32 %v3642, 1e-05
        %v3723 = vadd.f32 %v3643, 1e-05
        %v3724 = vadd.f32 %v3644, 1e-05
        %v3725 = vadd.f32 %v3645, 1e-05
        %v3726 = vadd.f32 %v3646, 1e-05
        %v3727 = vadd.f32 %v3647, 1e-05
        %v3728 = vadd.f32 %v3648, 1e-05
        %v3729 = vadd.f32 %v3649, 1e-05
        %v3730 = vadd.f32 %v3650, 1e-05
        %v3731 = vadd.f32 %v3651, 1e-05
        %v3732 = vrsqrt.pop %v3716
        %v3733 = vmul.f32 %v3732, %v3716
        %v3734 = vmul.f32 %v3733, %v3732
        %v3735 = vmul.f32 0.5, %v3734
        %v3736 = vsub.f32 1.5, %v3735
        %v3737 = vmul.f32 %v3732, %v3736
        %vm3738 = vweird.f32 %v3716
        %vm3739 = vweird.f32 %v3732
        %vm3740 = vmor %vm3738, %vm3739
        %v3741 = vsel %vm3740, %v3732, %v3737
        %v3742 = vrsqrt.pop %v3717
        %v3743 = vmul.f32 %v3742, %v3717
        %v3744 = vmul.f32 %v3743, %v3742
        %v3745 = vmul.f32 0.5, %v3744
        %v3746 = vsub.f32 1.5, %v3745
        %v3747 = vmul.f32 %v3742, %v3746
        %vm3748 = vweird.f32 %v3717
        %vm3749 = vweird.f32 %v3742
        %vm3750 = vmor %vm3748, %vm3749
        %v3751 = vsel %vm3750, %v3742, %v3747
        %v3752 = vrsqrt.pop %v3718
        %v3753 = vmul.f32 %v3752, %v3718
        %v3754 = vmul.f32 %v3753, %v3752
        %v3755 = vmul.f32 0.5, %v3754
        %v3756 = vsub.f32 1.5, %v3755
        %v3757 = vmul.f32 %v3752, %v3756
        %vm3758 = vweird.f32 %v3718
        %vm3759 = vweird.f32 %v3752
        %vm3760 = vmor %vm3758, %vm3759
        %v3761 = vsel %vm3760, %v3752, %v3757
        %v3762 = vrsqrt.pop %v3719
        %v3763 = vmul.f32 %v3762, %v3719
        %v3764 = vmul.f32 %v3763, %v3762
        %v3765 = vmul.f32 0.5, %v3764
        %v3766 = vsub.f32 1.5, %v3765
        %v3767 = vmul.f32 %v3762, %v3766
        %vm3768 = vweird.f32 %v3719
        %vm3769 = vweird.f32 %v3762
        %vm3770 = vmor %vm3768, %vm3769
        %v3771 = vsel %vm3770, %v3762, %v3767
        %v3772 = vrsqrt.pop %v3720
        %v3773 = vmul.f32 %v3772, %v3720
        %v3774 = vmul.f32 %v3773, %v3772
        %v3775 = vmul.f32 0.5, %v3774
        %v3776 = vsub.f32 1.5, %v3775
        %v3777 = vmul.f32 %v3772, %v3776
        %vm3778 = vweird.f32 %v3720
        %vm3779 = vweird.f32 %v3772
        %vm3780 = vmor %vm3778, %vm3779
        %v3781 = vsel %vm3780, %v3772, %v3777
        %v3782 = vrsqrt.pop %v3721
        %v3783 = vmul.f32 %v3782, %v3721
        %v3784 = vmul.f32 %v3783, %v3782
        %v3785 = vmul.f32 0.5, %v3784
        %v3786 = vsub.f32 1.5, %v3785
        %v3787 = vmul.f32 %v3782, %v3786
        %vm3788 = vweird.f32 %v3721
        %vm3789 = vweird.f32 %v3782
        %vm3790 = vmor %vm3788, %vm3789
        %v3791 = vsel %vm3790, %v3782, %v3787
        %v3792 = vrsqrt.pop %v3722
        %v3793 = vmul.f32 %v3792, %v3722
        %v3794 = vmul.f32 %v3793, %v3792
        %v3795 = vmul.f32 0.5, %v3794
        %v3796 = vsub.f32 1.5, %v3795
        %v3797 = vmul.f32 %v3792, %v3796
        %vm3798 = vweird.f32 %v3722
        %vm3799 = vweird.f32 %v3792
        %vm3800 = vmor %vm3798, %vm3799
        %v3801 = vsel %vm3800, %v3792, %v3797
        %v3802 = vrsqrt.pop %v3723
        %v3803 = vmul.f32 %v3802, %v3723
        %v3804 = vmul.f32 %v3803, %v3802
        %v3805 = vmul.f32 0.5, %v3804
        %v3806 = vsub.f32 1.5, %v3805
        %v3807 = vmul.f32 %v3802, %v3806
        %vm3808 = vweird.f32 %v3723
        %vm3809 = vweird.f32 %v3802
        %vm3810 = vmor %vm3808, %vm3809
        %v3811 = vsel %vm3810, %v3802, %v3807
        %v3812 = vrsqrt.pop %v3724
        %v3813 = vmul.f32 %v3812, %v3724
        %v3814 = vmul.f32 %v3813, %v3812
        %v3815 = vmul.f32 0.5, %v3814
        %v3816 = vsub.f32 1.5, %v3815
        %v3817 = vmul.f32 %v3812, %v3816
        %vm3818 = vweird.f32 %v3724
        %vm3819 = vweird.f32 %v3812
        %vm3820 = vmor %vm3818, %vm3819
        %v3821 = vsel %vm3820, %v3812, %v3817
        %v3822 = vrsqrt.pop %v3725
        %v3823 = vmul.f32 %v3822, %v3725
        %v3824 = vmul.f32 %v3823, %v3822
        %v3825 = vmul.f32 0.5, %v3824
        %v3826 = vsub.f32 1.5, %v3825
        %v3827 = vmul.f32 %v3822, %v3826
        %vm3828 = vweird.f32 %v3725
        %vm3829 = vweird.f32 %v3822
        %vm3830 = vmor %vm3828, %vm3829
        %v3831 = vsel %vm3830, %v3822, %v3827
        %v3832 = vrsqrt.pop %v3726
        %v3833 = vmul.f32 %v3832, %v3726
        %v3834 = vmul.f32 %v3833, %v3832
        %v3835 = vmul.f32 0.5, %v3834
        %v3836 = vsub.f32 1.5, %v3835
        %v3837 = vmul.f32 %v3832, %v3836
        %vm3838 = vweird.f32 %v3726
        %vm3839 = vweird.f32 %v3832
        %vm3840 = vmor %vm3838, %vm3839
        %v3841 = vsel %vm3840, %v3832, %v3837
        %v3842 = vrsqrt.pop %v3727
        %v3843 = vmul.f32 %v3842, %v3727
        %v3844 = vmul.f32 %v3843, %v3842
        %v3845 = vmul.f32 0.5, %v3844
        %v3846 = vsub.f32 1.5, %v3845
        %v3847 = vmul.f32 %v3842, %v3846
        %vm3848 = vweird.f32 %v3727
        %vm3849 = vweird.f32 %v3842
        %vm3850 = vmor %vm3848, %vm3849
        %v3851 = vsel %vm3850, %v3842, %v3847
        %v3852 = vrsqrt.pop %v3728
        %v3853 = vmul.f32 %v3852, %v3728
        %v3854 = vmul.f32 %v3853, %v3852
        %v3855 = vmul.f32 0.5, %v3854
        %v3856 = vsub.f32 1.5, %v3855
        %v3857 = vmul.f32 %v3852, %v3856
        %vm3858 = vweird.f32 %v3728
        %vm3859 = vweird.f32 %v3852
        %vm3860 = vmor %vm3858, %vm3859
        %v3861 = vsel %vm3860, %v3852, %v3857
        %v3862 = vrsqrt.pop %v3729
        %v3863 = vmul.f32 %v3862, %v3729
        %v3864 = vmul.f32 %v3863, %v3862
        %v3865 = vmul.f32 0.5, %v3864
        %v3866 = vsub.f32 1.5, %v3865
        %v3867 = vmul.f32 %v3862, %v3866
        %vm3868 = vweird.f32 %v3729
        %vm3869 = vweird.f32 %v3862
        %vm3870 = vmor %vm3868, %vm3869
        %v3871 = vsel %vm3870, %v3862, %v3867
        %v3872 = vrsqrt.pop %v3730
        %v3873 = vmul.f32 %v3872, %v3730
        %v3874 = vmul.f32 %v3873, %v3872
        %v3875 = vmul.f32 0.5, %v3874
        %v3876 = vsub.f32 1.5, %v3875
        %v3877 = vmul.f32 %v3872, %v3876
        %vm3878 = vweird.f32 %v3730
        %vm3879 = vweird.f32 %v3872
        %vm3880 = vmor %vm3878, %vm3879
        %v3881 = vsel %vm3880, %v3872, %v3877
        %v3882 = vrsqrt.pop %v3731
        %v3883 = vmul.f32 %v3882, %v3731
        %v3884 = vmul.f32 %v3883, %v3882
        %v3885 = vmul.f32 0.5, %v3884
        %v3886 = vsub.f32 1.5, %v3885
        %v3887 = vmul.f32 %v3882, %v3886
        %vm3888 = vweird.f32 %v3731
        %vm3889 = vweird.f32 %v3882
        %vm3890 = vmor %vm3888, %vm3889
        %v3891 = vsel %vm3890, %v3882, %v3887
        %v3892 = vmul.f32 %v3652, %v3741
        %v3893 = vmul.f32 %v3653, %v3741
        %v3894 = vmul.f32 %v3654, %v3741
        %v3895 = vmul.f32 %v3655, %v3741
        %v3896 = vmul.f32 %v3656, %v3751
        %v3897 = vmul.f32 %v3657, %v3751
        %v3898 = vmul.f32 %v3658, %v3751
        %v3899 = vmul.f32 %v3659, %v3751
        %v3900 = vmul.f32 %v3660, %v3761
        %v3901 = vmul.f32 %v3661, %v3761
        %v3902 = vmul.f32 %v3662, %v3761
        %v3903 = vmul.f32 %v3663, %v3761
        %v3904 = vmul.f32 %v3664, %v3771
        %v3905 = vmul.f32 %v3665, %v3771
        %v3906 = vmul.f32 %v3666, %v3771
        %v3907 = vmul.f32 %v3667, %v3771
        %v3908 = vmul.f32 %v3668, %v3781
        %v3909 = vmul.f32 %v3669, %v3781
        %v3910 = vmul.f32 %v3670, %v3781
        %v3911 = vmul.f32 %v3671, %v3781
        %v3912 = vmul.f32 %v3672, %v3791
        %v3913 = vmul.f32 %v3673, %v3791
        %v3914 = vmul.f32 %v3674, %v3791
        %v3915 = vmul.f32 %v3675, %v3791
        %v3916 = vmul.f32 %v3676, %v3801
        %v3917 = vmul.f32 %v3677, %v3801
        %v3918 = vmul.f32 %v3678, %v3801
        %v3919 = vmul.f32 %v3679, %v3801
        %v3920 = vmul.f32 %v3680, %v3811
        %v3921 = vmul.f32 %v3681, %v3811
        %v3922 = vmul.f32 %v3682, %v3811
        %v3923 = vmul.f32 %v3683, %v3811
        %v3924 = vmul.f32 %v3684, %v3821
        %v3925 = vmul.f32 %v3685, %v3821
        %v3926 = vmul.f32 %v3686, %v3821
        %v3927 = vmul.f32 %v3687, %v3821
        %v3928 = vmul.f32 %v3688, %v3831
        %v3929 = vmul.f32 %v3689, %v3831
        %v3930 = vmul.f32 %v3690, %v3831
        %v3931 = vmul.f32 %v3691, %v3831
        %v3932 = vmul.f32 %v3692, %v3841
        %v3933 = vmul.f32 %v3693, %v3841
        %v3934 = vmul.f32 %v3694, %v3841
        %v3935 = vmul.f32 %v3695, %v3841
        %v3936 = vmul.f32 %v3696, %v3851
        %v3937 = vmul.f32 %v3697, %v3851
        %v3938 = vmul.f32 %v3698, %v3851
        %v3939 = vmul.f32 %v3699, %v3851
        %v3940 = vmul.f32 %v3700, %v3861
        %v3941 = vmul.f32 %v3701, %v3861
        %v3942 = vmul.f32 %v3702, %v3861
        %v3943 = vmul.f32 %v3703, %v3861
        %v3944 = vmul.f32 %v3704, %v3871
        %v3945 = vmul.f32 %v3705, %v3871
        %v3946 = vmul.f32 %v3706, %v3871
        %v3947 = vmul.f32 %v3707, %v3871
        %v3948 = vmul.f32 %v3708, %v3881
        %v3949 = vmul.f32 %v3709, %v3881
        %v3950 = vmul.f32 %v3710, %v3881
        %v3951 = vmul.f32 %v3711, %v3881
        %v3952 = vmul.f32 %v3712, %v3891
        %v3953 = vmul.f32 %v3713, %v3891
        %v3954 = vmul.f32 %v3714, %v3891
        %v3955 = vmul.f32 %v3715, %v3891
        %v3957 = vperm.slane %v3355, 0
        %v3958 = vperm.slane %v3355, 1
        %v3959 = vperm.slane %v3355, 2
        %v3960 = vperm.slane %v3355, 3
        %v3965 = vmul.f32 %v3892, %v3957
        %v3966 = vmul.f32 %v3893, %v3958
        %v3967 = vmul.f32 %v3894, %v3959
        %v3968 = vmul.f32 %v3895, %v3960
        %v3969 = vmul.f32 %v3896, %v3957
        %v3970 = vmul.f32 %v3897, %v3958
        %v3971 = vmul.f32 %v3898, %v3959
        %v3972 = vmul.f32 %v3899, %v3960
        %v3973 = vmul.f32 %v3900, %v3957
        %v3974 = vmul.f32 %v3901, %v3958
        %v3975 = vmul.f32 %v3902, %v3959
        %v3976 = vmul.f32 %v3903, %v3960
        %v3977 = vmul.f32 %v3904, %v3957
        %v3978 = vmul.f32 %v3905, %v3958
        %v3979 = vmul.f32 %v3906, %v3959
        %v3980 = vmul.f32 %v3907, %v3960
        %v3981 = vmul.f32 %v3908, %v3957
        %v3982 = vmul.f32 %v3909, %v3958
        %v3983 = vmul.f32 %v3910, %v3959
        %v3984 = vmul.f32 %v3911, %v3960
        %v3985 = vmul.f32 %v3912, %v3957
        %v3986 = vmul.f32 %v3913, %v3958
        %v3987 = vmul.f32 %v3914, %v3959
        %v3988 = vmul.f32 %v3915, %v3960
        %v3989 = vmul.f32 %v3916, %v3957
        %v3990 = vmul.f32 %v3917, %v3958
        %v3991 = vmul.f32 %v3918, %v3959
        %v3992 = vmul.f32 %v3919, %v3960
        %v3993 = vmul.f32 %v3920, %v3957
        %v3994 = vmul.f32 %v3921, %v3958
        %v3995 = vmul.f32 %v3922, %v3959
        %v3996 = vmul.f32 %v3923, %v3960
        %v3997 = vmul.f32 %v3924, %v3957
        %v3998 = vmul.f32 %v3925, %v3958
        %v3999 = vmul.f32 %v3926, %v3959
        %v4000 = vmul.f32 %v3927, %v3960
        %v4001 = vmul.f32 %v3928, %v3957
        %v4002 = vmul.f32 %v3929, %v3958
        %v4003 = vmul.f32 %v3930, %v3959
        %v4004 = vmul.f32 %v3931, %v3960
        %v4005 = vmul.f32 %v3932, %v3957
        %v4006 = vmul.f32 %v3933, %v3958
        %v4007 = vmul.f32 %v3934, %v3959
        %v4008 = vmul.f32 %v3935, %v3960
        %v4009 = vmul.f32 %v3936, %v3957
        %v4010 = vmul.f32 %v3937, %v3958
        %v4011 = vmul.f32 %v3938, %v3959
        %v4012 = vmul.f32 %v3939, %v3960
        %v4013 = vmul.f32 %v3940, %v3957
        %v4014 = vmul.f32 %v3941, %v3958
        %v4015 = vmul.f32 %v3942, %v3959
        %v4016 = vmul.f32 %v3943, %v3960
        %v4017 = vmul.f32 %v3944, %v3957
        %v4018 = vmul.f32 %v3945, %v3958
        %v4019 = vmul.f32 %v3946, %v3959
        %v4020 = vmul.f32 %v3947, %v3960
        %v4021 = vmul.f32 %v3948, %v3957
        %v4022 = vmul.f32 %v3949, %v3958
        %v4023 = vmul.f32 %v3950, %v3959
        %v4024 = vmul.f32 %v3951, %v3960
        %v4025 = vmul.f32 %v3952, %v3957
        %v4026 = vmul.f32 %v3953, %v3958
        %v4027 = vmul.f32 %v3954, %v3959
        %v4028 = vmul.f32 %v3955, %v3960
        %v4030 = vperm.slane %v3356, 0
        %v4031 = vperm.slane %v3356, 1
        %v4032 = vperm.slane %v3356, 2
        %v4033 = vperm.slane %v3356, 3
        %v4038 = vadd.f32 %v3965, %v4030
        %v4039 = vadd.f32 %v3966, %v4031
        %v4040 = vadd.f32 %v3967, %v4032
        %v4041 = vadd.f32 %v3968, %v4033
        %v4042 = vadd.f32 %v3969, %v4030
        %v4043 = vadd.f32 %v3970, %v4031
        %v4044 = vadd.f32 %v3971, %v4032
        %v4045 = vadd.f32 %v3972, %v4033
        %v4046 = vadd.f32 %v3973, %v4030
        %v4047 = vadd.f32 %v3974, %v4031
        %v4048 = vadd.f32 %v3975, %v4032
        %v4049 = vadd.f32 %v3976, %v4033
        %v4050 = vadd.f32 %v3977, %v4030
        %v4051 = vadd.f32 %v3978, %v4031
        %v4052 = vadd.f32 %v3979, %v4032
        %v4053 = vadd.f32 %v3980, %v4033
        %v4054 = vadd.f32 %v3981, %v4030
        %v4055 = vadd.f32 %v3982, %v4031
        %v4056 = vadd.f32 %v3983, %v4032
        %v4057 = vadd.f32 %v3984, %v4033
        %v4058 = vadd.f32 %v3985, %v4030
        %v4059 = vadd.f32 %v3986, %v4031
        %v4060 = vadd.f32 %v3987, %v4032
        %v4061 = vadd.f32 %v3988, %v4033
        %v4062 = vadd.f32 %v3989, %v4030
        %v4063 = vadd.f32 %v3990, %v4031
        %v4064 = vadd.f32 %v3991, %v4032
        %v4065 = vadd.f32 %v3992, %v4033
        %v4066 = vadd.f32 %v3993, %v4030
        %v4067 = vadd.f32 %v3994, %v4031
        %v4068 = vadd.f32 %v3995, %v4032
        %v4069 = vadd.f32 %v3996, %v4033
        %v4070 = vadd.f32 %v3997, %v4030
        %v4071 = vadd.f32 %v3998, %v4031
        %v4072 = vadd.f32 %v3999, %v4032
        %v4073 = vadd.f32 %v4000, %v4033
        %v4074 = vadd.f32 %v4001, %v4030
        %v4075 = vadd.f32 %v4002, %v4031
        %v4076 = vadd.f32 %v4003, %v4032
        %v4077 = vadd.f32 %v4004, %v4033
        %v4078 = vadd.f32 %v4005, %v4030
        %v4079 = vadd.f32 %v4006, %v4031
        %v4080 = vadd.f32 %v4007, %v4032
        %v4081 = vadd.f32 %v4008, %v4033
        %v4082 = vadd.f32 %v4009, %v4030
        %v4083 = vadd.f32 %v4010, %v4031
        %v4084 = vadd.f32 %v4011, %v4032
        %v4085 = vadd.f32 %v4012, %v4033
        %v4086 = vadd.f32 %v4013, %v4030
        %v4087 = vadd.f32 %v4014, %v4031
        %v4088 = vadd.f32 %v4015, %v4032
        %v4089 = vadd.f32 %v4016, %v4033
        %v4090 = vadd.f32 %v4017, %v4030
        %v4091 = vadd.f32 %v4018, %v4031
        %v4092 = vadd.f32 %v4019, %v4032
        %v4093 = vadd.f32 %v4020, %v4033
        %v4094 = vadd.f32 %v4021, %v4030
        %v4095 = vadd.f32 %v4022, %v4031
        %v4096 = vadd.f32 %v4023, %v4032
        %v4097 = vadd.f32 %v4024, %v4033
        %v4098 = vadd.f32 %v4025, %v4030
        %v4099 = vadd.f32 %v4026, %v4031
        %v4100 = vadd.f32 %v4027, %v4032
        %v4101 = vadd.f32 %v4028, %v4033
        %v4102 = vmax.f32 %v4038, 0.0
        %v4103 = vmax.f32 %v4039, 0.0
        %v4104 = vmax.f32 %v4040, 0.0
        %v4105 = vmax.f32 %v4041, 0.0
        %v4106 = vmax.f32 %v4042, 0.0
        %v4107 = vmax.f32 %v4043, 0.0
        %v4108 = vmax.f32 %v4044, 0.0
        %v4109 = vmax.f32 %v4045, 0.0
        %v4110 = vmax.f32 %v4046, 0.0
        %v4111 = vmax.f32 %v4047, 0.0
        %v4112 = vmax.f32 %v4048, 0.0
        %v4113 = vmax.f32 %v4049, 0.0
        %v4114 = vmax.f32 %v4050, 0.0
        %v4115 = vmax.f32 %v4051, 0.0
        %v4116 = vmax.f32 %v4052, 0.0
        %v4117 = vmax.f32 %v4053, 0.0
        %v4118 = vmax.f32 %v4054, 0.0
        %v4119 = vmax.f32 %v4055, 0.0
        %v4120 = vmax.f32 %v4056, 0.0
        %v4121 = vmax.f32 %v4057, 0.0
        %v4122 = vmax.f32 %v4058, 0.0
        %v4123 = vmax.f32 %v4059, 0.0
        %v4124 = vmax.f32 %v4060, 0.0
        %v4125 = vmax.f32 %v4061, 0.0
        %v4126 = vmax.f32 %v4062, 0.0
        %v4127 = vmax.f32 %v4063, 0.0
        %v4128 = vmax.f32 %v4064, 0.0
        %v4129 = vmax.f32 %v4065, 0.0
        %v4130 = vmax.f32 %v4066, 0.0
        %v4131 = vmax.f32 %v4067, 0.0
        %v4132 = vmax.f32 %v4068, 0.0
        %v4133 = vmax.f32 %v4069, 0.0
        %v4134 = vmax.f32 %v4070, 0.0
        %v4135 = vmax.f32 %v4071, 0.0
        %v4136 = vmax.f32 %v4072, 0.0
        %v4137 = vmax.f32 %v4073, 0.0
        %v4138 = vmax.f32 %v4074, 0.0
        %v4139 = vmax.f32 %v4075, 0.0
        %v4140 = vmax.f32 %v4076, 0.0
        %v4141 = vmax.f32 %v4077, 0.0
        %v4142 = vmax.f32 %v4078, 0.0
        %v4143 = vmax.f32 %v4079, 0.0
        %v4144 = vmax.f32 %v4080, 0.0
        %v4145 = vmax.f32 %v4081, 0.0
        %v4146 = vmax.f32 %v4082, 0.0
        %v4147 = vmax.f32 %v4083, 0.0
        %v4148 = vmax.f32 %v4084, 0.0
        %v4149 = vmax.f32 %v4085, 0.0
        %v4150 = vmax.f32 %v4086, 0.0
        %v4151 = vmax.f32 %v4087, 0.0
        %v4152 = vmax.f32 %v4088, 0.0
        %v4153 = vmax.f32 %v4089, 0.0
        %v4154 = vmax.f32 %v4090, 0.0
        %v4155 = vmax.f32 %v4091, 0.0
        %v4156 = vmax.f32 %v4092, 0.0
        %v4157 = vmax.f32 %v4093, 0.0
        %v4158 = vmax.f32 %v4094, 0.0
        %v4159 = vmax.f32 %v4095, 0.0
        %v4160 = vmax.f32 %v4096, 0.0
        %v4161 = vmax.f32 %v4097, 0.0
        %v4162 = vmax.f32 %v4098, 0.0
        %v4163 = vmax.f32 %v4099, 0.0
        %v4164 = vmax.f32 %v4100, 0.0
        %v4165 = vmax.f32 %v4101, 0.0
        %v4166 = vpack.c.bf16 %v4106, %v4102
        %v4167 = vpack.c.bf16 %v4107, %v4103
        %v4168 = vpack.c.bf16 %v4108, %v4104
        %v4169 = vpack.c.bf16 %v4109, %v4105
        %v4170 = vpack.c.bf16 %v4114, %v4110
        %v4171 = vpack.c.bf16 %v4115, %v4111
        %v4172 = vpack.c.bf16 %v4116, %v4112
        %v4173 = vpack.c.bf16 %v4117, %v4113
        %v4174 = vpack.c.bf16 %v4122, %v4118
        %v4175 = vpack.c.bf16 %v4123, %v4119
        %v4176 = vpack.c.bf16 %v4124, %v4120
        %v4177 = vpack.c.bf16 %v4125, %v4121
        %v4178 = vpack.c.bf16 %v4130, %v4126
        %v4179 = vpack.c.bf16 %v4131, %v4127
        %v4180 = vpack.c.bf16 %v4132, %v4128
        %v4181 = vpack.c.bf16 %v4133, %v4129
        %v4182 = vpack.c.bf16 %v4138, %v4134
        %v4183 = vpack.c.bf16 %v4139, %v4135
        %v4184 = vpack.c.bf16 %v4140, %v4136
        %v4185 = vpack.c.bf16 %v4141, %v4137
        %v4186 = vpack.c.bf16 %v4146, %v4142
        %v4187 = vpack.c.bf16 %v4147, %v4143
        %v4188 = vpack.c.bf16 %v4148, %v4144
        %v4189 = vpack.c.bf16 %v4149, %v4145
        %v4190 = vpack.c.bf16 %v4154, %v4150
        %v4191 = vpack.c.bf16 %v4155, %v4151
        %v4192 = vpack.c.bf16 %v4156, %v4152
        %v4193 = vpack.c.bf16 %v4157, %v4153
        %v4194 = vpack.c.bf16 %v4162, %v4158
        %v4195 = vpack.c.bf16 %v4163, %v4159
        %v4196 = vpack.c.bf16 %v4164, %v4160
        %v4197 = vpack.c.bf16 %v4165, %v4161
        %v4198 = vld [vmem:[#allocation8] sm:$0xff]
        %v4199 = vld [vmem:[#allocation8 + $0x8] sm:$0xff]
        %v4200 = vld [vmem:[#allocation8 + $0x10] sm:$0xff]
        %v4201 = vld [vmem:[#allocation8 + $0x18] sm:$0xff]
        %v4202 = vld [vmem:[#allocation8 + $0x20] sm:$0xff]
        %v4203 = vld [vmem:[#allocation8 + $0x28] sm:$0xff]
        %v4204 = vld [vmem:[#allocation8 + $0x30] sm:$0xff]
        %v4205 = vld [vmem:[#allocation8 + $0x38] sm:$0xff]
        %v4206 = vld [vmem:[#allocation8 + $0x40] sm:$0xff]
        %v4207 = vld [vmem:[#allocation8 + $0x48] sm:$0xff]
        %v4208 = vld [vmem:[#allocation8 + $0x50] sm:$0xff]
        %v4209 = vld [vmem:[#allocation8 + $0x58] sm:$0xff]
        %v4210 = vld [vmem:[#allocation8 + $0x60] sm:$0xff]
        %v4211 = vld [vmem:[#allocation8 + $0x68] sm:$0xff]
        %v4212 = vld [vmem:[#allocation8 + $0x70] sm:$0xff]
        %v4213 = vld [vmem:[#allocation8 + $0x78] sm:$0xff]
        %v4214 = vld [vmem:[#allocation8 + $0x80] sm:$0xff]
        %v4215 = vld [vmem:[#allocation8 + $0x88] sm:$0xff]
        %v4216 = vld [vmem:[#allocation8 + $0x90] sm:$0xff]
        %v4217 = vld [vmem:[#allocation8 + $0x98] sm:$0xff]
        %v4218 = vld [vmem:[#allocation8 + $0xa0] sm:$0xff]
        %v4219 = vld [vmem:[#allocation8 + $0xa8] sm:$0xff]
        %v4220 = vld [vmem:[#allocation8 + $0xb0] sm:$0xff]
        %v4221 = vld [vmem:[#allocation8 + $0xb8] sm:$0xff]
        %v4222 = vld [vmem:[#allocation8 + $0xc0] sm:$0xff]
        %v4223 = vld [vmem:[#allocation8 + $0xc8] sm:$0xff]
        %v4224 = vld [vmem:[#allocation8 + $0xd0] sm:$0xff]
        %v4225 = vld [vmem:[#allocation8 + $0xd8] sm:$0xff]
        %v4226 = vld [vmem:[#allocation8 + $0xe0] sm:$0xff]
        %v4227 = vld [vmem:[#allocation8 + $0xe8] sm:$0xff]
        %v4228 = vld [vmem:[#allocation8 + $0xf0] sm:$0xff]
        %v4229 = vld [vmem:[#allocation8 + $0xf8] sm:$0xff]
        %v4230 = vld [vmem:[#allocation8 + $0x100] sm:$0xff]
        %v4231 = vld [vmem:[#allocation8 + $0x108] sm:$0xff]
        %v4232 = vld [vmem:[#allocation8 + $0x110] sm:$0xff]
        %v4233 = vld [vmem:[#allocation8 + $0x118] sm:$0xff]
        %v4234 = vld [vmem:[#allocation8 + $0x120] sm:$0xff]
        %v4235 = vld [vmem:[#allocation8 + $0x128] sm:$0xff]
        %v4236 = vld [vmem:[#allocation8 + $0x130] sm:$0xff]
        %v4237 = vld [vmem:[#allocation8 + $0x138] sm:$0xff]
        %v4238 = vld [vmem:[#allocation8 + $0x140] sm:$0xff]
        %v4239 = vld [vmem:[#allocation8 + $0x148] sm:$0xff]
        %v4240 = vld [vmem:[#allocation8 + $0x150] sm:$0xff]
        %v4241 = vld [vmem:[#allocation8 + $0x158] sm:$0xff]
        %v4242 = vld [vmem:[#allocation8 + $0x160] sm:$0xff]
        %v4243 = vld [vmem:[#allocation8 + $0x168] sm:$0xff]
        %v4244 = vld [vmem:[#allocation8 + $0x170] sm:$0xff]
        %v4245 = vld [vmem:[#allocation8 + $0x178] sm:$0xff]
        %v4246 = vld [vmem:[#allocation8 + $0x180] sm:$0xff]
        %v4247 = vld [vmem:[#allocation8 + $0x188] sm:$0xff]
        %v4248 = vld [vmem:[#allocation8 + $0x190] sm:$0xff]
        %v4249 = vld [vmem:[#allocation8 + $0x198] sm:$0xff]
        %v4250 = vld [vmem:[#allocation8 + $0x1a0] sm:$0xff]
        %v4251 = vld [vmem:[#allocation8 + $0x1a8] sm:$0xff]
        %v4252 = vld [vmem:[#allocation8 + $0x1b0] sm:$0xff]
        %v4253 = vld [vmem:[#allocation8 + $0x1b8] sm:$0xff]
        %v4254 = vld [vmem:[#allocation8 + $0x1c0] sm:$0xff]
        %v4255 = vld [vmem:[#allocation8 + $0x1c8] sm:$0xff]
        %v4256 = vld [vmem:[#allocation8 + $0x1d0] sm:$0xff]
        %v4257 = vld [vmem:[#allocation8 + $0x1d8] sm:$0xff]
        %v4258 = vld [vmem:[#allocation8 + $0x1e0] sm:$0xff]
        %v4259 = vld [vmem:[#allocation8 + $0x1e8] sm:$0xff]
        %v4260 = vld [vmem:[#allocation8 + $0x1f0] sm:$0xff]
        %v4261 = vld [vmem:[#allocation8 + $0x1f8] sm:$0xff]
        %v4262 = vld [vmem:[#allocation8 + $0x200] sm:$0xff]
        %v4263 = vld [vmem:[#allocation8 + $0x208] sm:$0xff]
        %v4264 = vld [vmem:[#allocation8 + $0x210] sm:$0xff]
        %v4265 = vld [vmem:[#allocation8 + $0x218] sm:$0xff]
        %v4266 = vld [vmem:[#allocation8 + $0x220] sm:$0xff]
        %v4267 = vld [vmem:[#allocation8 + $0x228] sm:$0xff]
        %v4268 = vld [vmem:[#allocation8 + $0x230] sm:$0xff]
        %v4269 = vld [vmem:[#allocation8 + $0x238] sm:$0xff]
        %v4270 = vld [vmem:[#allocation8 + $0x240] sm:$0xff]
        %v4271 = vld [vmem:[#allocation8 + $0x248] sm:$0xff]
        %v4272 = vld [vmem:[#allocation8 + $0x250] sm:$0xff]
        %v4273 = vld [vmem:[#allocation8 + $0x258] sm:$0xff]
        %v4274 = vld [vmem:[#allocation8 + $0x260] sm:$0xff]
        %v4275 = vld [vmem:[#allocation8 + $0x268] sm:$0xff]
        %v4276 = vld [vmem:[#allocation8 + $0x270] sm:$0xff]
        %v4277 = vld [vmem:[#allocation8 + $0x278] sm:$0xff]
        %v4278 = vld [vmem:[#allocation8 + $0x280] sm:$0xff]
        %v4279 = vld [vmem:[#allocation8 + $0x288] sm:$0xff]
        %v4280 = vld [vmem:[#allocation8 + $0x290] sm:$0xff]
        %v4281 = vld [vmem:[#allocation8 + $0x298] sm:$0xff]
        %v4282 = vld [vmem:[#allocation8 + $0x2a0] sm:$0xff]
        %v4283 = vld [vmem:[#allocation8 + $0x2a8] sm:$0xff]
        %v4284 = vld [vmem:[#allocation8 + $0x2b0] sm:$0xff]
        %v4285 = vld [vmem:[#allocation8 + $0x2b8] sm:$0xff]
        %v4286 = vld [vmem:[#allocation8 + $0x2c0] sm:$0xff]
        %v4287 = vld [vmem:[#allocation8 + $0x2c8] sm:$0xff]
        %v4288 = vld [vmem:[#allocation8 + $0x2d0] sm:$0xff]
        %v4289 = vld [vmem:[#allocation8 + $0x2d8] sm:$0xff]
        %v4290 = vld [vmem:[#allocation8 + $0x2e0] sm:$0xff]
        %v4291 = vld [vmem:[#allocation8 + $0x2e8] sm:$0xff]
        %v4292 = vld [vmem:[#allocation8 + $0x2f0] sm:$0xff]
        %v4293 = vld [vmem:[#allocation8 + $0x2f8] sm:$0xff]
        %v4294 = vld [vmem:[#allocation8 + $0x300] sm:$0xff]
        %v4295 = vld [vmem:[#allocation8 + $0x308] sm:$0xff]
        %v4296 = vld [vmem:[#allocation8 + $0x310] sm:$0xff]
        %v4297 = vld [vmem:[#allocation8 + $0x318] sm:$0xff]
        %v4298 = vld [vmem:[#allocation8 + $0x320] sm:$0xff]
        %v4299 = vld [vmem:[#allocation8 + $0x328] sm:$0xff]
        %v4300 = vld [vmem:[#allocation8 + $0x330] sm:$0xff]
        %v4301 = vld [vmem:[#allocation8 + $0x338] sm:$0xff]
        %v4302 = vld [vmem:[#allocation8 + $0x340] sm:$0xff]
        %v4303 = vld [vmem:[#allocation8 + $0x348] sm:$0xff]
        %v4304 = vld [vmem:[#allocation8 + $0x350] sm:$0xff]
        %v4305 = vld [vmem:[#allocation8 + $0x358] sm:$0xff]
        %v4306 = vld [vmem:[#allocation8 + $0x360] sm:$0xff]
        %v4307 = vld [vmem:[#allocation8 + $0x368] sm:$0xff]
        %v4308 = vld [vmem:[#allocation8 + $0x370] sm:$0xff]
        %v4309 = vld [vmem:[#allocation8 + $0x378] sm:$0xff]
        %v4310 = vld [vmem:[#allocation8 + $0x380] sm:$0xff]
        %v4311 = vld [vmem:[#allocation8 + $0x388] sm:$0xff]
        %v4312 = vld [vmem:[#allocation8 + $0x390] sm:$0xff]
        %v4313 = vld [vmem:[#allocation8 + $0x398] sm:$0xff]
        %v4314 = vld [vmem:[#allocation8 + $0x3a0] sm:$0xff]
        %v4315 = vld [vmem:[#allocation8 + $0x3a8] sm:$0xff]
        %v4316 = vld [vmem:[#allocation8 + $0x3b0] sm:$0xff]
        %v4317 = vld [vmem:[#allocation8 + $0x3b8] sm:$0xff]
        %v4318 = vld [vmem:[#allocation8 + $0x3c0] sm:$0xff]
        %v4319 = vld [vmem:[#allocation8 + $0x3c8] sm:$0xff]
        %v4320 = vld [vmem:[#allocation8 + $0x3d0] sm:$0xff]
        %v4321 = vld [vmem:[#allocation8 + $0x3d8] sm:$0xff]
        %v4322 = vld [vmem:[#allocation8 + $0x3e0] sm:$0xff]
        %v4323 = vld [vmem:[#allocation8 + $0x3e8] sm:$0xff]
        %v4324 = vld [vmem:[#allocation8 + $0x3f0] sm:$0xff]
        %v4325 = vld [vmem:[#allocation8 + $0x3f8] sm:$0xff]
        %v4326 = vld [vmem:[%s14] sm:$0xf]
        %v4328 = vperm.slane %v4326, 0
        %v4329 = vperm.slane %v4326, 1
        %v4330 = vperm.slane %v4326, 2
        %v4331 = vperm.slane %v4326, 3
        %v4464 = vunpack.c.l.b16 %v4198
        %v4465 = vunpack.c.h.b16 %v4198
        %v4466 = vunpack.c.l.b16 %v4199
        %v4467 = vunpack.c.h.b16 %v4199
        %v4468 = vunpack.c.l.b16 %v4200
        %v4469 = vunpack.c.h.b16 %v4200
        %v4470 = vunpack.c.l.b16 %v4201
        %v4471 = vunpack.c.h.b16 %v4201
        %v4472 = vunpack.c.l.b16 %v4202
        %v4473 = vunpack.c.h.b16 %v4202
        %v4474 = vunpack.c.l.b16 %v4203
        %v4475 = vunpack.c.h.b16 %v4203
        %v4476 = vunpack.c.l.b16 %v4204
        %v4477 = vunpack.c.h.b16 %v4204
        %v4478 = vunpack.c.l.b16 %v4205
        %v4479 = vunpack.c.h.b16 %v4205
        %v4480 = vunpack.c.l.b16 %v4206
        %v4481 = vunpack.c.h.b16 %v4206
        %v4482 = vunpack.c.l.b16 %v4207
        %v4483 = vunpack.c.h.b16 %v4207
        %v4484 = vunpack.c.l.b16 %v4208
        %v4485 = vunpack.c.h.b16 %v4208
        %v4486 = vunpack.c.l.b16 %v4209
        %v4487 = vunpack.c.h.b16 %v4209
        %v4488 = vunpack.c.l.b16 %v4210
        %v4489 = vunpack.c.h.b16 %v4210
        %v4490 = vunpack.c.l.b16 %v4211
        %v4491 = vunpack.c.h.b16 %v4211
        %v4492 = vunpack.c.l.b16 %v4212
        %v4493 = vunpack.c.h.b16 %v4212
        %v4494 = vunpack.c.l.b16 %v4213
        %v4495 = vunpack.c.h.b16 %v4213
        %v4496 = vunpack.c.l.b16 %v4214
        %v4497 = vunpack.c.h.b16 %v4214
        %v4498 = vunpack.c.l.b16 %v4215
        %v4499 = vunpack.c.h.b16 %v4215
        %v4500 = vunpack.c.l.b16 %v4216
        %v4501 = vunpack.c.h.b16 %v4216
        %v4502 = vunpack.c.l.b16 %v4217
        %v4503 = vunpack.c.h.b16 %v4217
        %v4504 = vunpack.c.l.b16 %v4218
        %v4505 = vunpack.c.h.b16 %v4218
        %v4506 = vunpack.c.l.b16 %v4219
        %v4507 = vunpack.c.h.b16 %v4219
        %v4508 = vunpack.c.l.b16 %v4220
        %v4509 = vunpack.c.h.b16 %v4220
        %v4510 = vunpack.c.l.b16 %v4221
        %v4511 = vunpack.c.h.b16 %v4221
        %v4512 = vunpack.c.l.b16 %v4222
        %v4513 = vunpack.c.h.b16 %v4222
        %v4514 = vunpack.c.l.b16 %v4223
        %v4515 = vunpack.c.h.b16 %v4223
        %v4516 = vunpack.c.l.b16 %v4224
        %v4517 = vunpack.c.h.b16 %v4224
        %v4518 = vunpack.c.l.b16 %v4225
        %v4519 = vunpack.c.h.b16 %v4225
        %v4520 = vunpack.c.l.b16 %v4226
        %v4521 = vunpack.c.h.b16 %v4226
        %v4522 = vunpack.c.l.b16 %v4227
        %v4523 = vunpack.c.h.b16 %v4227
        %v4524 = vunpack.c.l.b16 %v4228
        %v4525 = vunpack.c.h.b16 %v4228
        %v4526 = vunpack.c.l.b16 %v4229
        %v4527 = vunpack.c.h.b16 %v4229
        %v4528 = vunpack.c.l.b16 %v4230
        %v4529 = vunpack.c.h.b16 %v4230
        %v4530 = vunpack.c.l.b16 %v4231
        %v4531 = vunpack.c.h.b16 %v4231
        %v4532 = vunpack.c.l.b16 %v4232
        %v4533 = vunpack.c.h.b16 %v4232
        %v4534 = vunpack.c.l.b16 %v4233
        %v4535 = vunpack.c.h.b16 %v4233
        %v4536 = vunpack.c.l.b16 %v4234
        %v4537 = vunpack.c.h.b16 %v4234
        %v4538 = vunpack.c.l.b16 %v4235
        %v4539 = vunpack.c.h.b16 %v4235
        %v4540 = vunpack.c.l.b16 %v4236
        %v4541 = vunpack.c.h.b16 %v4236
        %v4542 = vunpack.c.l.b16 %v4237
        %v4543 = vunpack.c.h.b16 %v4237
        %v4544 = vunpack.c.l.b16 %v4238
        %v4545 = vunpack.c.h.b16 %v4238
        %v4546 = vunpack.c.l.b16 %v4239
        %v4547 = vunpack.c.h.b16 %v4239
        %v4548 = vunpack.c.l.b16 %v4240
        %v4549 = vunpack.c.h.b16 %v4240
        %v4550 = vunpack.c.l.b16 %v4241
        %v4551 = vunpack.c.h.b16 %v4241
        %v4552 = vunpack.c.l.b16 %v4242
        %v4553 = vunpack.c.h.b16 %v4242
        %v4554 = vunpack.c.l.b16 %v4243
        %v4555 = vunpack.c.h.b16 %v4243
        %v4556 = vunpack.c.l.b16 %v4244
        %v4557 = vunpack.c.h.b16 %v4244
        %v4558 = vunpack.c.l.b16 %v4245
        %v4559 = vunpack.c.h.b16 %v4245
        %v4560 = vunpack.c.l.b16 %v4246
        %v4561 = vunpack.c.h.b16 %v4246
        %v4562 = vunpack.c.l.b16 %v4247
        %v4563 = vunpack.c.h.b16 %v4247
        %v4564 = vunpack.c.l.b16 %v4248
        %v4565 = vunpack.c.h.b16 %v4248
        %v4566 = vunpack.c.l.b16 %v4249
        %v4567 = vunpack.c.h.b16 %v4249
        %v4568 = vunpack.c.l.b16 %v4250
        %v4569 = vunpack.c.h.b16 %v4250
        %v4570 = vunpack.c.l.b16 %v4251
        %v4571 = vunpack.c.h.b16 %v4251
        %v4572 = vunpack.c.l.b16 %v4252
        %v4573 = vunpack.c.h.b16 %v4252
        %v4574 = vunpack.c.l.b16 %v4253
        %v4575 = vunpack.c.h.b16 %v4253
        %v4576 = vunpack.c.l.b16 %v4254
        %v4577 = vunpack.c.h.b16 %v4254
        %v4578 = vunpack.c.l.b16 %v4255
        %v4579 = vunpack.c.h.b16 %v4255
        %v4580 = vunpack.c.l.b16 %v4256
        %v4581 = vunpack.c.h.b16 %v4256
        %v4582 = vunpack.c.l.b16 %v4257
        %v4583 = vunpack.c.h.b16 %v4257
        %v4584 = vunpack.c.l.b16 %v4258
        %v4585 = vunpack.c.h.b16 %v4258
        %v4586 = vunpack.c.l.b16 %v4259
        %v4587 = vunpack.c.h.b16 %v4259
        %v4588 = vunpack.c.l.b16 %v4260
        %v4589 = vunpack.c.h.b16 %v4260
        %v4590 = vunpack.c.l.b16 %v4261
        %v4591 = vunpack.c.h.b16 %v4261
        %v4592 = vunpack.c.l.b16 %v4262
        %v4593 = vunpack.c.h.b16 %v4262
        %v4594 = vunpack.c.l.b16 %v4263
        %v4595 = vunpack.c.h.b16 %v4263
        %v4596 = vunpack.c.l.b16 %v4264
        %v4597 = vunpack.c.h.b16 %v4264
        %v4598 = vunpack.c.l.b16 %v4265
        %v4599 = vunpack.c.h.b16 %v4265
        %v4600 = vunpack.c.l.b16 %v4266
        %v4601 = vunpack.c.h.b16 %v4266
        %v4602 = vunpack.c.l.b16 %v4267
        %v4603 = vunpack.c.h.b16 %v4267
        %v4604 = vunpack.c.l.b16 %v4268
        %v4605 = vunpack.c.h.b16 %v4268
        %v4606 = vunpack.c.l.b16 %v4269
        %v4607 = vunpack.c.h.b16 %v4269
        %v4608 = vunpack.c.l.b16 %v4270
        %v4609 = vunpack.c.h.b16 %v4270
        %v4610 = vunpack.c.l.b16 %v4271
        %v4611 = vunpack.c.h.b16 %v4271
        %v4612 = vunpack.c.l.b16 %v4272
        %v4613 = vunpack.c.h.b16 %v4272
        %v4614 = vunpack.c.l.b16 %v4273
        %v4615 = vunpack.c.h.b16 %v4273
        %v4616 = vunpack.c.l.b16 %v4274
        %v4617 = vunpack.c.h.b16 %v4274
        %v4618 = vunpack.c.l.b16 %v4275
        %v4619 = vunpack.c.h.b16 %v4275
        %v4620 = vunpack.c.l.b16 %v4276
        %v4621 = vunpack.c.h.b16 %v4276
        %v4622 = vunpack.c.l.b16 %v4277
        %v4623 = vunpack.c.h.b16 %v4277
        %v4624 = vunpack.c.l.b16 %v4278
        %v4625 = vunpack.c.h.b16 %v4278
        %v4626 = vunpack.c.l.b16 %v4279
        %v4627 = vunpack.c.h.b16 %v4279
        %v4628 = vunpack.c.l.b16 %v4280
        %v4629 = vunpack.c.h.b16 %v4280
        %v4630 = vunpack.c.l.b16 %v4281
        %v4631 = vunpack.c.h.b16 %v4281
        %v4632 = vunpack.c.l.b16 %v4282
        %v4633 = vunpack.c.h.b16 %v4282
        %v4634 = vunpack.c.l.b16 %v4283
        %v4635 = vunpack.c.h.b16 %v4283
        %v4636 = vunpack.c.l.b16 %v4284
        %v4637 = vunpack.c.h.b16 %v4284
        %v4638 = vunpack.c.l.b16 %v4285
        %v4639 = vunpack.c.h.b16 %v4285
        %v4640 = vunpack.c.l.b16 %v4286
        %v4641 = vunpack.c.h.b16 %v4286
        %v4642 = vunpack.c.l.b16 %v4287
        %v4643 = vunpack.c.h.b16 %v4287
        %v4644 = vunpack.c.l.b16 %v4288
        %v4645 = vunpack.c.h.b16 %v4288
        %v4646 = vunpack.c.l.b16 %v4289
        %v4647 = vunpack.c.h.b16 %v4289
        %v4648 = vunpack.c.l.b16 %v4290
        %v4649 = vunpack.c.h.b16 %v4290
        %v4650 = vunpack.c.l.b16 %v4291
        %v4651 = vunpack.c.h.b16 %v4291
        %v4652 = vunpack.c.l.b16 %v4292
        %v4653 = vunpack.c.h.b16 %v4292
        %v4654 = vunpack.c.l.b16 %v4293
        %v4655 = vunpack.c.h.b16 %v4293
        %v4656 = vunpack.c.l.b16 %v4294
        %v4657 = vunpack.c.h.b16 %v4294
        %v4658 = vunpack.c.l.b16 %v4295
        %v4659 = vunpack.c.h.b16 %v4295
        %v4660 = vunpack.c.l.b16 %v4296
        %v4661 = vunpack.c.h.b16 %v4296
        %v4662 = vunpack.c.l.b16 %v4297
        %v4663 = vunpack.c.h.b16 %v4297
        %v4664 = vunpack.c.l.b16 %v4298
        %v4665 = vunpack.c.h.b16 %v4298
        %v4666 = vunpack.c.l.b16 %v4299
        %v4667 = vunpack.c.h.b16 %v4299
        %v4668 = vunpack.c.l.b16 %v4300
        %v4669 = vunpack.c.h.b16 %v4300
        %v4670 = vunpack.c.l.b16 %v4301
        %v4671 = vunpack.c.h.b16 %v4301
        %v4672 = vunpack.c.l.b16 %v4302
        %v4673 = vunpack.c.h.b16 %v4302
        %v4674 = vunpack.c.l.b16 %v4303
        %v4675 = vunpack.c.h.b16 %v4303
        %v4676 = vunpack.c.l.b16 %v4304
        %v4677 = vunpack.c.h.b16 %v4304
        %v4678 = vunpack.c.l.b16 %v4305
        %v4679 = vunpack.c.h.b16 %v4305
        %v4680 = vunpack.c.l.b16 %v4306
        %v4681 = vunpack.c.h.b16 %v4306
        %v4682 = vunpack.c.l.b16 %v4307
        %v4683 = vunpack.c.h.b16 %v4307
        %v4684 = vunpack.c.l.b16 %v4308
        %v4685 = vunpack.c.h.b16 %v4308
        %v4686 = vunpack.c.l.b16 %v4309
        %v4687 = vunpack.c.h.b16 %v4309
        %v4688 = vunpack.c.l.b16 %v4310
        %v4689 = vunpack.c.h.b16 %v4310
        %v4690 = vunpack.c.l.b16 %v4311
        %v4691 = vunpack.c.h.b16 %v4311
        %v4692 = vunpack.c.l.b16 %v4312
        %v4693 = vunpack.c.h.b16 %v4312
        %v4694 = vunpack.c.l.b16 %v4313
        %v4695 = vunpack.c.h.b16 %v4313
        %v4696 = vunpack.c.l.b16 %v4314
        %v4697 = vunpack.c.h.b16 %v4314
        %v4698 = vunpack.c.l.b16 %v4315
        %v4699 = vunpack.c.h.b16 %v4315
        %v4700 = vunpack.c.l.b16 %v4316
        %v4701 = vunpack.c.h.b16 %v4316
        %v4702 = vunpack.c.l.b16 %v4317
        %v4703 = vunpack.c.h.b16 %v4317
        %v4704 = vunpack.c.l.b16 %v4318
        %v4705 = vunpack.c.h.b16 %v4318
        %v4706 = vunpack.c.l.b16 %v4319
        %v4707 = vunpack.c.h.b16 %v4319
        %v4708 = vunpack.c.l.b16 %v4320
        %v4709 = vunpack.c.h.b16 %v4320
        %v4710 = vunpack.c.l.b16 %v4321
        %v4711 = vunpack.c.h.b16 %v4321
        %v4712 = vunpack.c.l.b16 %v4322
        %v4713 = vunpack.c.h.b16 %v4322
        %v4714 = vunpack.c.l.b16 %v4323
        %v4715 = vunpack.c.h.b16 %v4323
        %v4716 = vunpack.c.l.b16 %v4324
        %v4717 = vunpack.c.h.b16 %v4324
        %v4718 = vunpack.c.l.b16 %v4325
        %v4719 = vunpack.c.h.b16 %v4325
        %v4720 = vpack.c.b16 %v4468, %v4464
        %v4721 = vpack.c.b16 %v4469, %v4465
        %v4722 = vpack.c.b16 %v4470, %v4466
        %v4723 = vpack.c.b16 %v4471, %v4467
        %v4724 = vpack.c.b16 %v4476, %v4472
        %v4725 = vpack.c.b16 %v4477, %v4473
        %v4726 = vpack.c.b16 %v4478, %v4474
        %v4727 = vpack.c.b16 %v4479, %v4475
        %v4728 = vpack.c.b16 %v4484, %v4480
        %v4729 = vpack.c.b16 %v4485, %v4481
        %v4730 = vpack.c.b16 %v4486, %v4482
        %v4731 = vpack.c.b16 %v4487, %v4483
        %v4732 = vpack.c.b16 %v4492, %v4488
        %v4733 = vpack.c.b16 %v4493, %v4489
        %v4734 = vpack.c.b16 %v4494, %v4490
        %v4735 = vpack.c.b16 %v4495, %v4491
        %v4736 = vpack.c.b16 %v4500, %v4496
        %v4737 = vpack.c.b16 %v4501, %v4497
        %v4738 = vpack.c.b16 %v4502, %v4498
        %v4739 = vpack.c.b16 %v4503, %v4499
        %v4740 = vpack.c.b16 %v4508, %v4504
        %v4741 = vpack.c.b16 %v4509, %v4505
        %v4742 = vpack.c.b16 %v4510, %v4506
        %v4743 = vpack.c.b16 %v4511, %v4507
        %v4744 = vpack.c.b16 %v4516, %v4512
        %v4745 = vpack.c.b16 %v4517, %v4513
        %v4746 = vpack.c.b16 %v4518, %v4514
        %v4747 = vpack.c.b16 %v4519, %v4515
        %v4748 = vpack.c.b16 %v4524, %v4520
        %v4749 = vpack.c.b16 %v4525, %v4521
        %v4750 = vpack.c.b16 %v4526, %v4522
        %v4751 = vpack.c.b16 %v4527, %v4523
        %v4752 = vpack.c.b16 %v4532, %v4528
        %v4753 = vpack.c.b16 %v4533, %v4529
        %v4754 = vpack.c.b16 %v4534, %v4530
        %v4755 = vpack.c.b16 %v4535, %v4531
        %v4756 = vpack.c.b16 %v4540, %v4536
        %v4757 = vpack.c.b16 %v4541, %v4537
        %v4758 = vpack.c.b16 %v4542, %v4538
        %v4759 = vpack.c.b16 %v4543, %v4539
        %v4760 = vpack.c.b16 %v4548, %v4544
        %v4761 = vpack.c.b16 %v4549, %v4545
        %v4762 = vpack.c.b16 %v4550, %v4546
        %v4763 = vpack.c.b16 %v4551, %v4547
        %v4764 = vpack.c.b16 %v4556, %v4552
        %v4765 = vpack.c.b16 %v4557, %v4553
        %v4766 = vpack.c.b16 %v4558, %v4554
        %v4767 = vpack.c.b16 %v4559, %v4555
        %v4768 = vpack.c.b16 %v4564, %v4560
        %v4769 = vpack.c.b16 %v4565, %v4561
        %v4770 = vpack.c.b16 %v4566, %v4562
        %v4771 = vpack.c.b16 %v4567, %v4563
        %v4772 = vpack.c.b16 %v4572, %v4568
        %v4773 = vpack.c.b16 %v4573, %v4569
        %v4774 = vpack.c.b16 %v4574, %v4570
        %v4775 = vpack.c.b16 %v4575, %v4571
        %v4776 = vpack.c.b16 %v4580, %v4576
        %v4777 = vpack.c.b16 %v4581, %v4577
        %v4778 = vpack.c.b16 %v4582, %v4578
        %v4779 = vpack.c.b16 %v4583, %v4579
        %v4780 = vpack.c.b16 %v4588, %v4584
        %v4781 = vpack.c.b16 %v4589, %v4585
        %v4782 = vpack.c.b16 %v4590, %v4586
        %v4783 = vpack.c.b16 %v4591, %v4587
        %v4784 = vpack.c.b16 %v4596, %v4592
        %v4785 = vpack.c.b16 %v4597, %v4593
        %v4786 = vpack.c.b16 %v4598, %v4594
        %v4787 = vpack.c.b16 %v4599, %v4595
        %v4788 = vpack.c.b16 %v4604, %v4600
        %v4789 = vpack.c.b16 %v4605, %v4601
        %v4790 = vpack.c.b16 %v4606, %v4602
        %v4791 = vpack.c.b16 %v4607, %v4603
        %v4792 = vpack.c.b16 %v4612, %v4608
        %v4793 = vpack.c.b16 %v4613, %v4609
        %v4794 = vpack.c.b16 %v4614, %v4610
        %v4795 = vpack.c.b16 %v4615, %v4611
        %v4796 = vpack.c.b16 %v4620, %v4616
        %v4797 = vpack.c.b16 %v4621, %v4617
        %v4798 = vpack.c.b16 %v4622, %v4618
        %v4799 = vpack.c.b16 %v4623, %v4619
        %v4800 = vpack.c.b16 %v4628, %v4624
        %v4801 = vpack.c.b16 %v4629, %v4625
        %v4802 = vpack.c.b16 %v4630, %v4626
        %v4803 = vpack.c.b16 %v4631, %v4627
        %v4804 = vpack.c.b16 %v4636, %v4632
        %v4805 = vpack.c.b16 %v4637, %v4633
        %v4806 = vpack.c.b16 %v4638, %v4634
        %v4807 = vpack.c.b16 %v4639, %v4635
        %v4808 = vpack.c.b16 %v4644, %v4640
        %v4809 = vpack.c.b16 %v4645, %v4641
        %v4810 = vpack.c.b16 %v4646, %v4642
        %v4811 = vpack.c.b16 %v4647, %v4643
        %v4812 = vpack.c.b16 %v4652, %v4648
        %v4813 = vpack.c.b16 %v4653, %v4649
        %v4814 = vpack.c.b16 %v4654, %v4650
        %v4815 = vpack.c.b16 %v4655, %v4651
        %v4816 = vpack.c.b16 %v4660, %v4656
        %v4817 = vpack.c.b16 %v4661, %v4657
        %v4818 = vpack.c.b16 %v4662, %v4658
        %v4819 = vpack.c.b16 %v4663, %v4659
        %v4820 = vpack.c.b16 %v4668, %v4664
        %v4821 = vpack.c.b16 %v4669, %v4665
        %v4822 = vpack.c.b16 %v4670, %v4666
        %v4823 = vpack.c.b16 %v4671, %v4667
        %v4824 = vpack.c.b16 %v4676, %v4672
        %v4825 = vpack.c.b16 %v4677, %v4673
        %v4826 = vpack.c.b16 %v4678, %v4674
        %v4827 = vpack.c.b16 %v4679, %v4675
        %v4828 = vpack.c.b16 %v4684, %v4680
        %v4829 = vpack.c.b16 %v4685, %v4681
        %v4830 = vpack.c.b16 %v4686, %v4682
        %v4831 = vpack.c.b16 %v4687, %v4683
        %v4832 = vpack.c.b16 %v4692, %v4688
        %v4833 = vpack.c.b16 %v4693, %v4689
        %v4834 = vpack.c.b16 %v4694, %v4690
        %v4835 = vpack.c.b16 %v4695, %v4691
        %v4836 = vpack.c.b16 %v4700, %v4696
        %v4837 = vpack.c.b16 %v4701, %v4697
        %v4838 = vpack.c.b16 %v4702, %v4698
        %v4839 = vpack.c.b16 %v4703, %v4699
        %v4840 = vpack.c.b16 %v4708, %v4704
        %v4841 = vpack.c.b16 %v4709, %v4705
        %v4842 = vpack.c.b16 %v4710, %v4706
        %v4843 = vpack.c.b16 %v4711, %v4707
        %v4844 = vpack.c.b16 %v4716, %v4712
        %v4845 = vpack.c.b16 %v4717, %v4713
        %v4846 = vpack.c.b16 %v4718, %v4714
        %v4847 = vpack.c.b16 %v4719, %v4715
        %4976 = vmatpush.bf16.msra.mxu0 %v4748
        %4977 = vmatpush.bf16.msra.mxu0 %v4744
        %4978 = vmatpush.bf16.msra.mxu0 %v4740
        %4979 = vmatpush.bf16.msra.mxu0 %v4736
        %4980 = vmatpush.bf16.msra.mxu0 %v4732
        %4981 = vmatpush.bf16.msra.mxu0 %v4728
        %4982 = vmatpush.bf16.msra.mxu0 %v4724
        %4983 = vmatpush.bf16.msra.mxu0 %v4720
        %4984 = vmatmul.bf16.gmra.mxu0 %v4166
        %v4985 = vpop.f32.mrf.mxu0
        %v4986 = vadd.f32 %v4328, %v4985
        %v4987 = vpop.f32.mrf.mxu0
        %v4988 = vadd.f32 %v4328, %v4987
        %4989 = vmatmul.bf16.gmra.mxu0 %v4170
        %v4990 = vpop.f32.mrf.mxu0
        %v4991 = vadd.f32 %v4328, %v4990
        %v4992 = vpop.f32.mrf.mxu0
        %v4993 = vadd.f32 %v4328, %v4992
        %4994 = vmatmul.bf16.gmra.mxu0 %v4174
        %v4995 = vpop.f32.mrf.mxu0
        %v4996 = vadd.f32 %v4328, %v4995
        %v4997 = vpop.f32.mrf.mxu0
        %v4998 = vadd.f32 %v4328, %v4997
        %4999 = vmatmul.bf16.gmra.mxu0 %v4178
        %v5000 = vpop.f32.mrf.mxu0
        %v5001 = vadd.f32 %v4328, %v5000
        %v5002 = vpop.f32.mrf.mxu0
        %v5003 = vadd.f32 %v4328, %v5002
        %5004 = vmatmul.bf16.gmra.mxu0 %v4182
        %v5005 = vpop.f32.mrf.mxu0
        %v5006 = vadd.f32 %v4328, %v5005
        %v5007 = vpop.f32.mrf.mxu0
        %v5008 = vadd.f32 %v4328, %v5007
        %5009 = vmatmul.bf16.gmra.mxu0 %v4186
        %v5010 = vpop.f32.mrf.mxu0
        %v5011 = vadd.f32 %v4328, %v5010
        %v5012 = vpop.f32.mrf.mxu0
        %v5013 = vadd.f32 %v4328, %v5012
        %5014 = vmatmul.bf16.gmra.mxu0 %v4190
        %v5015 = vpop.f32.mrf.mxu0
        %v5016 = vadd.f32 %v4328, %v5015
        %v5017 = vpop.f32.mrf.mxu0
        %v5018 = vadd.f32 %v4328, %v5017
        %5019 = vmatmul.bf16.gmra.mxu0 %v4194
        %v5020 = vpop.f32.mrf.mxu0
        %v5021 = vadd.f32 %v4328, %v5020
        %v5022 = vpop.f32.mrf.mxu0
        %v5023 = vadd.f32 %v4328, %v5022
        %5024 = vdwg.mxu0
        %5025 = vmatpush.bf16.msra.mxu0 %v4780
        %5026 = vmatpush.bf16.msra.mxu0 %v4776
        %5027 = vmatpush.bf16.msra.mxu0 %v4772
        %5028 = vmatpush.bf16.msra.mxu0 %v4768
        %5029 = vmatpush.bf16.msra.mxu0 %v4764
        %5030 = vmatpush.bf16.msra.mxu0 %v4760
        %5031 = vmatpush.bf16.msra.mxu0 %v4756
        %5032 = vmatpush.bf16.msra.mxu0 %v4752
        %5033 = vmatmul.bf16.gmra.mxu0 %v4167
        %v5034 = vpop.f32.mrf.mxu0
        %v5035 = vadd.f32 %v4986, %v5034
        %v5036 = vpop.f32.mrf.mxu0
        %v5037 = vadd.f32 %v4988, %v5036
        %5038 = vmatmul.bf16.gmra.mxu0 %v4171
        %v5039 = vpop.f32.mrf.mxu0
        %v5040 = vadd.f32 %v4991, %v5039
        %v5041 = vpop.f32.mrf.mxu0
        %v5042 = vadd.f32 %v4993, %v5041
        %5043 = vmatmul.bf16.gmra.mxu0 %v4175
        %v5044 = vpop.f32.mrf.mxu0
        %v5045 = vadd.f32 %v4996, %v5044
        %v5046 = vpop.f32.mrf.mxu0
        %v5047 = vadd.f32 %v4998, %v5046
        %5048 = vmatmul.bf16.gmra.mxu0 %v4179
        %v5049 = vpop.f32.mrf.mxu0
        %v5050 = vadd.f32 %v5001, %v5049
        %v5051 = vpop.f32.mrf.mxu0
        %v5052 = vadd.f32 %v5003, %v5051
        %5053 = vmatmul.bf16.gmra.mxu0 %v4183
        %v5054 = vpop.f32.mrf.mxu0
        %v5055 = vadd.f32 %v5006, %v5054
        %v5056 = vpop.f32.mrf.mxu0
        %v5057 = vadd.f32 %v5008, %v5056
        %5058 = vmatmul.bf16.gmra.mxu0 %v4187
        %v5059 = vpop.f32.mrf.mxu0
        %v5060 = vadd.f32 %v5011, %v5059
        %v5061 = vpop.f32.mrf.mxu0
        %v5062 = vadd.f32 %v5013, %v5061
        %5063 = vmatmul.bf16.gmra.mxu0 %v4191
        %v5064 = vpop.f32.mrf.mxu0
        %v5065 = vadd.f32 %v5016, %v5064
        %v5066 = vpop.f32.mrf.mxu0
        %v5067 = vadd.f32 %v5018, %v5066
        %5068 = vmatmul.bf16.gmra.mxu0 %v4195
        %v5069 = vpop.f32.mrf.mxu0
        %v5070 = vadd.f32 %v5021, %v5069
        %v5071 = vpop.f32.mrf.mxu0
        %v5072 = vadd.f32 %v5023, %v5071
        %5073 = vdwg.mxu0
        %5074 = vmatpush.bf16.msra.mxu0 %v4812
        %5075 = vmatpush.bf16.msra.mxu0 %v4808
        %5076 = vmatpush.bf16.msra.mxu0 %v4804
        %5077 = vmatpush.bf16.msra.mxu0 %v4800
        %5078 = vmatpush.bf16.msra.mxu0 %v4796
        %5079 = vmatpush.bf16.msra.mxu0 %v4792
        %5080 = vmatpush.bf16.msra.mxu0 %v4788
        %5081 = vmatpush.bf16.msra.mxu0 %v4784
        %5082 = vmatmul.bf16.gmra.mxu0 %v4168
        %v5083 = vpop.f32.mrf.mxu0
        %v5084 = vadd.f32 %v5035, %v5083
        %v5085 = vpop.f32.mrf.mxu0
        %v5086 = vadd.f32 %v5037, %v5085
        %5087 = vmatmul.bf16.gmra.mxu0 %v4172
        %v5088 = vpop.f32.mrf.mxu0
        %v5089 = vadd.f32 %v5040, %v5088
        %v5090 = vpop.f32.mrf.mxu0
        %v5091 = vadd.f32 %v5042, %v5090
        %5092 = vmatmul.bf16.gmra.mxu0 %v4176
        %v5093 = vpop.f32.mrf.mxu0
        %v5094 = vadd.f32 %v5045, %v5093
        %v5095 = vpop.f32.mrf.mxu0
        %v5096 = vadd.f32 %v5047, %v5095
        %5097 = vmatmul.bf16.gmra.mxu0 %v4180
        %v5098 = vpop.f32.mrf.mxu0
        %v5099 = vadd.f32 %v5050, %v5098
        %v5100 = vpop.f32.mrf.mxu0
        %v5101 = vadd.f32 %v5052, %v5100
        %5102 = vmatmul.bf16.gmra.mxu0 %v4184
        %v5103 = vpop.f32.mrf.mxu0
        %v5104 = vadd.f32 %v5055, %v5103
        %v5105 = vpop.f32.mrf.mxu0
        %v5106 = vadd.f32 %v5057, %v5105
        %5107 = vmatmul.bf16.gmra.mxu0 %v4188
        %v5108 = vpop.f32.mrf.mxu0
        %v5109 = vadd.f32 %v5060, %v5108
        %v5110 = vpop.f32.mrf.mxu0
        %v5111 = vadd.f32 %v5062, %v5110
        %5112 = vmatmul.bf16.gmra.mxu0 %v4192
        %v5113 = vpop.f32.mrf.mxu0
        %v5114 = vadd.f32 %v5065, %v5113
        %v5115 = vpop.f32.mrf.mxu0
        %v5116 = vadd.f32 %v5067, %v5115
        %5117 = vmatmul.bf16.gmra.mxu0 %v4196
        %v5118 = vpop.f32.mrf.mxu0
        %v5119 = vadd.f32 %v5070, %v5118
        %v5120 = vpop.f32.mrf.mxu0
        %v5121 = vadd.f32 %v5072, %v5120
        %5122 = vdwg.mxu0
        %5123 = vmatpush.bf16.msra.mxu0 %v4844
        %5124 = vmatpush.bf16.msra.mxu0 %v4840
        %5125 = vmatpush.bf16.msra.mxu0 %v4836
        %5126 = vmatpush.bf16.msra.mxu0 %v4832
        %5127 = vmatpush.bf16.msra.mxu0 %v4828
        %5128 = vmatpush.bf16.msra.mxu0 %v4824
        %5129 = vmatpush.bf16.msra.mxu0 %v4820
        %5130 = vmatpush.bf16.msra.mxu0 %v4816
        %5131 = vmatmul.bf16.gmra.mxu0 %v4169
        %v5132 = vpop.f32.mrf.mxu0
        %v5133 = vadd.f32 %v5084, %v5132
        %v5134 = vpop.f32.mrf.mxu0
        %v5135 = vadd.f32 %v5086, %v5134
        %5136 = vmatmul.bf16.gmra.mxu0 %v4173
        %v5137 = vpop.f32.mrf.mxu0
        %v5138 = vadd.f32 %v5089, %v5137
        %v5139 = vpop.f32.mrf.mxu0
        %v5140 = vadd.f32 %v5091, %v5139
        %5141 = vmatmul.bf16.gmra.mxu0 %v4177
        %v5142 = vpop.f32.mrf.mxu0
        %v5143 = vadd.f32 %v5094, %v5142
        %v5144 = vpop.f32.mrf.mxu0
        %v5145 = vadd.f32 %v5096, %v5144
        %5146 = vmatmul.bf16.gmra.mxu0 %v4181
        %v5147 = vpop.f32.mrf.mxu0
        %v5148 = vadd.f32 %v5099, %v5147
        %v5149 = vpop.f32.mrf.mxu0
        %v5150 = vadd.f32 %v5101, %v5149
        %5151 = vmatmul.bf16.gmra.mxu0 %v4185
        %v5152 = vpop.f32.mrf.mxu0
        %v5153 = vadd.f32 %v5104, %v5152
        %v5154 = vpop.f32.mrf.mxu0
        %v5155 = vadd.f32 %v5106, %v5154
        %5156 = vmatmul.bf16.gmra.mxu0 %v4189
        %v5157 = vpop.f32.mrf.mxu0
        %v5158 = vadd.f32 %v5109, %v5157
        %v5159 = vpop.f32.mrf.mxu0
        %v5160 = vadd.f32 %v5111, %v5159
        %5161 = vmatmul.bf16.gmra.mxu0 %v4193
        %v5162 = vpop.f32.mrf.mxu0
        %v5163 = vadd.f32 %v5114, %v5162
        %v5164 = vpop.f32.mrf.mxu0
        %v5165 = vadd.f32 %v5116, %v5164
        %5166 = vmatmul.bf16.gmra.mxu0 %v4197
        %v5167 = vpop.f32.mrf.mxu0
        %v5168 = vadd.f32 %v5119, %v5167
        %v5169 = vpop.f32.mrf.mxu0
        %v5170 = vadd.f32 %v5121, %v5169
        %5171 = vdwg.mxu0
        %5172 = vmatpush.bf16.msra.mxu0 %v4749
        %5173 = vmatpush.bf16.msra.mxu0 %v4745
        %5174 = vmatpush.bf16.msra.mxu0 %v4741
        %5175 = vmatpush.bf16.msra.mxu0 %v4737
        %5176 = vmatpush.bf16.msra.mxu0 %v4733
        %5177 = vmatpush.bf16.msra.mxu0 %v4729
        %5178 = vmatpush.bf16.msra.mxu0 %v4725
        %5179 = vmatpush.bf16.msra.mxu0 %v4721
        %5180 = vmatmul.bf16.gmra.mxu0 %v4166
        %v5181 = vpop.f32.mrf.mxu0
        %v5182 = vadd.f32 %v4329, %v5181
        %v5183 = vpop.f32.mrf.mxu0
        %v5184 = vadd.f32 %v4329, %v5183
        %5185 = vmatmul.bf16.gmra.mxu0 %v4170
        %v5186 = vpop.f32.mrf.mxu0
        %v5187 = vadd.f32 %v4329, %v5186
        %v5188 = vpop.f32.mrf.mxu0
        %v5189 = vadd.f32 %v4329, %v5188
        %5190 = vmatmul.bf16.gmra.mxu0 %v4174
        %v5191 = vpop.f32.mrf.mxu0
        %v5192 = vadd.f32 %v4329, %v5191
        %v5193 = vpop.f32.mrf.mxu0
        %v5194 = vadd.f32 %v4329, %v5193
        %5195 = vmatmul.bf16.gmra.mxu0 %v4178
        %v5196 = vpop.f32.mrf.mxu0
        %v5197 = vadd.f32 %v4329, %v5196
        %v5198 = vpop.f32.mrf.mxu0
        %v5199 = vadd.f32 %v4329, %v5198
        %5200 = vmatmul.bf16.gmra.mxu0 %v4182
        %v5201 = vpop.f32.mrf.mxu0
        %v5202 = vadd.f32 %v4329, %v5201
        %v5203 = vpop.f32.mrf.mxu0
        %v5204 = vadd.f32 %v4329, %v5203
        %5205 = vmatmul.bf16.gmra.mxu0 %v4186
        %v5206 = vpop.f32.mrf.mxu0
        %v5207 = vadd.f32 %v4329, %v5206
        %v5208 = vpop.f32.mrf.mxu0
        %v5209 = vadd.f32 %v4329, %v5208
        %5210 = vmatmul.bf16.gmra.mxu0 %v4190
        %v5211 = vpop.f32.mrf.mxu0
        %v5212 = vadd.f32 %v4329, %v5211
        %v5213 = vpop.f32.mrf.mxu0
        %v5214 = vadd.f32 %v4329, %v5213
        %5215 = vmatmul.bf16.gmra.mxu0 %v4194
        %v5216 = vpop.f32.mrf.mxu0
        %v5217 = vadd.f32 %v4329, %v5216
        %v5218 = vpop.f32.mrf.mxu0
        %v5219 = vadd.f32 %v4329, %v5218
        %5220 = vdwg.mxu0
        %5221 = vmatpush.bf16.msra.mxu0 %v4781
        %5222 = vmatpush.bf16.msra.mxu0 %v4777
        %5223 = vmatpush.bf16.msra.mxu0 %v4773
        %5224 = vmatpush.bf16.msra.mxu0 %v4769
        %5225 = vmatpush.bf16.msra.mxu0 %v4765
        %5226 = vmatpush.bf16.msra.mxu0 %v4761
        %5227 = vmatpush.bf16.msra.mxu0 %v4757
        %5228 = vmatpush.bf16.msra.mxu0 %v4753
        %5229 = vmatmul.bf16.gmra.mxu0 %v4167
        %v5230 = vpop.f32.mrf.mxu0
        %v5231 = vadd.f32 %v5182, %v5230
        %v5232 = vpop.f32.mrf.mxu0
        %v5233 = vadd.f32 %v5184, %v5232
        %5234 = vmatmul.bf16.gmra.mxu0 %v4171
        %v5235 = vpop.f32.mrf.mxu0
        %v5236 = vadd.f32 %v5187, %v5235
        %v5237 = vpop.f32.mrf.mxu0
        %v5238 = vadd.f32 %v5189, %v5237
        %5239 = vmatmul.bf16.gmra.mxu0 %v4175
        %v5240 = vpop.f32.mrf.mxu0
        %v5241 = vadd.f32 %v5192, %v5240
        %v5242 = vpop.f32.mrf.mxu0
        %v5243 = vadd.f32 %v5194, %v5242
        %5244 = vmatmul.bf16.gmra.mxu0 %v4179
        %v5245 = vpop.f32.mrf.mxu0
        %v5246 = vadd.f32 %v5197, %v5245
        %v5247 = vpop.f32.mrf.mxu0
        %v5248 = vadd.f32 %v5199, %v5247
        %5249 = vmatmul.bf16.gmra.mxu0 %v4183
        %v5250 = vpop.f32.mrf.mxu0
        %v5251 = vadd.f32 %v5202, %v5250
        %v5252 = vpop.f32.mrf.mxu0
        %v5253 = vadd.f32 %v5204, %v5252
        %5254 = vmatmul.bf16.gmra.mxu0 %v4187
        %v5255 = vpop.f32.mrf.mxu0
        %v5256 = vadd.f32 %v5207, %v5255
        %v5257 = vpop.f32.mrf.mxu0
        %v5258 = vadd.f32 %v5209, %v5257
        %5259 = vmatmul.bf16.gmra.mxu0 %v4191
        %v5260 = vpop.f32.mrf.mxu0
        %v5261 = vadd.f32 %v5212, %v5260
        %v5262 = vpop.f32.mrf.mxu0
        %v5263 = vadd.f32 %v5214, %v5262
        %5264 = vmatmul.bf16.gmra.mxu0 %v4195
        %v5265 = vpop.f32.mrf.mxu0
        %v5266 = vadd.f32 %v5217, %v5265
        %v5267 = vpop.f32.mrf.mxu0
        %v5268 = vadd.f32 %v5219, %v5267
        %5269 = vdwg.mxu0
        %5270 = vmatpush.bf16.msra.mxu0 %v4813
        %5271 = vmatpush.bf16.msra.mxu0 %v4809
        %5272 = vmatpush.bf16.msra.mxu0 %v4805
        %5273 = vmatpush.bf16.msra.mxu0 %v4801
        %5274 = vmatpush.bf16.msra.mxu0 %v4797
        %5275 = vmatpush.bf16.msra.mxu0 %v4793
        %5276 = vmatpush.bf16.msra.mxu0 %v4789
        %5277 = vmatpush.bf16.msra.mxu0 %v4785
        %5278 = vmatmul.bf16.gmra.mxu0 %v4168
        %v5279 = vpop.f32.mrf.mxu0
        %v5280 = vadd.f32 %v5231, %v5279
        %v5281 = vpop.f32.mrf.mxu0
        %v5282 = vadd.f32 %v5233, %v5281
        %5283 = vmatmul.bf16.gmra.mxu0 %v4172
        %v5284 = vpop.f32.mrf.mxu0
        %v5285 = vadd.f32 %v5236, %v5284
        %v5286 = vpop.f32.mrf.mxu0
        %v5287 = vadd.f32 %v5238, %v5286
        %5288 = vmatmul.bf16.gmra.mxu0 %v4176
        %v5289 = vpop.f32.mrf.mxu0
        %v5290 = vadd.f32 %v5241, %v5289
        %v5291 = vpop.f32.mrf.mxu0
        %v5292 = vadd.f32 %v5243, %v5291
        %5293 = vmatmul.bf16.gmra.mxu0 %v4180
        %v5294 = vpop.f32.mrf.mxu0
        %v5295 = vadd.f32 %v5246, %v5294
        %v5296 = vpop.f32.mrf.mxu0
        %v5297 = vadd.f32 %v5248, %v5296
        %5298 = vmatmul.bf16.gmra.mxu0 %v4184
        %v5299 = vpop.f32.mrf.mxu0
        %v5300 = vadd.f32 %v5251, %v5299
        %v5301 = vpop.f32.mrf.mxu0
        %v5302 = vadd.f32 %v5253, %v5301
        %5303 = vmatmul.bf16.gmra.mxu0 %v4188
        %v5304 = vpop.f32.mrf.mxu0
        %v5305 = vadd.f32 %v5256, %v5304
        %v5306 = vpop.f32.mrf.mxu0
        %v5307 = vadd.f32 %v5258, %v5306
        %5308 = vmatmul.bf16.gmra.mxu0 %v4192
        %v5309 = vpop.f32.mrf.mxu0
        %v5310 = vadd.f32 %v5261, %v5309
        %v5311 = vpop.f32.mrf.mxu0
        %v5312 = vadd.f32 %v5263, %v5311
        %5313 = vmatmul.bf16.gmra.mxu0 %v4196
        %v5314 = vpop.f32.mrf.mxu0
        %v5315 = vadd.f32 %v5266, %v5314
        %v5316 = vpop.f32.mrf.mxu0
        %v5317 = vadd.f32 %v5268, %v5316
        %5318 = vdwg.mxu0
        %5319 = vmatpush.bf16.msra.mxu0 %v4845
        %5320 = vmatpush.bf16.msra.mxu0 %v4841
        %5321 = vmatpush.bf16.msra.mxu0 %v4837
        %5322 = vmatpush.bf16.msra.mxu0 %v4833
        %5323 = vmatpush.bf16.msra.mxu0 %v4829
        %5324 = vmatpush.bf16.msra.mxu0 %v4825
        %5325 = vmatpush.bf16.msra.mxu0 %v4821
        %5326 = vmatpush.bf16.msra.mxu0 %v4817
        %5327 = vmatmul.bf16.gmra.mxu0 %v4169
        %v5328 = vpop.f32.mrf.mxu0
        %v5329 = vadd.f32 %v5280, %v5328
        %v5330 = vpop.f32.mrf.mxu0
        %v5331 = vadd.f32 %v5282, %v5330
        %5332 = vmatmul.bf16.gmra.mxu0 %v4173
        %v5333 = vpop.f32.mrf.mxu0
        %v5334 = vadd.f32 %v5285, %v5333
        %v5335 = vpop.f32.mrf.mxu0
        %v5336 = vadd.f32 %v5287, %v5335
        %5337 = vmatmul.bf16.gmra.mxu0 %v4177
        %v5338 = vpop.f32.mrf.mxu0
        %v5339 = vadd.f32 %v5290, %v5338
        %v5340 = vpop.f32.mrf.mxu0
        %v5341 = vadd.f32 %v5292, %v5340
        %5342 = vmatmul.bf16.gmra.mxu0 %v4181
        %v5343 = vpop.f32.mrf.mxu0
        %v5344 = vadd.f32 %v5295, %v5343
        %v5345 = vpop.f32.mrf.mxu0
        %v5346 = vadd.f32 %v5297, %v5345
        %5347 = vmatmul.bf16.gmra.mxu0 %v4185
        %v5348 = vpop.f32.mrf.mxu0
        %v5349 = vadd.f32 %v5300, %v5348
        %v5350 = vpop.f32.mrf.mxu0
        %v5351 = vadd.f32 %v5302, %v5350
        %5352 = vmatmul.bf16.gmra.mxu0 %v4189
        %v5353 = vpop.f32.mrf.mxu0
        %v5354 = vadd.f32 %v5305, %v5353
        %v5355 = vpop.f32.mrf.mxu0
        %v5356 = vadd.f32 %v5307, %v5355
        %5357 = vmatmul.bf16.gmra.mxu0 %v4193
        %v5358 = vpop.f32.mrf.mxu0
        %v5359 = vadd.f32 %v5310, %v5358
        %v5360 = vpop.f32.mrf.mxu0
        %v5361 = vadd.f32 %v5312, %v5360
        %5362 = vmatmul.bf16.gmra.mxu0 %v4197
        %v5363 = vpop.f32.mrf.mxu0
        %v5364 = vadd.f32 %v5315, %v5363
        %v5365 = vpop.f32.mrf.mxu0
        %v5366 = vadd.f32 %v5317, %v5365
        %5367 = vdwg.mxu0
        %5368 = vmatpush.bf16.msra.mxu0 %v4750
        %5369 = vmatpush.bf16.msra.mxu0 %v4746
        %5370 = vmatpush.bf16.msra.mxu0 %v4742
        %5371 = vmatpush.bf16.msra.mxu0 %v4738
        %5372 = vmatpush.bf16.msra.mxu0 %v4734
        %5373 = vmatpush.bf16.msra.mxu0 %v4730
        %5374 = vmatpush.bf16.msra.mxu0 %v4726
        %5375 = vmatpush.bf16.msra.mxu0 %v4722
        %5376 = vmatmul.bf16.gmra.mxu0 %v4166
        %v5377 = vpop.f32.mrf.mxu0
        %v5378 = vadd.f32 %v4330, %v5377
        %v5379 = vpop.f32.mrf.mxu0
        %v5380 = vadd.f32 %v4330, %v5379
        %5381 = vmatmul.bf16.gmra.mxu0 %v4170
        %v5382 = vpop.f32.mrf.mxu0
        %v5383 = vadd.f32 %v4330, %v5382
        %v5384 = vpop.f32.mrf.mxu0
        %v5385 = vadd.f32 %v4330, %v5384
        %5386 = vmatmul.bf16.gmra.mxu0 %v4174
        %v5387 = vpop.f32.mrf.mxu0
        %v5388 = vadd.f32 %v4330, %v5387
        %v5389 = vpop.f32.mrf.mxu0
        %v5390 = vadd.f32 %v4330, %v5389
        %5391 = vmatmul.bf16.gmra.mxu0 %v4178
        %v5392 = vpop.f32.mrf.mxu0
        %v5393 = vadd.f32 %v4330, %v5392
        %v5394 = vpop.f32.mrf.mxu0
        %v5395 = vadd.f32 %v4330, %v5394
        %5396 = vmatmul.bf16.gmra.mxu0 %v4182
        %v5397 = vpop.f32.mrf.mxu0
        %v5398 = vadd.f32 %v4330, %v5397
        %v5399 = vpop.f32.mrf.mxu0
        %v5400 = vadd.f32 %v4330, %v5399
        %5401 = vmatmul.bf16.gmra.mxu0 %v4186
        %v5402 = vpop.f32.mrf.mxu0
        %v5403 = vadd.f32 %v4330, %v5402
        %v5404 = vpop.f32.mrf.mxu0
        %v5405 = vadd.f32 %v4330, %v5404
        %5406 = vmatmul.bf16.gmra.mxu0 %v4190
        %v5407 = vpop.f32.mrf.mxu0
        %v5408 = vadd.f32 %v4330, %v5407
        %v5409 = vpop.f32.mrf.mxu0
        %v5410 = vadd.f32 %v4330, %v5409
        %5411 = vmatmul.bf16.gmra.mxu0 %v4194
        %v5412 = vpop.f32.mrf.mxu0
        %v5413 = vadd.f32 %v4330, %v5412
        %v5414 = vpop.f32.mrf.mxu0
        %v5415 = vadd.f32 %v4330, %v5414
        %5416 = vdwg.mxu0
        %5417 = vmatpush.bf16.msra.mxu0 %v4782
        %5418 = vmatpush.bf16.msra.mxu0 %v4778
        %5419 = vmatpush.bf16.msra.mxu0 %v4774
        %5420 = vmatpush.bf16.msra.mxu0 %v4770
        %5421 = vmatpush.bf16.msra.mxu0 %v4766
        %5422 = vmatpush.bf16.msra.mxu0 %v4762
        %5423 = vmatpush.bf16.msra.mxu0 %v4758
        %5424 = vmatpush.bf16.msra.mxu0 %v4754
        %5425 = vmatmul.bf16.gmra.mxu0 %v4167
        %v5426 = vpop.f32.mrf.mxu0
        %v5427 = vadd.f32 %v5378, %v5426
        %v5428 = vpop.f32.mrf.mxu0
        %v5429 = vadd.f32 %v5380, %v5428
        %5430 = vmatmul.bf16.gmra.mxu0 %v4171
        %v5431 = vpop.f32.mrf.mxu0
        %v5432 = vadd.f32 %v5383, %v5431
        %v5433 = vpop.f32.mrf.mxu0
        %v5434 = vadd.f32 %v5385, %v5433
        %5435 = vmatmul.bf16.gmra.mxu0 %v4175
        %v5436 = vpop.f32.mrf.mxu0
        %v5437 = vadd.f32 %v5388, %v5436
        %v5438 = vpop.f32.mrf.mxu0
        %v5439 = vadd.f32 %v5390, %v5438
        %5440 = vmatmul.bf16.gmra.mxu0 %v4179
        %v5441 = vpop.f32.mrf.mxu0
        %v5442 = vadd.f32 %v5393, %v5441
        %v5443 = vpop.f32.mrf.mxu0
        %v5444 = vadd.f32 %v5395, %v5443
        %5445 = vmatmul.bf16.gmra.mxu0 %v4183
        %v5446 = vpop.f32.mrf.mxu0
        %v5447 = vadd.f32 %v5398, %v5446
        %v5448 = vpop.f32.mrf.mxu0
        %v5449 = vadd.f32 %v5400, %v5448
        %5450 = vmatmul.bf16.gmra.mxu0 %v4187
        %v5451 = vpop.f32.mrf.mxu0
        %v5452 = vadd.f32 %v5403, %v5451
        %v5453 = vpop.f32.mrf.mxu0
        %v5454 = vadd.f32 %v5405, %v5453
        %5455 = vmatmul.bf16.gmra.mxu0 %v4191
        %v5456 = vpop.f32.mrf.mxu0
        %v5457 = vadd.f32 %v5408, %v5456
        %v5458 = vpop.f32.mrf.mxu0
        %v5459 = vadd.f32 %v5410, %v5458
        %5460 = vmatmul.bf16.gmra.mxu0 %v4195
        %v5461 = vpop.f32.mrf.mxu0
        %v5462 = vadd.f32 %v5413, %v5461
        %v5463 = vpop.f32.mrf.mxu0
        %v5464 = vadd.f32 %v5415, %v5463
        %5465 = vdwg.mxu0
        %5466 = vmatpush.bf16.msra.mxu0 %v4814
        %5467 = vmatpush.bf16.msra.mxu0 %v4810
        %5468 = vmatpush.bf16.msra.mxu0 %v4806
        %5469 = vmatpush.bf16.msra.mxu0 %v4802
        %5470 = vmatpush.bf16.msra.mxu0 %v4798
        %5471 = vmatpush.bf16.msra.mxu0 %v4794
        %5472 = vmatpush.bf16.msra.mxu0 %v4790
        %5473 = vmatpush.bf16.msra.mxu0 %v4786
        %5474 = vmatmul.bf16.gmra.mxu0 %v4168
        %v5475 = vpop.f32.mrf.mxu0
        %v5476 = vadd.f32 %v5427, %v5475
        %v5477 = vpop.f32.mrf.mxu0
        %v5478 = vadd.f32 %v5429, %v5477
        %5479 = vmatmul.bf16.gmra.mxu0 %v4172
        %v5480 = vpop.f32.mrf.mxu0
        %v5481 = vadd.f32 %v5432, %v5480
        %v5482 = vpop.f32.mrf.mxu0
        %v5483 = vadd.f32 %v5434, %v5482
        %5484 = vmatmul.bf16.gmra.mxu0 %v4176
        %v5485 = vpop.f32.mrf.mxu0
        %v5486 = vadd.f32 %v5437, %v5485
        %v5487 = vpop.f32.mrf.mxu0
        %v5488 = vadd.f32 %v5439, %v5487
        %5489 = vmatmul.bf16.gmra.mxu0 %v4180
        %v5490 = vpop.f32.mrf.mxu0
        %v5491 = vadd.f32 %v5442, %v5490
        %v5492 = vpop.f32.mrf.mxu0
        %v5493 = vadd.f32 %v5444, %v5492
        %5494 = vmatmul.bf16.gmra.mxu0 %v4184
        %v5495 = vpop.f32.mrf.mxu0
        %v5496 = vadd.f32 %v5447, %v5495
        %v5497 = vpop.f32.mrf.mxu0
        %v5498 = vadd.f32 %v5449, %v5497
        %5499 = vmatmul.bf16.gmra.mxu0 %v4188
        %v5500 = vpop.f32.mrf.mxu0
        %v5501 = vadd.f32 %v5452, %v5500
        %v5502 = vpop.f32.mrf.mxu0
        %v5503 = vadd.f32 %v5454, %v5502
        %5504 = vmatmul.bf16.gmra.mxu0 %v4192
        %v5505 = vpop.f32.mrf.mxu0
        %v5506 = vadd.f32 %v5457, %v5505
        %v5507 = vpop.f32.mrf.mxu0
        %v5508 = vadd.f32 %v5459, %v5507
        %5509 = vmatmul.bf16.gmra.mxu0 %v4196
        %v5510 = vpop.f32.mrf.mxu0
        %v5511 = vadd.f32 %v5462, %v5510
        %v5512 = vpop.f32.mrf.mxu0
        %v5513 = vadd.f32 %v5464, %v5512
        %5514 = vdwg.mxu0
        %5515 = vmatpush.bf16.msra.mxu0 %v4846
        %5516 = vmatpush.bf16.msra.mxu0 %v4842
        %5517 = vmatpush.bf16.msra.mxu0 %v4838
        %5518 = vmatpush.bf16.msra.mxu0 %v4834
        %5519 = vmatpush.bf16.msra.mxu0 %v4830
        %5520 = vmatpush.bf16.msra.mxu0 %v4826
        %5521 = vmatpush.bf16.msra.mxu0 %v4822
        %5522 = vmatpush.bf16.msra.mxu0 %v4818
        %5523 = vmatmul.bf16.gmra.mxu0 %v4169
        %v5524 = vpop.f32.mrf.mxu0
        %v5525 = vadd.f32 %v5476, %v5524
        %v5526 = vpop.f32.mrf.mxu0
        %v5527 = vadd.f32 %v5478, %v5526
        %5528 = vmatmul.bf16.gmra.mxu0 %v4173
        %v5529 = vpop.f32.mrf.mxu0
        %v5530 = vadd.f32 %v5481, %v5529
        %v5531 = vpop.f32.mrf.mxu0
        %v5532 = vadd.f32 %v5483, %v5531
        %5533 = vmatmul.bf16.gmra.mxu0 %v4177
        %v5534 = vpop.f32.mrf.mxu0
        %v5535 = vadd.f32 %v5486, %v5534
        %v5536 = vpop.f32.mrf.mxu0
        %v5537 = vadd.f32 %v5488, %v5536
        %5538 = vmatmul.bf16.gmra.mxu0 %v4181
        %v5539 = vpop.f32.mrf.mxu0
        %v5540 = vadd.f32 %v5491, %v5539
        %v5541 = vpop.f32.mrf.mxu0
        %v5542 = vadd.f32 %v5493, %v5541
        %5543 = vmatmul.bf16.gmra.mxu0 %v4185
        %v5544 = vpop.f32.mrf.mxu0
        %v5545 = vadd.f32 %v5496, %v5544
        %v5546 = vpop.f32.mrf.mxu0
        %v5547 = vadd.f32 %v5498, %v5546
        %5548 = vmatmul.bf16.gmra.mxu0 %v4189
        %v5549 = vpop.f32.mrf.mxu0
        %v5550 = vadd.f32 %v5501, %v5549
        %v5551 = vpop.f32.mrf.mxu0
        %v5552 = vadd.f32 %v5503, %v5551
        %5553 = vmatmul.bf16.gmra.mxu0 %v4193
        %v5554 = vpop.f32.mrf.mxu0
        %v5555 = vadd.f32 %v5506, %v5554
        %v5556 = vpop.f32.mrf.mxu0
        %v5557 = vadd.f32 %v5508, %v5556
        %5558 = vmatmul.bf16.gmra.mxu0 %v4197
        %v5559 = vpop.f32.mrf.mxu0
        %v5560 = vadd.f32 %v5511, %v5559
        %v5561 = vpop.f32.mrf.mxu0
        %v5562 = vadd.f32 %v5513, %v5561
        %5563 = vdwg.mxu0
        %5564 = vmatpush.bf16.msra.mxu0 %v4751
        %5565 = vmatpush.bf16.msra.mxu0 %v4747
        %5566 = vmatpush.bf16.msra.mxu0 %v4743
        %5567 = vmatpush.bf16.msra.mxu0 %v4739
        %5568 = vmatpush.bf16.msra.mxu0 %v4735
        %5569 = vmatpush.bf16.msra.mxu0 %v4731
        %5570 = vmatpush.bf16.msra.mxu0 %v4727
        %5571 = vmatpush.bf16.msra.mxu0 %v4723
        %5572 = vmatmul.bf16.gmra.mxu0 %v4166
        %v5573 = vpop.f32.mrf.mxu0
        %v5574 = vadd.f32 %v4331, %v5573
        %v5575 = vpop.f32.mrf.mxu0
        %v5576 = vadd.f32 %v4331, %v5575
        %5577 = vmatmul.bf16.gmra.mxu0 %v4170
        %v5578 = vpop.f32.mrf.mxu0
        %v5579 = vadd.f32 %v4331, %v5578
        %v5580 = vpop.f32.mrf.mxu0
        %v5581 = vadd.f32 %v4331, %v5580
        %5582 = vmatmul.bf16.gmra.mxu0 %v4174
        %v5583 = vpop.f32.mrf.mxu0
        %v5584 = vadd.f32 %v4331, %v5583
        %v5585 = vpop.f32.mrf.mxu0
        %v5586 = vadd.f32 %v4331, %v5585
        %5587 = vmatmul.bf16.gmra.mxu0 %v4178
        %v5588 = vpop.f32.mrf.mxu0
        %v5589 = vadd.f32 %v4331, %v5588
        %v5590 = vpop.f32.mrf.mxu0
        %v5591 = vadd.f32 %v4331, %v5590
        %5592 = vmatmul.bf16.gmra.mxu0 %v4182
        %v5593 = vpop.f32.mrf.mxu0
        %v5594 = vadd.f32 %v4331, %v5593
        %v5595 = vpop.f32.mrf.mxu0
        %v5596 = vadd.f32 %v4331, %v5595
        %5597 = vmatmul.bf16.gmra.mxu0 %v4186
        %v5598 = vpop.f32.mrf.mxu0
        %v5599 = vadd.f32 %v4331, %v5598
        %v5600 = vpop.f32.mrf.mxu0
        %v5601 = vadd.f32 %v4331, %v5600
        %5602 = vmatmul.bf16.gmra.mxu0 %v4190
        %v5603 = vpop.f32.mrf.mxu0
        %v5604 = vadd.f32 %v4331, %v5603
        %v5605 = vpop.f32.mrf.mxu0
        %v5606 = vadd.f32 %v4331, %v5605
        %5607 = vmatmul.bf16.gmra.mxu0 %v4194
        %v5608 = vpop.f32.mrf.mxu0
        %v5609 = vadd.f32 %v4331, %v5608
        %v5610 = vpop.f32.mrf.mxu0
        %v5611 = vadd.f32 %v4331, %v5610
        %5612 = vdwg.mxu0
        %5613 = vmatpush.bf16.msra.mxu0 %v4783
        %5614 = vmatpush.bf16.msra.mxu0 %v4779
        %5615 = vmatpush.bf16.msra.mxu0 %v4775
        %5616 = vmatpush.bf16.msra.mxu0 %v4771
        %5617 = vmatpush.bf16.msra.mxu0 %v4767
        %5618 = vmatpush.bf16.msra.mxu0 %v4763
        %5619 = vmatpush.bf16.msra.mxu0 %v4759
        %5620 = vmatpush.bf16.msra.mxu0 %v4755
        %5621 = vmatmul.bf16.gmra.mxu0 %v4167
        %v5622 = vpop.f32.mrf.mxu0
        %v5623 = vadd.f32 %v5574, %v5622
        %v5624 = vpop.f32.mrf.mxu0
        %v5625 = vadd.f32 %v5576, %v5624
        %5626 = vmatmul.bf16.gmra.mxu0 %v4171
        %v5627 = vpop.f32.mrf.mxu0
        %v5628 = vadd.f32 %v5579, %v5627
        %v5629 = vpop.f32.mrf.mxu0
        %v5630 = vadd.f32 %v5581, %v5629
        %5631 = vmatmul.bf16.gmra.mxu0 %v4175
        %v5632 = vpop.f32.mrf.mxu0
        %v5633 = vadd.f32 %v5584, %v5632
        %v5634 = vpop.f32.mrf.mxu0
        %v5635 = vadd.f32 %v5586, %v5634
        %5636 = vmatmul.bf16.gmra.mxu0 %v4179
        %v5637 = vpop.f32.mrf.mxu0
        %v5638 = vadd.f32 %v5589, %v5637
        %v5639 = vpop.f32.mrf.mxu0
        %v5640 = vadd.f32 %v5591, %v5639
        %5641 = vmatmul.bf16.gmra.mxu0 %v4183
        %v5642 = vpop.f32.mrf.mxu0
        %v5643 = vadd.f32 %v5594, %v5642
        %v5644 = vpop.f32.mrf.mxu0
        %v5645 = vadd.f32 %v5596, %v5644
        %5646 = vmatmul.bf16.gmra.mxu0 %v4187
        %v5647 = vpop.f32.mrf.mxu0
        %v5648 = vadd.f32 %v5599, %v5647
        %v5649 = vpop.f32.mrf.mxu0
        %v5650 = vadd.f32 %v5601, %v5649
        %5651 = vmatmul.bf16.gmra.mxu0 %v4191
        %v5652 = vpop.f32.mrf.mxu0
        %v5653 = vadd.f32 %v5604, %v5652
        %v5654 = vpop.f32.mrf.mxu0
        %v5655 = vadd.f32 %v5606, %v5654
        %5656 = vmatmul.bf16.gmra.mxu0 %v4195
        %v5657 = vpop.f32.mrf.mxu0
        %v5658 = vadd.f32 %v5609, %v5657
        %v5659 = vpop.f32.mrf.mxu0
        %v5660 = vadd.f32 %v5611, %v5659
        %5661 = vdwg.mxu0
        %5662 = vmatpush.bf16.msra.mxu0 %v4815
        %5663 = vmatpush.bf16.msra.mxu0 %v4811
        %5664 = vmatpush.bf16.msra.mxu0 %v4807
        %5665 = vmatpush.bf16.msra.mxu0 %v4803
        %5666 = vmatpush.bf16.msra.mxu0 %v4799
        %5667 = vmatpush.bf16.msra.mxu0 %v4795
        %5668 = vmatpush.bf16.msra.mxu0 %v4791
        %5669 = vmatpush.bf16.msra.mxu0 %v4787
        %5670 = vmatmul.bf16.gmra.mxu0 %v4168
        %v5671 = vpop.f32.mrf.mxu0
        %v5672 = vadd.f32 %v5623, %v5671
        %v5673 = vpop.f32.mrf.mxu0
        %v5674 = vadd.f32 %v5625, %v5673
        %5675 = vmatmul.bf16.gmra.mxu0 %v4172
        %v5676 = vpop.f32.mrf.mxu0
        %v5677 = vadd.f32 %v5628, %v5676
        %v5678 = vpop.f32.mrf.mxu0
        %v5679 = vadd.f32 %v5630, %v5678
        %5680 = vmatmul.bf16.gmra.mxu0 %v4176
        %v5681 = vpop.f32.mrf.mxu0
        %v5682 = vadd.f32 %v5633, %v5681
        %v5683 = vpop.f32.mrf.mxu0
        %v5684 = vadd.f32 %v5635, %v5683
        %5685 = vmatmul.bf16.gmra.mxu0 %v4180
        %v5686 = vpop.f32.mrf.mxu0
        %v5687 = vadd.f32 %v5638, %v5686
        %v5688 = vpop.f32.mrf.mxu0
        %v5689 = vadd.f32 %v5640, %v5688
        %5690 = vmatmul.bf16.gmra.mxu0 %v4184
        %v5691 = vpop.f32.mrf.mxu0
        %v5692 = vadd.f32 %v5643, %v5691
        %v5693 = vpop.f32.mrf.mxu0
        %v5694 = vadd.f32 %v5645, %v5693
        %5695 = vmatmul.bf16.gmra.mxu0 %v4188
        %v5696 = vpop.f32.mrf.mxu0
        %v5697 = vadd.f32 %v5648, %v5696
        %v5698 = vpop.f32.mrf.mxu0
        %v5699 = vadd.f32 %v5650, %v5698
        %5700 = vmatmul.bf16.gmra.mxu0 %v4192
        %v5701 = vpop.f32.mrf.mxu0
        %v5702 = vadd.f32 %v5653, %v5701
        %v5703 = vpop.f32.mrf.mxu0
        %v5704 = vadd.f32 %v5655, %v5703
        %5705 = vmatmul.bf16.gmra.mxu0 %v4196
        %v5706 = vpop.f32.mrf.mxu0
        %v5707 = vadd.f32 %v5658, %v5706
        %v5708 = vpop.f32.mrf.mxu0
        %v5709 = vadd.f32 %v5660, %v5708
        %5710 = vdwg.mxu0
        %5711 = vmatpush.bf16.msra.mxu0 %v4847
        %5712 = vmatpush.bf16.msra.mxu0 %v4843
        %5713 = vmatpush.bf16.msra.mxu0 %v4839
        %5714 = vmatpush.bf16.msra.mxu0 %v4835
        %5715 = vmatpush.bf16.msra.mxu0 %v4831
        %5716 = vmatpush.bf16.msra.mxu0 %v4827
        %5717 = vmatpush.bf16.msra.mxu0 %v4823
        %5718 = vmatpush.bf16.msra.mxu0 %v4819
        %5719 = vmatmul.bf16.gmra.mxu0 %v4169
        %v5720 = vpop.f32.mrf.mxu0
        %v5721 = vadd.f32 %v5672, %v5720
        %v5722 = vpop.f32.mrf.mxu0
        %v5723 = vadd.f32 %v5674, %v5722
        %5724 = vmatmul.bf16.gmra.mxu0 %v4173
        %v5725 = vpop.f32.mrf.mxu0
        %v5726 = vadd.f32 %v5677, %v5725
        %v5727 = vpop.f32.mrf.mxu0
        %v5728 = vadd.f32 %v5679, %v5727
        %5729 = vmatmul.bf16.gmra.mxu0 %v4177
        %v5730 = vpop.f32.mrf.mxu0
        %v5731 = vadd.f32 %v5682, %v5730
        %v5732 = vpop.f32.mrf.mxu0
        %v5733 = vadd.f32 %v5684, %v5732
        %5734 = vmatmul.bf16.gmra.mxu0 %v4181
        %v5735 = vpop.f32.mrf.mxu0
        %v5736 = vadd.f32 %v5687, %v5735
        %v5737 = vpop.f32.mrf.mxu0
        %v5738 = vadd.f32 %v5689, %v5737
        %5739 = vmatmul.bf16.gmra.mxu0 %v4185
        %v5740 = vpop.f32.mrf.mxu0
        %v5741 = vadd.f32 %v5692, %v5740
        %v5742 = vpop.f32.mrf.mxu0
        %v5743 = vadd.f32 %v5694, %v5742
        %5744 = vmatmul.bf16.gmra.mxu0 %v4189
        %v5745 = vpop.f32.mrf.mxu0
        %v5746 = vadd.f32 %v5697, %v5745
        %v5747 = vpop.f32.mrf.mxu0
        %v5748 = vadd.f32 %v5699, %v5747
        %5749 = vmatmul.bf16.gmra.mxu0 %v4193
        %v5750 = vpop.f32.mrf.mxu0
        %v5751 = vadd.f32 %v5702, %v5750
        %v5752 = vpop.f32.mrf.mxu0
        %v5753 = vadd.f32 %v5704, %v5752
        %5754 = vmatmul.bf16.gmra.mxu0 %v4197
        %v5755 = vpop.f32.mrf.mxu0
        %v5756 = vadd.f32 %v5707, %v5755
        %v5757 = vpop.f32.mrf.mxu0
        %v5758 = vadd.f32 %v5709, %v5757
        %5759 = vdwg.mxu0
        %v5760 = vmax.f32 %v5133, %v5135
        %v5761 = vrot.slane %v5760, 4
        %v5762 = vmax.f32 %v5760, %v5761
        %v5763 = vrot.slane %v5762, 2
        %v5764 = vmax.f32 %v5762, %v5763
        %v5765 = vrot.slane %v5764, 1
        %v5766 = vmax.f32 %v5764, %v5765
        %v5767 = vmax.f32 %v5329, %v5331
        %v5768 = vrot.slane %v5767, 4
        %v5769 = vmax.f32 %v5767, %v5768
        %v5770 = vrot.slane %v5769, 2
        %v5771 = vmax.f32 %v5769, %v5770
        %v5772 = vrot.slane %v5771, 1
        %v5773 = vmax.f32 %v5771, %v5772
        %v5774 = vmax.f32 %v5525, %v5527
        %v5775 = vrot.slane %v5774, 4
        %v5776 = vmax.f32 %v5774, %v5775
        %v5777 = vrot.slane %v5776, 2
        %v5778 = vmax.f32 %v5776, %v5777
        %v5779 = vrot.slane %v5778, 1
        %v5780 = vmax.f32 %v5778, %v5779
        %v5781 = vmax.f32 %v5721, %v5723
        %v5782 = vrot.slane %v5781, 4
        %v5783 = vmax.f32 %v5781, %v5782
        %v5784 = vrot.slane %v5783, 2
        %v5785 = vmax.f32 %v5783, %v5784
        %v5786 = vrot.slane %v5785, 1
        %v5787 = vmax.f32 %v5785, %v5786
        %v5788 = vmax.f32 %v5138, %v5140
        %v5789 = vrot.slane %v5788, 4
        %v5790 = vmax.f32 %v5788, %v5789
        %v5791 = vrot.slane %v5790, 2
        %v5792 = vmax.f32 %v5790, %v5791
        %v5793 = vrot.slane %v5792, 1
        %v5794 = vmax.f32 %v5792, %v5793
        %v5795 = vmax.f32 %v5334, %v5336
        %v5796 = vrot.slane %v5795, 4
        %v5797 = vmax.f32 %v5795, %v5796
        %v5798 = vrot.slane %v5797, 2
        %v5799 = vmax.f32 %v5797, %v5798
        %v5800 = vrot.slane %v5799, 1
        %v5801 = vmax.f32 %v5799, %v5800
        %v5802 = vmax.f32 %v5530, %v5532
        %v5803 = vrot.slane %v5802, 4
        %v5804 = vmax.f32 %v5802, %v5803
        %v5805 = vrot.slane %v5804, 2
        %v5806 = vmax.f32 %v5804, %v5805
        %v5807 = vrot.slane %v5806, 1
        %v5808 = vmax.f32 %v5806, %v5807
        %v5809 = vmax.f32 %v5726, %v5728
        %v5810 = vrot.slane %v5809, 4
        %v5811 = vmax.f32 %v5809, %v5810
        %v5812 = vrot.slane %v5811, 2
        %v5813 = vmax.f32 %v5811, %v5812
        %v5814 = vrot.slane %v5813, 1
        %v5815 = vmax.f32 %v5813, %v5814
        %v5816 = vmax.f32 %v5143, %v5145
        %v5817 = vrot.slane %v5816, 4
        %v5818 = vmax.f32 %v5816, %v5817
        %v5819 = vrot.slane %v5818, 2
        %v5820 = vmax.f32 %v5818, %v5819
        %v5821 = vrot.slane %v5820, 1
        %v5822 = vmax.f32 %v5820, %v5821
        %v5823 = vmax.f32 %v5339, %v5341
        %v5824 = vrot.slane %v5823, 4
        %v5825 = vmax.f32 %v5823, %v5824
        %v5826 = vrot.slane %v5825, 2
        %v5827 = vmax.f32 %v5825, %v5826
        %v5828 = vrot.slane %v5827, 1
        %v5829 = vmax.f32 %v5827, %v5828
        %v5830 = vmax.f32 %v5535, %v5537
        %v5831 = vrot.slane %v5830, 4
        %v5832 = vmax.f32 %v5830, %v5831
        %v5833 = vrot.slane %v5832, 2
        %v5834 = vmax.f32 %v5832, %v5833
        %v5835 = vrot.slane %v5834, 1
        %v5836 = vmax.f32 %v5834, %v5835
        %v5837 = vmax.f32 %v5731, %v5733
        %v5838 = vrot.slane %v5837, 4
        %v5839 = vmax.f32 %v5837, %v5838
        %v5840 = vrot.slane %v5839, 2
        %v5841 = vmax.f32 %v5839, %v5840
        %v5842 = vrot.slane %v5841, 1
        %v5843 = vmax.f32 %v5841, %v5842
        %v5844 = vmax.f32 %v5148, %v5150
        %v5845 = vrot.slane %v5844, 4
        %v5846 = vmax.f32 %v5844, %v5845
        %v5847 = vrot.slane %v5846, 2
        %v5848 = vmax.f32 %v5846, %v5847
        %v5849 = vrot.slane %v5848, 1
        %v5850 = vmax.f32 %v5848, %v5849
        %v5851 = vmax.f32 %v5344, %v5346
        %v5852 = vrot.slane %v5851, 4
        %v5853 = vmax.f32 %v5851, %v5852
        %v5854 = vrot.slane %v5853, 2
        %v5855 = vmax.f32 %v5853, %v5854
        %v5856 = vrot.slane %v5855, 1
        %v5857 = vmax.f32 %v5855, %v5856
        %v5858 = vmax.f32 %v5540, %v5542
        %v5859 = vrot.slane %v5858, 4
        %v5860 = vmax.f32 %v5858, %v5859
        %v5861 = vrot.slane %v5860, 2
        %v5862 = vmax.f32 %v5860, %v5861
        %v5863 = vrot.slane %v5862, 1
        %v5864 = vmax.f32 %v5862, %v5863
        %v5865 = vmax.f32 %v5736, %v5738
        %v5866 = vrot.slane %v5865, 4
        %v5867 = vmax.f32 %v5865, %v5866
        %v5868 = vrot.slane %v5867, 2
        %v5869 = vmax.f32 %v5867, %v5868
        %v5870 = vrot.slane %v5869, 1
        %v5871 = vmax.f32 %v5869, %v5870
        %v5872 = vmax.f32 %v5153, %v5155
        %v5873 = vrot.slane %v5872, 4
        %v5874 = vmax.f32 %v5872, %v5873
        %v5875 = vrot.slane %v5874, 2
        %v5876 = vmax.f32 %v5874, %v5875
        %v5877 = vrot.slane %v5876, 1
        %v5878 = vmax.f32 %v5876, %v5877
        %v5879 = vmax.f32 %v5349, %v5351
        %v5880 = vrot.slane %v5879, 4
        %v5881 = vmax.f32 %v5879, %v5880
        %v5882 = vrot.slane %v5881, 2
        %v5883 = vmax.f32 %v5881, %v5882
        %v5884 = vrot.slane %v5883, 1
        %v5885 = vmax.f32 %v5883, %v5884
        %v5886 = vmax.f32 %v5545, %v5547
        %v5887 = vrot.slane %v5886, 4
        %v5888 = vmax.f32 %v5886, %v5887
        %v5889 = vrot.slane %v5888, 2
        %v5890 = vmax.f32 %v5888, %v5889
        %v5891 = vrot.slane %v5890, 1
        %v5892 = vmax.f32 %v5890, %v5891
        %v5893 = vmax.f32 %v5741, %v5743
        %v5894 = vrot.slane %v5893, 4
        %v5895 = vmax.f32 %v5893, %v5894
        %v5896 = vrot.slane %v5895, 2
        %v5897 = vmax.f32 %v5895, %v5896
        %v5898 = vrot.slane %v5897, 1
        %v5899 = vmax.f32 %v5897, %v5898
        %v5900 = vmax.f32 %v5158, %v5160
        %v5901 = vrot.slane %v5900, 4
        %v5902 = vmax.f32 %v5900, %v5901
        %v5903 = vrot.slane %v5902, 2
        %v5904 = vmax.f32 %v5902, %v5903
        %v5905 = vrot.slane %v5904, 1
        %v5906 = vmax.f32 %v5904, %v5905
        %v5907 = vmax.f32 %v5354, %v5356
        %v5908 = vrot.slane %v5907, 4
        %v5909 = vmax.f32 %v5907, %v5908
        %v5910 = vrot.slane %v5909, 2
        %v5911 = vmax.f32 %v5909, %v5910
        %v5912 = vrot.slane %v5911, 1
        %v5913 = vmax.f32 %v5911, %v5912
        %v5914 = vmax.f32 %v5550, %v5552
        %v5915 = vrot.slane %v5914, 4
        %v5916 = vmax.f32 %v5914, %v5915
        %v5917 = vrot.slane %v5916, 2
        %v5918 = vmax.f32 %v5916, %v5917
        %v5919 = vrot.slane %v5918, 1
        %v5920 = vmax.f32 %v5918, %v5919
        %v5921 = vmax.f32 %v5746, %v5748
        %v5922 = vrot.slane %v5921, 4
        %v5923 = vmax.f32 %v5921, %v5922
        %v5924 = vrot.slane %v5923, 2
        %v5925 = vmax.f32 %v5923, %v5924
        %v5926 = vrot.slane %v5925, 1
        %v5927 = vmax.f32 %v5925, %v5926
        %v5928 = vmax.f32 %v5163, %v5165
        %v5929 = vrot.slane %v5928, 4
        %v5930 = vmax.f32 %v5928, %v5929
        %v5931 = vrot.slane %v5930, 2
        %v5932 = vmax.f32 %v5930, %v5931
        %v5933 = vrot.slane %v5932, 1
        %v5934 = vmax.f32 %v5932, %v5933
        %v5935 = vmax.f32 %v5359, %v5361
        %v5936 = vrot.slane %v5935, 4
        %v5937 = vmax.f32 %v5935, %v5936
        %v5938 = vrot.slane %v5937, 2
        %v5939 = vmax.f32 %v5937, %v5938
        %v5940 = vrot.slane %v5939, 1
        %v5941 = vmax.f32 %v5939, %v5940
        %v5942 = vmax.f32 %v5555, %v5557
        %v5943 = vrot.slane %v5942, 4
        %v5944 = vmax.f32 %v5942, %v5943
        %v5945 = vrot.slane %v5944, 2
        %v5946 = vmax.f32 %v5944, %v5945
        %v5947 = vrot.slane %v5946, 1
        %v5948 = vmax.f32 %v5946, %v5947
        %v5949 = vmax.f32 %v5751, %v5753
        %v5950 = vrot.slane %v5949, 4
        %v5951 = vmax.f32 %v5949, %v5950
        %v5952 = vrot.slane %v5951, 2
        %v5953 = vmax.f32 %v5951, %v5952
        %v5954 = vrot.slane %v5953, 1
        %v5955 = vmax.f32 %v5953, %v5954
        %v5956 = vmax.f32 %v5168, %v5170
        %v5957 = vrot.slane %v5956, 4
        %v5958 = vmax.f32 %v5956, %v5957
        %v5959 = vrot.slane %v5958, 2
        %v5960 = vmax.f32 %v5958, %v5959
        %v5961 = vrot.slane %v5960, 1
        %v5962 = vmax.f32 %v5960, %v5961
        %v5963 = vmax.f32 %v5364, %v5366
        %v5964 = vrot.slane %v5963, 4
        %v5965 = vmax.f32 %v5963, %v5964
        %v5966 = vrot.slane %v5965, 2
        %v5967 = vmax.f32 %v5965, %v5966
        %v5968 = vrot.slane %v5967, 1
        %v5969 = vmax.f32 %v5967, %v5968
        %v5970 = vmax.f32 %v5560, %v5562
        %v5971 = vrot.slane %v5970, 4
        %v5972 = vmax.f32 %v5970, %v5971
        %v5973 = vrot.slane %v5972, 2
        %v5974 = vmax.f32 %v5972, %v5973
        %v5975 = vrot.slane %v5974, 1
        %v5976 = vmax.f32 %v5974, %v5975
        %v5977 = vmax.f32 %v5756, %v5758
        %v5978 = vrot.slane %v5977, 4
        %v5979 = vmax.f32 %v5977, %v5978
        %v5980 = vrot.slane %v5979, 2
        %v5981 = vmax.f32 %v5979, %v5980
        %v5982 = vrot.slane %v5981, 1
        %v5983 = vmax.f32 %v5981, %v5982
        %v5984 = vld [vmem:[%s686] sm:$0xff]
        %v5985 = vld [vmem:[%s15] sm:$0x1]
        %5987 = vset.pattern.permute.xlu0 0
        %5988 = vperm.xlu0 %5987, %v5984
        %v5989 = vpop.permute.xlu0 %5988
        %v5991 = vperm.slane %v5985, 0
        %v5992 = vmul.f32 %v5989, %v5991
        %v5993 = vld [vmem:[%s15 + $0x1] sm:$0x1]
        %5994 = vset.pattern.permute.xlu0 1
        %5995 = vperm.xlu0 %5994, %v5984
        %v5996 = vpop.permute.xlu0 %5995
        %v5998 = vperm.slane %v5993, 0
        %v5999 = vmul.f32 %v5996, %v5998
        %v6000 = vadd.f32 %v5992, %v5999
        %v6001 = vld [vmem:[%s15 + $0x2] sm:$0x1]
        %6002 = vset.pattern.permute.xlu0 2
        %6003 = vperm.xlu0 %6002, %v5984
        %v6004 = vpop.permute.xlu0 %6003
        %v6006 = vperm.slane %v6001, 0
        %v6007 = vmul.f32 %v6004, %v6006
        %v6008 = vadd.f32 %v6000, %v6007
        %v6009 = vld [vmem:[%s16] sm:$0x1]
        %v6011 = vperm.slane %v6009, 0
        %v6013 = vadd.f32 %v6008, %v6011
        %v6014 = vmul.f32 %v6013, 0.5
        %v6015 = vmul.f32 %v6013, 0.70710677
        %vm6016 = vcmp.ge.f32.partialorder %v6015, 0.0
        %v6017 = vsel %vm6016, 1.0, -1.0
        %v6018 = vand.u32 2147483647, %v6015
        %v6019 = vmul.f32 %v6018, 0.3275911
        %v6020 = vadd.f32 %v6019, 1.0
        %v6021 = vrcp.pop %v6020
        %v6022 = vmul.f32 %v6021, 1.0614054
        %v6023 = vadd.f32 %v6022, -1.4531521
        %v6024 = vmul.f32 %v6023, %v6021
        %v6025 = vadd.f32 %v6024, 1.4214138
        %v6026 = vmul.f32 %v6025, %v6021
        %v6027 = vadd.f32 %v6026, -0.28449672
        %v6028 = vmul.f32 %v6027, %v6021
        %v6029 = vadd.f32 %v6028, 0.2548296
        %v6030 = vmul.f32 %v6029, %v6021
        %v6031 = vsub.f32 0.0, %v6018
        %v6032 = vmul.f32 %v6031, %v6018
        %v6033 = vmul.f32 %v6032, 1.442695
        %v6034 = vpow.pop %v6033
        %v6035 = vmul.f32 %v6030, %v6034
        %v6036 = vsub.f32 1.0, %v6035
        %v6037 = vmul.f32 %v6017, %v6036
        %v6038 = vadd.f32 %v6037, 1.0
        %v6039 = vmul.f32 %v6014, %v6038
        %v6040 = vpack.c.bf16 %v6039, %v6039
        %v6041 = vld [vmem:[%s17] sm:$0xff]
        %v6042 = vld [vmem:[%s17 + $0x8] sm:$0xff]
        %v6043 = vld [vmem:[%s17 + $0x10] sm:$0xff]
        %v6044 = vld [vmem:[%s17 + $0x18] sm:$0xff]
        %v6045 = vld [vmem:[%s17 + $0x20] sm:$0xff]
        %v6046 = vld [vmem:[%s17 + $0x28] sm:$0xff]
        %v6047 = vld [vmem:[%s17 + $0x30] sm:$0xff]
        %v6048 = vld [vmem:[%s17 + $0x38] sm:$0xff]
        %v6049 = vld [vmem:[%s17 + $0x40] sm:$0xff]
        %v6050 = vld [vmem:[%s17 + $0x48] sm:$0xff]
        %v6051 = vld [vmem:[%s17 + $0x50] sm:$0xff]
        %v6052 = vld [vmem:[%s17 + $0x58] sm:$0xff]
        %v6053 = vld [vmem:[%s17 + $0x60] sm:$0xff]
        %v6054 = vld [vmem:[%s17 + $0x68] sm:$0xff]
        %v6055 = vld [vmem:[%s17 + $0x70] sm:$0xff]
        %v6056 = vld [vmem:[%s17 + $0x78] sm:$0xff]
        %v6057 = vld [vmem:[%s17 + $0x80] sm:$0xff]
        %v6058 = vld [vmem:[%s17 + $0x88] sm:$0xff]
        %v6059 = vld [vmem:[%s17 + $0x90] sm:$0xff]
        %v6060 = vld [vmem:[%s17 + $0x98] sm:$0xff]
        %v6061 = vld [vmem:[%s17 + $0xa0] sm:$0xff]
        %v6062 = vld [vmem:[%s17 + $0xa8] sm:$0xff]
        %v6063 = vld [vmem:[%s17 + $0xb0] sm:$0xff]
        %v6064 = vld [vmem:[%s17 + $0xb8] sm:$0xff]
        %v6065 = vld [vmem:[%s17 + $0xc0] sm:$0xff]
        %v6066 = vld [vmem:[%s17 + $0xc8] sm:$0xff]
        %v6067 = vld [vmem:[%s17 + $0xd0] sm:$0xff]
        %v6068 = vld [vmem:[%s17 + $0xd8] sm:$0xff]
        %v6069 = vld [vmem:[%s17 + $0xe0] sm:$0xff]
        %v6070 = vld [vmem:[%s17 + $0xe8] sm:$0xff]
        %v6071 = vld [vmem:[%s17 + $0xf0] sm:$0xff]
        %v6072 = vld [vmem:[%s17 + $0xf8] sm:$0xff]
        %v6105 = vunpack.c.l.b16 %v6041
        %v6106 = vunpack.c.h.b16 %v6041
        %v6107 = vunpack.c.l.b16 %v6042
        %v6108 = vunpack.c.h.b16 %v6042
        %v6109 = vunpack.c.l.b16 %v6043
        %v6110 = vunpack.c.h.b16 %v6043
        %v6111 = vunpack.c.l.b16 %v6044
        %v6112 = vunpack.c.h.b16 %v6044
        %v6113 = vunpack.c.l.b16 %v6045
        %v6114 = vunpack.c.h.b16 %v6045
        %v6115 = vunpack.c.l.b16 %v6046
        %v6116 = vunpack.c.h.b16 %v6046
        %v6117 = vunpack.c.l.b16 %v6047
        %v6118 = vunpack.c.h.b16 %v6047
        %v6119 = vunpack.c.l.b16 %v6048
        %v6120 = vunpack.c.h.b16 %v6048
        %v6121 = vunpack.c.l.b16 %v6049
        %v6122 = vunpack.c.h.b16 %v6049
        %v6123 = vunpack.c.l.b16 %v6050
        %v6124 = vunpack.c.h.b16 %v6050
        %v6125 = vunpack.c.l.b16 %v6051
        %v6126 = vunpack.c.h.b16 %v6051
        %v6127 = vunpack.c.l.b16 %v6052
        %v6128 = vunpack.c.h.b16 %v6052
        %v6129 = vunpack.c.l.b16 %v6053
        %v6130 = vunpack.c.h.b16 %v6053
        %v6131 = vunpack.c.l.b16 %v6054
        %v6132 = vunpack.c.h.b16 %v6054
        %v6133 = vunpack.c.l.b16 %v6055
        %v6134 = vunpack.c.h.b16 %v6055
        %v6135 = vunpack.c.l.b16 %v6056
        %v6136 = vunpack.c.h.b16 %v6056
        %v6137 = vunpack.c.l.b16 %v6057
        %v6138 = vunpack.c.h.b16 %v6057
        %v6139 = vunpack.c.l.b16 %v6058
        %v6140 = vunpack.c.h.b16 %v6058
        %v6141 = vunpack.c.l.b16 %v6059
        %v6142 = vunpack.c.h.b16 %v6059
        %v6143 = vunpack.c.l.b16 %v6060
        %v6144 = vunpack.c.h.b16 %v6060
        %v6145 = vunpack.c.l.b16 %v6061
        %v6146 = vunpack.c.h.b16 %v6061
        %v6147 = vunpack.c.l.b16 %v6062
        %v6148 = vunpack.c.h.b16 %v6062
        %v6149 = vunpack.c.l.b16 %v6063
        %v6150 = vunpack.c.h.b16 %v6063
        %v6151 = vunpack.c.l.b16 %v6064
        %v6152 = vunpack.c.h.b16 %v6064
        %v6153 = vunpack.c.l.b16 %v6065
        %v6154 = vunpack.c.h.b16 %v6065
        %v6155 = vunpack.c.l.b16 %v6066
        %v6156 = vunpack.c.h.b16 %v6066
        %v6157 = vunpack.c.l.b16 %v6067
        %v6158 = vunpack.c.h.b16 %v6067
        %v6159 = vunpack.c.l.b16 %v6068
        %v6160 = vunpack.c.h.b16 %v6068
        %v6161 = vunpack.c.l.b16 %v6069
        %v6162 = vunpack.c.h.b16 %v6069
        %v6163 = vunpack.c.l.b16 %v6070
        %v6164 = vunpack.c.h.b16 %v6070
        %v6165 = vunpack.c.l.b16 %v6071
        %v6166 = vunpack.c.h.b16 %v6071
        %v6167 = vunpack.c.l.b16 %v6072
        %v6168 = vunpack.c.h.b16 %v6072
        %v6169 = vpack.c.b16 %v6109, %v6105
        %v6170 = vpack.c.b16 %v6110, %v6106
        %v6171 = vpack.c.b16 %v6111, %v6107
        %v6172 = vpack.c.b16 %v6112, %v6108
        %v6173 = vpack.c.b16 %v6117, %v6113
        %v6174 = vpack.c.b16 %v6118, %v6114
        %v6175 = vpack.c.b16 %v6119, %v6115
        %v6176 = vpack.c.b16 %v6120, %v6116
        %v6177 = vpack.c.b16 %v6125, %v6121
        %v6178 = vpack.c.b16 %v6126, %v6122
        %v6179 = vpack.c.b16 %v6127, %v6123
        %v6180 = vpack.c.b16 %v6128, %v6124
        %v6181 = vpack.c.b16 %v6133, %v6129
        %v6182 = vpack.c.b16 %v6134, %v6130
        %v6183 = vpack.c.b16 %v6135, %v6131
        %v6184 = vpack.c.b16 %v6136, %v6132
        %v6185 = vpack.c.b16 %v6141, %v6137
        %v6186 = vpack.c.b16 %v6142, %v6138
        %v6187 = vpack.c.b16 %v6143, %v6139
        %v6188 = vpack.c.b16 %v6144, %v6140
        %v6189 = vpack.c.b16 %v6149, %v6145
        %v6190 = vpack.c.b16 %v6150, %v6146
        %v6191 = vpack.c.b16 %v6151, %v6147
        %v6192 = vpack.c.b16 %v6152, %v6148
        %v6193 = vpack.c.b16 %v6157, %v6153
        %v6194 = vpack.c.b16 %v6158, %v6154
        %v6195 = vpack.c.b16 %v6159, %v6155
        %v6196 = vpack.c.b16 %v6160, %v6156
        %v6197 = vpack.c.b16 %v6165, %v6161
        %v6198 = vpack.c.b16 %v6166, %v6162
        %v6199 = vpack.c.b16 %v6167, %v6163
        %v6200 = vpack.c.b16 %v6168, %v6164
        %6233 = vmatpush.bf16.msra.mxu0 %v6197
        %6234 = vmatpush.bf16.msra.mxu0 %v6193
        %6235 = vmatpush.bf16.msra.mxu0 %v6189
        %6236 = vmatpush.bf16.msra.mxu0 %v6185
        %6237 = vmatpush.bf16.msra.mxu0 %v6181
        %6238 = vmatpush.bf16.msra.mxu0 %v6177
        %6239 = vmatpush.bf16.msra.mxu0 %v6173
        %6240 = vmatpush.bf16.msra.mxu0 %v6169
        %6241 = vmatmul.bf16.gmra.mxu0 %v6040
        %v6242 = vpop.f32.mrf.mxu0
        %v6243 = vadd.f32 0.0, %v6242
        %v6244 = vpop.f32.mrf.mxu0
        %6245 = vdwg.mxu0
        %6246 = vmatpush.bf16.msra.mxu0 %v6198
        %6247 = vmatpush.bf16.msra.mxu0 %v6194
        %6248 = vmatpush.bf16.msra.mxu0 %v6190
        %6249 = vmatpush.bf16.msra.mxu0 %v6186
        %6250 = vmatpush.bf16.msra.mxu0 %v6182
        %6251 = vmatpush.bf16.msra.mxu0 %v6178
        %6252 = vmatpush.bf16.msra.mxu0 %v6174
        %6253 = vmatpush.bf16.msra.mxu0 %v6170
        %6254 = vmatmul.bf16.gmra.mxu0 %v6040
        %v6255 = vpop.f32.mrf.mxu0
        %v6256 = vadd.f32 0.0, %v6255
        %v6257 = vpop.f32.mrf.mxu0
        %6258 = vdwg.mxu0
        %6259 = vmatpush.bf16.msra.mxu0 %v6199
        %6260 = vmatpush.bf16.msra.mxu0 %v6195
        %6261 = vmatpush.bf16.msra.mxu0 %v6191
        %6262 = vmatpush.bf16.msra.mxu0 %v6187
        %6263 = vmatpush.bf16.msra.mxu0 %v6183
        %6264 = vmatpush.bf16.msra.mxu0 %v6179
        %6265 = vmatpush.bf16.msra.mxu0 %v6175
        %6266 = vmatpush.bf16.msra.mxu0 %v6171
        %6267 = vmatmul.bf16.gmra.mxu0 %v6040
        %v6268 = vpop.f32.mrf.mxu0
        %v6269 = vadd.f32 0.0, %v6268
        %v6270 = vpop.f32.mrf.mxu0
        %6271 = vdwg.mxu0
        %6272 = vmatpush.bf16.msra.mxu0 %v6200
        %6273 = vmatpush.bf16.msra.mxu0 %v6196
        %6274 = vmatpush.bf16.msra.mxu0 %v6192
        %6275 = vmatpush.bf16.msra.mxu0 %v6188
        %6276 = vmatpush.bf16.msra.mxu0 %v6184
        %6277 = vmatpush.bf16.msra.mxu0 %v6180
        %6278 = vmatpush.bf16.msra.mxu0 %v6176
        %6279 = vmatpush.bf16.msra.mxu0 %v6172
        %6280 = vmatmul.bf16.gmra.mxu0 %v6040
        %v6281 = vpop.f32.mrf.mxu0
        %v6282 = vadd.f32 0.0, %v6281
        %v6283 = vpop.f32.mrf.mxu0
        %6284 = vdwg.mxu0
        %v6289 = vrot.slane %v6243, 1
        %v6290 = vrot.slane %v6256, 1
        %v6291 = vrot.slane %v6269, 1
        %v6292 = vrot.slane %v6282, 1
        %v6293 = vrot.slane %v6243, 2
        %v6294 = vrot.slane %v6256, 2
        %v6295 = vrot.slane %v6269, 2
        %v6296 = vrot.slane %v6282, 2
        %v6297 = vrot.slane %v6243, 3
        %v6298 = vrot.slane %v6256, 3
        %v6299 = vrot.slane %v6269, 3
        %v6300 = vrot.slane %v6282, 3
        %v6301 = vrot.slane %v6243, 4
        %v6302 = vrot.slane %v6256, 4
        %v6303 = vrot.slane %v6269, 4
        %v6304 = vrot.slane %v6282, 4
        %v6305 = vrot.slane %v6243, 5
        %v6306 = vrot.slane %v6256, 5
        %v6307 = vrot.slane %v6269, 5
        %v6308 = vrot.slane %v6282, 5
        %v6309 = vrot.slane %v6243, 6
        %v6310 = vrot.slane %v6256, 6
        %v6311 = vrot.slane %v6269, 6
        %v6312 = vrot.slane %v6282, 6
        %v6313 = vrot.slane %v6243, 7
        %v6314 = vrot.slane %v6256, 7
        %v6315 = vrot.slane %v6269, 7
        %v6316 = vrot.slane %v6282, 7
        %v6349 = vadd.f32 %v5766, %v6243
        %v6350 = vadd.f32 %v5773, %v6256
        %v6351 = vadd.f32 %v5780, %v6269
        %v6352 = vadd.f32 %v5787, %v6282
        %v6353 = vadd.f32 %v5794, %v6289
        %v6354 = vadd.f32 %v5801, %v6290
        %v6355 = vadd.f32 %v5808, %v6291
        %v6356 = vadd.f32 %v5815, %v6292
        %v6357 = vadd.f32 %v5822, %v6293
        %v6358 = vadd.f32 %v5829, %v6294
        %v6359 = vadd.f32 %v5836, %v6295
        %v6360 = vadd.f32 %v5843, %v6296
        %v6361 = vadd.f32 %v5850, %v6297
        %v6362 = vadd.f32 %v5857, %v6298
        %v6363 = vadd.f32 %v5864, %v6299
        %v6364 = vadd.f32 %v5871, %v6300
        %v6365 = vadd.f32 %v5878, %v6301
        %v6366 = vadd.f32 %v5885, %v6302
        %v6367 = vadd.f32 %v5892, %v6303
        %v6368 = vadd.f32 %v5899, %v6304
        %v6369 = vadd.f32 %v5906, %v6305
        %v6370 = vadd.f32 %v5913, %v6306
        %v6371 = vadd.f32 %v5920, %v6307
        %v6372 = vadd.f32 %v5927, %v6308
        %v6373 = vadd.f32 %v5934, %v6309
        %v6374 = vadd.f32 %v5941, %v6310
        %v6375 = vadd.f32 %v5948, %v6311
        %v6376 = vadd.f32 %v5955, %v6312
        %v6377 = vadd.f32 %v5962, %v6313
        %v6378 = vadd.f32 %v5969, %v6314
        %v6379 = vadd.f32 %v5976, %v6315
        %v6380 = vadd.f32 %v5983, %v6316
        %v6381 = vld [vmem:[%s18] sm:$0xf]
        %v6383 = vperm.slane %v6381, 0
        %v6384 = vperm.slane %v6381, 1
        %v6385 = vperm.slane %v6381, 2
        %v6386 = vperm.slane %v6381, 3
        %v6391 = vadd.f32 %v6349, %v6383
        %v6392 = vadd.f32 %v6350, %v6384
        %v6393 = vadd.f32 %v6351, %v6385
        %v6394 = vadd.f32 %v6352, %v6386
        %v6395 = vadd.f32 %v6353, %v6383
        %v6396 = vadd.f32 %v6354, %v6384
        %v6397 = vadd.f32 %v6355, %v6385
        %v6398 = vadd.f32 %v6356, %v6386
        %v6399 = vadd.f32 %v6357, %v6383
        %v6400 = vadd.f32 %v6358, %v6384
        %v6401 = vadd.f32 %v6359, %v6385
        %v6402 = vadd.f32 %v6360, %v6386
        %v6403 = vadd.f32 %v6361, %v6383
        %v6404 = vadd.f32 %v6362, %v6384
        %v6405 = vadd.f32 %v6363, %v6385
        %v6406 = vadd.f32 %v6364, %v6386
        %v6407 = vadd.f32 %v6365, %v6383
        %v6408 = vadd.f32 %v6366, %v6384
        %v6409 = vadd.f32 %v6367, %v6385
        %v6410 = vadd.f32 %v6368, %v6386
        %v6411 = vadd.f32 %v6369, %v6383
        %v6412 = vadd.f32 %v6370, %v6384
        %v6413 = vadd.f32 %v6371, %v6385
        %v6414 = vadd.f32 %v6372, %v6386
        %v6415 = vadd.f32 %v6373, %v6383
        %v6416 = vadd.f32 %v6374, %v6384
        %v6417 = vadd.f32 %v6375, %v6385
        %v6418 = vadd.f32 %v6376, %v6386
        %v6419 = vadd.f32 %v6377, %v6383
        %v6420 = vadd.f32 %v6378, %v6384
        %v6421 = vadd.f32 %v6379, %v6385
        %v6422 = vadd.f32 %v6380, %v6386
        %v6455 = vrot.slane %v6395, 7
        %v6456 = vsel %vm2656, %v6455, %v6391
        %v6457 = vrot.slane %v6399, 6
        %v6458 = vsel %vm2658, %v6457, %v6456
        %v6459 = vrot.slane %v6403, 5
        %v6460 = vsel %vm2660, %v6459, %v6458
        %v6461 = vrot.slane %v6407, 4
        %v6462 = vsel %vm2662, %v6461, %v6460
        %v6463 = vrot.slane %v6411, 3
        %v6464 = vsel %vm2664, %v6463, %v6462
        %v6465 = vrot.slane %v6415, 2
        %v6466 = vsel %vm2666, %v6465, %v6464
        %v6467 = vrot.slane %v6419, 1
        %v6468 = vsel %vm2668, %v6467, %v6466
        %v6469 = vrot.slane %v6396, 7
        %v6470 = vsel %vm2656, %v6469, %v6392
        %v6471 = vrot.slane %v6400, 6
        %v6472 = vsel %vm2658, %v6471, %v6470
        %v6473 = vrot.slane %v6404, 5
        %v6474 = vsel %vm2660, %v6473, %v6472
        %v6475 = vrot.slane %v6408, 4
        %v6476 = vsel %vm2662, %v6475, %v6474
        %v6477 = vrot.slane %v6412, 3
        %v6478 = vsel %vm2664, %v6477, %v6476
        %v6479 = vrot.slane %v6416, 2
        %v6480 = vsel %vm2666, %v6479, %v6478
        %v6481 = vrot.slane %v6420, 1
        %v6482 = vsel %vm2668, %v6481, %v6480
        %v6483 = vrot.slane %v6397, 7
        %v6484 = vsel %vm2656, %v6483, %v6393
        %v6485 = vrot.slane %v6401, 6
        %v6486 = vsel %vm2658, %v6485, %v6484
        %v6487 = vrot.slane %v6405, 5
        %v6488 = vsel %vm2660, %v6487, %v6486
        %v6489 = vrot.slane %v6409, 4
        %v6490 = vsel %vm2662, %v6489, %v6488
        %v6491 = vrot.slane %v6413, 3
        %v6492 = vsel %vm2664, %v6491, %v6490
        %v6493 = vrot.slane %v6417, 2
        %v6494 = vsel %vm2666, %v6493, %v6492
        %v6495 = vrot.slane %v6421, 1
        %v6496 = vsel %vm2668, %v6495, %v6494
        %v6497 = vrot.slane %v6398, 7
        %v6498 = vsel %vm2656, %v6497, %v6394
        %v6499 = vrot.slane %v6402, 6
        %v6500 = vsel %vm2658, %v6499, %v6498
        %v6501 = vrot.slane %v6406, 5
        %v6502 = vsel %vm2660, %v6501, %v6500
        %v6503 = vrot.slane %v6410, 4
        %v6504 = vsel %vm2662, %v6503, %v6502
        %v6505 = vrot.slane %v6414, 3
        %v6506 = vsel %vm2664, %v6505, %v6504
        %v6507 = vrot.slane %v6418, 2
        %v6508 = vsel %vm2666, %v6507, %v6506
        %v6509 = vrot.slane %v6422, 1
        %v6510 = vsel %vm2668, %v6509, %v6508
        %6515 = vst [vmem:[%s676] sm:$0xff] %v6468
        %6516 = vst [vmem:[%s676 + $0x8] sm:$0xff] %v6482
        %6517 = vst [vmem:[%s676 + $0x10] sm:$0xff] %v6496
        %6518 = vst [vmem:[%s676 + $0x18] sm:$0xff] %v6510
        %s6519 = sand.u32 %s453, 1
        %s6520 = scalar_lea.sflag [#allocation4], %s6519
        %s6521 = sand.u32 %s453, 1
        %s6522 = smul.addr %s6521, 32
        %s6523 = scalar_lea.vmem [#allocation10], %s6522
        // Predicated region
        $region113: #{tpu_custom_call.1} parent=95 // pred_check
          %p6524 = pneg %p463
        $region114: #{tpu_custom_call.1} parent=95 // pred_check_branch
          %6526 = sbr.rel (%p6524) target = $region116
        $region115: #{tpu_custom_call.1} parent=95 // pred_region
          %6528 = vsyncadd %s6520, 0
          %s6529 = smul.addr %s36, 4
          %s6530 = smul.addr %s6529, 8
          %s6531 = scalar_lea.hbm %s19, %s6530
          %s6533 = sshll.u32 %s6523, 4
          %s6534 = int_to_ptr.vmem [resolvable:$true] %s6533
          %s6535 = sshll.u32 %s6531, 4
          %s6536 = int_to_ptr.hbm [resolvable:$true] %s6535
          %6538 = dma.vmem_to_hbm [thread:$0]  %s6534, 512, %s6536, %s6520
        $region116: #{tpu_custom_call.1} parent=95 // pred_fallthru
          _
      $region96: #{tpu_custom_call.1} parent=5 // pred_fallthru
        _
      %p6539 = scmp.le.s32.totalorder 2, %s31
      // Predicated region
      $region117: #{tpu_custom_call.1} parent=5 // pred_check
        %p6540 = pneg %p6539
      $region118: #{tpu_custom_call.1} parent=5 // pred_check_branch
        %6542 = sbr.rel (%p6540) target = $region120
      $region119: #{tpu_custom_call.1} parent=5 // pred_region
        %s6543 = ssub.s32 %s31, 2
        // Predicated region
        $region121: #{tpu_custom_call.1} parent=119 // pred_check
          %p6544 = pneg %p469
        $region122: #{tpu_custom_call.1} parent=119 // pred_check_branch
          %6546 = sbr.rel (%p6544) target = $region124
        $region123: #{tpu_custom_call.1} parent=119 // pred_region
          %s6547 = sand.u32 %s454, 1
          %s6548 = scalar_lea.sflag [#allocation4], %s6547
          %s6549 = sand.u32 %s454, 1
          %s6550 = smul.addr %s6549, 32
          %s6551 = scalar_lea.vmem [#allocation10], %s6550
          %6553 = dma.done %s6548, 512
        $region124: #{tpu_custom_call.1} parent=119 // pred_fallthru
          _
      $region120: #{tpu_custom_call.1} parent=5 // pred_fallthru
        _
    $region6: #{tpu_custom_call.1} parent=1 // loop_footer
      %s35 = sadd.s32 1, %s31
    $region7: #{tpu_custom_call.1} parent=1 // loop_footer_branch
      %30 = sbr.rel target = $region3
    $region8: #{tpu_custom_call.1} parent=1 // loop_exit
      _
    %6554 = vsyncpa [#allocation3], 1
    %s6555 = scalar_lea.sflag [#allocation3], 1
    %6556 = vsyncpa %s6555, 1
    %6557 = vsyncpa [#allocation6], 1
    %6558 = vsyncpa [#allocation9], 1
    %6559 = vsyncpa [#allocation4], 1
    %s6560 = scalar_lea.sflag [#allocation4], 1
    %6561 = vsyncpa %s6560, 1

</llo_original>
